<compile_context>
chip_gen: v7x
topology: tpu7x:2x2x1
jax: 0.10.0
libtpu: 0.0.40
codegen_flags: <defaults>
</compile_context>

<pallas_src>
import functools

import jax
import jax.numpy as jnp
from jax.experimental import pallas as pl
from jax.experimental.pallas import tpu as pltpu

# (kernel_size, stride, out_channels) for the three conv layers (PyTorch spec).
CONV_CFG = ((8, 4, 32), (4, 2, 64), (3, 1, 64))
VMEM_LIMIT = 32 * 1024 * 1024      # explicit scoped-VMEM limit (v5e default is 16 MiB)
FC_MAX_TILE = 256                  # rows per fc-head grid step


def _round_up(x, m):
    return (x + m - 1) // m * m


def _layer_geoms(input_shape):
    """Static per-layer geometry (sizes / used extents) for the conv stack."""
    C, H, W = input_shape
    geoms = []
    c_in = C
    for (k, s, oc) in CONV_CFG:
        assert k % s == 0, "conv decomposition assumes kernel % stride == 0"
        oh, ow = (H - k) // s + 1, (W - k) // s + 1
        assert oh >= 1 and ow >= 1, "input too small for the DQN conv stack"
        hu, wu = (oh - 1) * s + k, (ow - 1) * s + k     # used input extent
        geoms.append(dict(k=k, s=s, c_in=c_in, oc=oc, H=H, W=W,
                          hu=hu, wu=wu, oh=oh, ow=ow))
        H, W, c_in = oh, ow, oc
    return geoms


# ----------------------------- Pallas kernels ------------------------------
def _conv_kernel(x_ref, w_ref, b_ref, o_ref, *, oh, relu):
    """Fused conv layer for one image (in-kernel 'im2col' via Toeplitz weight).

    x_ref: (1, H/s, s*W*C)      merged row-major NHWC input (whole image in VMEM)
    w_ref: (k/s, s*W*C, ow*OC)  block-Toeplitz weight (built in prepare_params)
    b_ref: (1, ow*OC)           bias tiled across output columns
    o_ref: (1, oh, ow*OC)       merged row-major NHWC output
    """
    xa = x_ref[0]                                      # (H/s, s*W*C) bf16
    acc = jnp.zeros(o_ref.shape[1:], jnp.float32)      # (oh, ow*OC)
    for ib in range(w_ref.shape[0]):                   # k/s taps (2..3), static
        acc = acc + jnp.dot(xa[ib:ib + oh], w_ref[ib],
                            preferred_element_type=jnp.float32)
    acc = acc + b_ref[...]
    if relu:
        acc = jnp.maximum(acc, 0.0)
    o_ref[0] = acc.astype(o_ref.dtype)


def _fc_head_kernel(x_ref, w1_ref, b1_ref, w2_ref, b2_ref, o_ref, h_ref):
    # Fused fc1(ReLU) + fc2: the 512-wide hidden stays in a VMEM scratch.
    h = jnp.dot(x_ref[...], w1_ref[...], preferred_element_type=jnp.float32)
    h_ref[...] = jnp.maximum(h + b1_ref[...], 0.0).astype(h_ref.dtype)
    y = jnp.dot(h_ref[...], w2_ref[...], preferred_element_type=jnp.float32)
    o_ref[...] = (y + b2_ref[...]).astype(o_ref.dtype)


# ------------------------------ layer wrappers ------------------------------
def conv_layer(x3, w_toep, b_row, g, relu):
    """One conv layer. x3 is (N, H, W*C) bf16 (merged row-major NHWC)."""
    N = x3.shape[0]
    s, oh, ow, oc = g["s"], g["oh"], g["ow"], g["oc"]
    H, W, C, hu, wu = g["H"], g["W"], g["c_in"], g["hu"], g["wu"]
    if (hu, wu) != (H, W):        # drop unused trailing rows/cols (rare)
        x3 = x3.reshape(N, H, W, C)[:, :hu, :wu, :]
    hb = hu // s
    swc = s * wu * C
    x3 = x3.reshape(N, hb, swc)   # free row-major reshape
    kb = g["k"] // s
    return pl.pallas_call(
        functools.partial(_conv_kernel, oh=oh, relu=relu),
        out_shape=jax.ShapeDtypeStruct((N, oh, ow * oc), jnp.bfloat16),
        grid=(N,),
        in_specs=[
            pl.BlockSpec((1, hb, swc), lambda n: (n, 0, 0)),
            pl.BlockSpec((kb, swc, ow * oc), lambda n: (0, 0, 0)),
            pl.BlockSpec((1, ow * oc), lambda n: (0, 0)),
        ],
        out_specs=pl.BlockSpec((1, oh, ow * oc), lambda n: (n, 0, 0)),
        compiler_params=pltpu.CompilerParams(
            dimension_semantics=("parallel",),
            vmem_limit_bytes=VMEM_LIMIT),
    )(x3, w_toep, b_row)


def _fc_tile(M):
    if M <= 16:
        return M                  # single full-row tile (allowed: full dim)
    # >=2 grid steps (keeps both v7x TensorCores busy), multiple of 16 for
    # bf16 sublane packing, capped so the fused head stays well inside VMEM.
    return min(FC_MAX_TILE, _round_up(pl.cdiv(M, 2), 16))


def fc_head(x, w1, b1, w2, b2):
    """Fused relu(x @ w1 + b1) @ w2 + b2, M-tiled over the batch (ragged ok)."""
    M, K = x.shape
    H = w1.shape[1]
    A = w2.shape[1]
    tm = _fc_tile(M)
    return pl.pallas_call(
        _fc_head_kernel,
        out_shape=jax.ShapeDtypeStruct((M, A), jnp.float32),
        grid=(pl.cdiv(M, tm),),
        in_specs=[
            pl.BlockSpec((tm, K), lambda i: (i, 0)),
            pl.BlockSpec((K, H), lambda i: (0, 0)),
            pl.BlockSpec((1, H), lambda i: (0, 0)),
            pl.BlockSpec((H, A), lambda i: (0, 0)),
            pl.BlockSpec((1, A), lambda i: (0, 0)),
        ],
        out_specs=pl.BlockSpec((tm, A), lambda i: (i, 0)),
        scratch_shapes=[pltpu.VMEM((tm, H), jnp.bfloat16)],
        compiler_params=pltpu.CompilerParams(
            dimension_semantics=("parallel",),
            vmem_limit_bytes=VMEM_LIMIT),
    )(x, w1, b1, w2, b2)


# ------------------------------ parameters ---------------------------------
def init_params(key, input_shape, n_actions):
    C, H, W = input_shape
    g_last = _layer_geoms(input_shape)[-1]
    conv_out = g_last["oc"] * g_last["oh"] * g_last["ow"]
    keys = jax.random.split(key, 10)
    s = 0.05

    def nrm(k, shape):
        return jax.random.normal(k, shape, jnp.float32) * s

    return {
        "w1": nrm(keys[0], (32, C, 8, 8)), "b1": nrm(keys[1], (32,)),
        "w2": nrm(keys[2], (64, 32, 4, 4)), "b2": nrm(keys[3], (64,)),
        "w3": nrm(keys[4], (64, 64, 3, 3)), "b3": nrm(keys[5], (64,)),
        "fc1_w": nrm(keys[6], (conv_out, 512)), "fc1_b": nrm(keys[7], (512,)),
        "fc2_w": nrm(keys[8], (512, n_actions)), "fc2_b": nrm(keys[9], (n_actions,)),
    }


def prepare_params(params, input_shape):
    """One-time conversion to kernel-ready layout (hoisted out of the forward).

    Each conv weight (OC, C, k, k) becomes a block-Toeplitz matrix
    T[ib, ip*W*C + w*C + c, ox*OC + oc] = w[oc, c, ib*s+ip, w - ox*s] so that a
    plain 2-D matmul against contiguous (oh, s*W*C) row slabs performs the
    conv -- the strided patch gather is absorbed into the weight, once.
    """
    geoms = _layer_geoms(input_shape)
    prep = {}
    for li, g in enumerate(geoms, start=1):
        w = params[f"w{li}"]                        # (OC, C, k, k) OIHW
        b = params[f"b{li}"]
        k, s, ow, C, OC, wu = g["k"], g["s"], g["ow"], g["c_in"], g["oc"], g["wu"]
        wt = jnp.transpose(w, (2, 3, 1, 0))         # (k, k, C, OC) == (i, j, c, oc)
        # sel[j, wpos, ox] = 1 iff wpos == ox*s + j
        sel = (jnp.arange(wu)[None, :, None]
               == (jnp.arange(ow)[None, None, :] * s
                   + jnp.arange(k)[:, None, None])).astype(w.dtype)
        toep = jnp.einsum("jwo,ijcn->iwcon", sel, wt)        # (k, wu, C, ow, OC)
        toep = toep.reshape(k // s, s * wu * C, ow * OC)     # taps x rows x cols
        prep[f"cw{li}"] = toep.astype(jnp.bfloat16)
        prep[f"cb{li}"] = jnp.tile(b, ow).reshape(1, ow * OC).astype(jnp.float32)

    g3 = geoms[-1]
    c3, h3, w3 = g3["oc"], g3["oh"], g3["ow"]
    conv_out = c3 * h3 * w3
    # Permute fc1 rows from PyTorch's NCHW flatten to NHWC flatten so the conv
    # output can be flattened directly (free reshape, no activation transpose).
    fc1_w = params["fc1_w"].reshape(c3, h3, w3, -1).transpose(1, 2, 0, 3)
    prep["fc1_w"] = fc1_w.reshape(conv_out, -1).astype(jnp.bfloat16)
    prep["fc1_b"] = params["fc1_b"].reshape(1, -1).astype(jnp.float32)
    prep["fc2_w"] = params["fc2_w"].astype(jnp.bfloat16)
    prep["fc2_b"] = params["fc2_b"].reshape(1, -1).astype(jnp.float32)
    return prep


# ------------------------------ forward pass -------------------------------
@jax.jit
def dqn_forward(prep, x_nchw):
    N, C, H, W = x_nchw.shape
    geoms = _layer_geoms((C, H, W))
    # TODO(synk): fold this transpose + bf16 cast into the conv1 kernel.
    x = jnp.transpose(x_nchw, (0, 2, 3, 1)).astype(jnp.bfloat16)   # NHWC
    x = x.reshape(N, H, W * C)                                     # merged NHWC
    for li, g in enumerate(geoms, start=1):
        x = conv_layer(x, prep[f"cw{li}"], prep[f"cb{li}"], g,
                       relu=(li < len(CONV_CFG)))   # no ReLU after conv3 (spec)
        # x is now (N, oh, ow*OC) == merged NHWC for the next layer
    flat = x.reshape(N, -1)                         # free NHWC flatten
    return fc_head(flat, prep["fc1_w"], prep["fc1_b"],
                   prep["fc2_w"], prep["fc2_b"])


# ------------------------- pure-JAX reference ------------------------------
def dqn_reference(params, x):
    def conv(h, w, b, s):
        y = jax.lax.conv_general_dilated(
            h, w, window_strides=(s, s), padding="VALID",
            dimension_numbers=("NCHW", "OIHW", "NCHW"),
            precision=jax.lax.Precision.HIGHEST,
        )
        return y + b[None, :, None, None]

    h = jax.nn.relu(conv(x, params["w1"], params["b1"], 4))
    h = jax.nn.relu(conv(h, params["w2"], params["b2"], 2))
    h = conv(h, params["w3"], params["b3"], 1)
    h = h.reshape(x.shape[0], -1)
    h = jax.nn.relu(
        jnp.dot(h, params["fc1_w"], precision=jax.lax.Precision.HIGHEST)
        + params["fc1_b"]
    )
    return (
        jnp.dot(h, params["fc2_w"], precision=jax.lax.Precision.HIGHEST)
        + params["fc2_b"]
    )


if __name__ == "__main__":
    # smallest spatial size the (8/4, 4/2, 3/1) conv stack accepts cleanly
    input_shape = (4, 36, 36)  # (C, H, W)
    n_actions = 6
    batch = 2

    key = jax.random.PRNGKey(0)
    k_p, k_x = jax.random.split(key)
    params = init_params(k_p, input_shape, n_actions)
    prep = prepare_params(params, input_shape)
    x = jax.random.normal(k_x, (batch,) + input_shape, jnp.float32)

    out = jax.block_until_ready(dqn_forward(prep, x))
    ref = jax.block_until_ready(dqn_reference(params, x))

    assert out.shape == (batch, n_actions), out.shape
    # Kernel runs bf16 on the MXU with f32 accumulation; reference is f32
    # HIGHEST, so tolerance is set to bf16-level (~1e-2) error.
    assert jnp.allclose(out, ref, rtol=2e-2, atol=2e-2), (out, ref)
    print("KERNEL_OK")
</pallas_src>

<mosaic_0001>
module attributes {stable_mosaic.version = 11 : i64} {
  func.func @_conv_kernel(%arg0: i32, %arg1: memref<1x9x576xbf16, #tpu.memory_space<vmem>>, %arg2: memref<2x576x256xbf16, #tpu.memory_space<vmem>>, %arg3: memref<1x256xf32, #tpu.memory_space<vmem>>, %arg4: memref<1x8x256xbf16, #tpu.memory_space<vmem>>) attributes {dimension_semantics = [#tpu.dimension_semantics<parallel>], iteration_bounds = array<i64: 2>, scalar_prefetch = 0 : i64, scratch_operands = 0 : i64, tpu.core_type = #tpu.core_type<tc>, window_params = [{transform_indices = @transform_0, window_bounds = array<i64: 1, 9, 576>}, {pipeline_mode = #tpu.pipeline_mode<synchronous>, transform_indices = @transform_1, window_bounds = array<i64: 2, 576, 256>}, {pipeline_mode = #tpu.pipeline_mode<synchronous>, transform_indices = @transform_2, window_bounds = array<i64: 1, 256>}, {transform_indices = @transform_3, window_bounds = array<i64: 1, 8, 256>}]} {
    %c0 = arith.constant 0 : index
    %c0_0 = arith.constant 0 : index
    %c0_1 = arith.constant 0 : index
    %0 = vector.load %arg1[%c0, %c0_0, %c0_1] : memref<1x9x576xbf16, #tpu.memory_space<vmem>>, vector<1x9x576xbf16>
    %1 = vector.shape_cast %0 : vector<1x9x576xbf16> to vector<9x576xbf16>
    %cst = arith.constant 0.000000e+00 : f32
    %2 = vector.broadcast %cst : f32 to vector<8x256xf32>
    %3 = vector.extract_strided_slice %1 {offsets = [0, 0], sizes = [8, 576], strides = [1, 1]} : vector<9x576xbf16> to vector<8x576xbf16>
    %c0_2 = arith.constant 0 : index
    %c0_3 = arith.constant 0 : index
    %c0_4 = arith.constant 0 : index
    %4 = vector.load %arg2[%c0_2, %c0_3, %c0_4] : memref<2x576x256xbf16, #tpu.memory_space<vmem>>, vector<1x576x256xbf16>
    %5 = vector.shape_cast %4 : vector<1x576x256xbf16> to vector<576x256xbf16>
    %cst_5 = arith.constant dense<0.000000e+00> : vector<8x256xf32>
    %6 = tpu.matmul %3, %5, %cst_5 {dimension_numbers = #tpu.dot_dimension_numbers<[1], [0], [0], [1], [0, 0, 1, 1], [], []>} : vector<8x576xbf16>, vector<576x256xbf16>, vector<8x256xf32> -> vector<8x256xf32>
    %7 = arith.addf %2, %6 : vector<8x256xf32>
    %8 = vector.extract_strided_slice %1 {offsets = [1, 0], sizes = [8, 576], strides = [1, 1]} : vector<9x576xbf16> to vector<8x576xbf16>
    %c1 = arith.constant 1 : index
    %c0_6 = arith.constant 0 : index
    %c0_7 = arith.constant 0 : index
    %9 = vector.load %arg2[%c1, %c0_6, %c0_7] : memref<2x576x256xbf16, #tpu.memory_space<vmem>>, vector<1x576x256xbf16>
    %10 = vector.shape_cast %9 : vector<1x576x256xbf16> to vector<576x256xbf16>
    %cst_8 = arith.constant dense<0.000000e+00> : vector<8x256xf32>
    %11 = tpu.matmul %8, %10, %cst_8 {dimension_numbers = #tpu.dot_dimension_numbers<[1], [0], [0], [1], [0, 0, 1, 1], [], []>} : vector<8x576xbf16>, vector<576x256xbf16>, vector<8x256xf32> -> vector<8x256xf32>
    %12 = arith.addf %7, %11 : vector<8x256xf32>
    %c0_9 = arith.constant 0 : index
    %c0_10 = arith.constant 0 : index
    %13 = vector.load %arg3[%c0_9, %c0_10] : memref<1x256xf32, #tpu.memory_space<vmem>>, vector<1x256xf32>
    %14 = vector.broadcast %13 : vector<1x256xf32> to vector<8x256xf32>
    %15 = arith.addf %12, %14 : vector<8x256xf32>
    %cst_11 = arith.constant 0.000000e+00 : f32
    %16 = vector.broadcast %cst_11 : f32 to vector<8x256xf32>
    %17 = arith.maximumf %15, %16 : vector<8x256xf32>
    %18 = arith.truncf %17 : vector<8x256xf32> to vector<8x256xbf16>
    %c0_12 = arith.constant 0 : index
    %c0_13 = arith.constant 0 : index
    %c0_14 = arith.constant 0 : index
    %19 = vector.load %arg4[%c0_12, %c0_13, %c0_14] : memref<1x8x256xbf16, #tpu.memory_space<vmem>>, vector<1x8x256xbf16>
    %20 = vector.shape_cast %19 : vector<1x8x256xbf16> to vector<8x256xbf16>
    %21 = vector.shape_cast %18 : vector<8x256xbf16> to vector<1x8x256xbf16>
    tpu.vector_store %arg4[%c0_12, %c0_13, %c0_14], %21 {strides = array<i32>} : memref<1x8x256xbf16, #tpu.memory_space<vmem>>, vector<1x8x256xbf16>,
    return
  }
  func.func @transform_0(%arg0: i32) -> (i32, i32, i32) {
    %c0_i32 = arith.constant 0 : i32
    %c0_i32_0 = arith.constant 0 : i32
    %c0_i32_1 = arith.constant 0 : i32
    return %arg0, %c0_i32, %c0_i32_0 : i32, i32, i32
  }
  func.func @transform_1(%arg0: i32) -> (i32, i32, i32) {
    %c0_i32 = arith.constant 0 : i32
    %c0_i32_0 = arith.constant 0 : i32
    %c0_i32_1 = arith.constant 0 : i32
    %c0_i32_2 = arith.constant 0 : i32
    return %c0_i32, %c0_i32_0, %c0_i32_1 : i32, i32, i32
  }
  func.func @transform_2(%arg0: i32) -> (i32, i32) {
    %c0_i32 = arith.constant 0 : i32
    %c0_i32_0 = arith.constant 0 : i32
    %c0_i32_1 = arith.constant 0 : i32
    return %c0_i32, %c0_i32_0 : i32, i32
  }
  func.func @transform_3(%arg0: i32) -> (i32, i32, i32) {
    %c0_i32 = arith.constant 0 : i32
    %c0_i32_0 = arith.constant 0 : i32
    %c0_i32_1 = arith.constant 0 : i32
    return %arg0, %c0_i32, %c0_i32_0 : i32, i32, i32
  }
}

module attributes {stable_mosaic.version = 11 : i64} {
  func.func @_conv_kernel(%arg0: i32, %arg1: memref<1x4x512xbf16, #tpu.memory_space<vmem>>, %arg2: memref<2x512x192xbf16, #tpu.memory_space<vmem>>, %arg3: memref<1x192xf32, #tpu.memory_space<vmem>>, %arg4: memref<1x3x192xbf16, #tpu.memory_space<vmem>>) attributes {dimension_semantics = [#tpu.dimension_semantics<parallel>], iteration_bounds = array<i64: 2>, scalar_prefetch = 0 : i64, scratch_operands = 0 : i64, tpu.core_type = #tpu.core_type<tc>, window_params = [{transform_indices = @transform_0, window_bounds = array<i64: 1, 4, 512>}, {pipeline_mode = #tpu.pipeline_mode<synchronous>, transform_indices = @transform_1, window_bounds = array<i64: 2, 512, 192>}, {pipeline_mode = #tpu.pipeline_mode<synchronous>, transform_indices = @transform_2, window_bounds = array<i64: 1, 192>}, {transform_indices = @transform_3, window_bounds = array<i64: 1, 3, 192>}]} {
    %c0 = arith.constant 0 : index
    %c0_0 = arith.constant 0 : index
    %c0_1 = arith.constant 0 : index
    %0 = vector.load %arg1[%c0, %c0_0, %c0_1] : memref<1x4x512xbf16, #tpu.memory_space<vmem>>, vector<1x4x512xbf16>
    %1 = vector.shape_cast %0 : vector<1x4x512xbf16> to vector<4x512xbf16>
    %cst = arith.constant 0.000000e+00 : f32
    %2 = vector.broadcast %cst : f32 to vector<3x192xf32>
    %3 = vector.extract_strided_slice %1 {offsets = [0, 0], sizes = [3, 512], strides = [1, 1]} : vector<4x512xbf16> to vector<3x512xbf16>
    %c0_2 = arith.constant 0 : index
    %c0_3 = arith.constant 0 : index
    %c0_4 = arith.constant 0 : index
    %4 = vector.load %arg2[%c0_2, %c0_3, %c0_4] : memref<2x512x192xbf16, #tpu.memory_space<vmem>>, vector<1x512x192xbf16>
    %5 = vector.shape_cast %4 : vector<1x512x192xbf16> to vector<512x192xbf16>
    %cst_5 = arith.constant dense<0.000000e+00> : vector<3x192xf32>
    %6 = tpu.matmul %3, %5, %cst_5 {dimension_numbers = #tpu.dot_dimension_numbers<[1], [0], [0], [1], [0, 0, 1, 1], [], []>} : vector<3x512xbf16>, vector<512x192xbf16>, vector<3x192xf32> -> vector<3x192xf32>
    %7 = arith.addf %2, %6 : vector<3x192xf32>
    %8 = vector.extract_strided_slice %1 {offsets = [1, 0], sizes = [3, 512], strides = [1, 1]} : vector<4x512xbf16> to vector<3x512xbf16>
    %c1 = arith.constant 1 : index
    %c0_6 = arith.constant 0 : index
    %c0_7 = arith.constant 0 : index
    %9 = vector.load %arg2[%c1, %c0_6, %c0_7] : memref<2x512x192xbf16, #tpu.memory_space<vmem>>, vector<1x512x192xbf16>
    %10 = vector.shape_cast %9 : vector<1x512x192xbf16> to vector<512x192xbf16>
    %cst_8 = arith.constant dense<0.000000e+00> : vector<3x192xf32>
    %11 = tpu.matmul %8, %10, %cst_8 {dimension_numbers = #tpu.dot_dimension_numbers<[1], [0], [0], [1], [0, 0, 1, 1], [], []>} : vector<3x512xbf16>, vector<512x192xbf16>, vector<3x192xf32> -> vector<3x192xf32>
    %12 = arith.addf %7, %11 : vector<3x192xf32>
    %c0_9 = arith.constant 0 : index
    %c0_10 = arith.constant 0 : index
    %13 = vector.load %arg3[%c0_9, %c0_10] : memref<1x192xf32, #tpu.memory_space<vmem>>, vector<1x192xf32>
    %14 = vector.broadcast %13 : vector<1x192xf32> to vector<3x192xf32>
    %15 = arith.addf %12, %14 : vector<3x192xf32>
    %cst_11 = arith.constant 0.000000e+00 : f32
    %16 = vector.broadcast %cst_11 : f32 to vector<3x192xf32>
    %17 = arith.maximumf %15, %16 : vector<3x192xf32>
    %18 = arith.truncf %17 : vector<3x192xf32> to vector<3x192xbf16>
    %c0_12 = arith.constant 0 : index
    %c0_13 = arith.constant 0 : index
    %c0_14 = arith.constant 0 : index
    %19 = vector.load %arg4[%c0_12, %c0_13, %c0_14] : memref<1x3x192xbf16, #tpu.memory_space<vmem>>, vector<1x3x192xbf16>
    %20 = vector.shape_cast %19 : vector<1x3x192xbf16> to vector<3x192xbf16>
    %21 = vector.shape_cast %18 : vector<3x192xbf16> to vector<1x3x192xbf16>
    tpu.vector_store %arg4[%c0_12, %c0_13, %c0_14], %21 {strides = array<i32>} : memref<1x3x192xbf16, #tpu.memory_space<vmem>>, vector<1x3x192xbf16>,
    return
  }
  func.func @transform_0(%arg0: i32) -> (i32, i32, i32) {
    %c0_i32 = arith.constant 0 : i32
    %c0_i32_0 = arith.constant 0 : i32
    %c0_i32_1 = arith.constant 0 : i32
    return %arg0, %c0_i32, %c0_i32_0 : i32, i32, i32
  }
  func.func @transform_1(%arg0: i32) -> (i32, i32, i32) {
    %c0_i32 = arith.constant 0 : i32
    %c0_i32_0 = arith.constant 0 : i32
    %c0_i32_1 = arith.constant 0 : i32
    %c0_i32_2 = arith.constant 0 : i32
    return %c0_i32, %c0_i32_0, %c0_i32_1 : i32, i32, i32
  }
  func.func @transform_2(%arg0: i32) -> (i32, i32) {
    %c0_i32 = arith.constant 0 : i32
    %c0_i32_0 = arith.constant 0 : i32
    %c0_i32_1 = arith.constant 0 : i32
    return %c0_i32, %c0_i32_0 : i32, i32
  }
  func.func @transform_3(%arg0: i32) -> (i32, i32, i32) {
    %c0_i32 = arith.constant 0 : i32
    %c0_i32_0 = arith.constant 0 : i32
    %c0_i32_1 = arith.constant 0 : i32
    return %arg0, %c0_i32, %c0_i32_0 : i32, i32, i32
  }
}

module attributes {stable_mosaic.version = 11 : i64} {
  func.func @_conv_kernel(%arg0: i32, %arg1: memref<1x3x192xbf16, #tpu.memory_space<vmem>>, %arg2: memref<3x192x64xbf16, #tpu.memory_space<vmem>>, %arg3: memref<1x64xf32, #tpu.memory_space<vmem>>, %arg4: memref<1x1x64xbf16, #tpu.memory_space<vmem>>) attributes {dimension_semantics = [#tpu.dimension_semantics<parallel>], iteration_bounds = array<i64: 2>, scalar_prefetch = 0 : i64, scratch_operands = 0 : i64, tpu.core_type = #tpu.core_type<tc>, window_params = [{transform_indices = @transform_0, window_bounds = array<i64: 1, 3, 192>}, {pipeline_mode = #tpu.pipeline_mode<synchronous>, transform_indices = @transform_1, window_bounds = array<i64: 3, 192, 64>}, {pipeline_mode = #tpu.pipeline_mode<synchronous>, transform_indices = @transform_2, window_bounds = array<i64: 1, 64>}, {transform_indices = @transform_3, window_bounds = array<i64: 1, 1, 64>}]} {
    %c0 = arith.constant 0 : index
    %c0_0 = arith.constant 0 : index
    %c0_1 = arith.constant 0 : index
    %0 = vector.load %arg1[%c0, %c0_0, %c0_1] : memref<1x3x192xbf16, #tpu.memory_space<vmem>>, vector<1x3x192xbf16>
    %1 = vector.shape_cast %0 : vector<1x3x192xbf16> to vector<3x192xbf16>
    %cst = arith.constant 0.000000e+00 : f32
    %2 = vector.broadcast %cst : f32 to vector<1x64xf32>
    %3 = vector.extract_strided_slice %1 {offsets = [0, 0], sizes = [1, 192], strides = [1, 1]} : vector<3x192xbf16> to vector<1x192xbf16>
    %c0_2 = arith.constant 0 : index
    %c0_3 = arith.constant 0 : index
    %c0_4 = arith.constant 0 : index
    %4 = vector.load %arg2[%c0_2, %c0_3, %c0_4] : memref<3x192x64xbf16, #tpu.memory_space<vmem>>, vector<1x192x64xbf16>
    %5 = vector.shape_cast %4 : vector<1x192x64xbf16> to vector<192x64xbf16>
    %cst_5 = arith.constant dense<0.000000e+00> : vector<1x64xf32>
    %6 = tpu.matmul %3, %5, %cst_5 {dimension_numbers = #tpu.dot_dimension_numbers<[1], [0], [0], [1], [0, 0, 1, 1], [], []>} : vector<1x192xbf16>, vector<192x64xbf16>, vector<1x64xf32> -> vector<1x64xf32>
    %7 = arith.addf %2, %6 : vector<1x64xf32>
    %8 = vector.extract_strided_slice %1 {offsets = [1, 0], sizes = [1, 192], strides = [1, 1]} : vector<3x192xbf16> to vector<1x192xbf16>
    %c1 = arith.constant 1 : index
    %c0_6 = arith.constant 0 : index
    %c0_7 = arith.constant 0 : index
    %9 = vector.load %arg2[%c1, %c0_6, %c0_7] : memref<3x192x64xbf16, #tpu.memory_space<vmem>>, vector<1x192x64xbf16>
    %10 = vector.shape_cast %9 : vector<1x192x64xbf16> to vector<192x64xbf16>
    %cst_8 = arith.constant dense<0.000000e+00> : vector<1x64xf32>
    %11 = tpu.matmul %8, %10, %cst_8 {dimension_numbers = #tpu.dot_dimension_numbers<[1], [0], [0], [1], [0, 0, 1, 1], [], []>} : vector<1x192xbf16>, vector<192x64xbf16>, vector<1x64xf32> -> vector<1x64xf32>
    %12 = arith.addf %7, %11 : vector<1x64xf32>
    %13 = vector.extract_strided_slice %1 {offsets = [2, 0], sizes = [1, 192], strides = [1, 1]} : vector<3x192xbf16> to vector<1x192xbf16>
    %c2 = arith.constant 2 : index
    %c0_9 = arith.constant 0 : index
    %c0_10 = arith.constant 0 : index
    %14 = vector.load %arg2[%c2, %c0_9, %c0_10] : memref<3x192x64xbf16, #tpu.memory_space<vmem>>, vector<1x192x64xbf16>
    %15 = vector.shape_cast %14 : vector<1x192x64xbf16> to vector<192x64xbf16>
    %cst_11 = arith.constant dense<0.000000e+00> : vector<1x64xf32>
    %16 = tpu.matmul %13, %15, %cst_11 {dimension_numbers = #tpu.dot_dimension_numbers<[1], [0], [0], [1], [0, 0, 1, 1], [], []>} : vector<1x192xbf16>, vector<192x64xbf16>, vector<1x64xf32> -> vector<1x64xf32>
    %17 = arith.addf %12, %16 : vector<1x64xf32>
    %c0_12 = arith.constant 0 : index
    %c0_13 = arith.constant 0 : index
    %18 = vector.load %arg3[%c0_12, %c0_13] : memref<1x64xf32, #tpu.memory_space<vmem>>, vector<1x64xf32>
    %19 = arith.addf %17, %18 : vector<1x64xf32>
    %20 = arith.truncf %19 : vector<1x64xf32> to vector<1x64xbf16>
    %c0_14 = arith.constant 0 : index
    %c0_15 = arith.constant 0 : index
    %c0_16 = arith.constant 0 : index
    %21 = vector.load %arg4[%c0_14, %c0_15, %c0_16] : memref<1x1x64xbf16, #tpu.memory_space<vmem>>, vector<1x1x64xbf16>
    %22 = vector.shape_cast %21 : vector<1x1x64xbf16> to vector<1x64xbf16>
    %23 = vector.shape_cast %20 : vector<1x64xbf16> to vector<1x1x64xbf16>
    tpu.vector_store %arg4[%c0_14, %c0_15, %c0_16], %23 {strides = array<i32>} : memref<1x1x64xbf16, #tpu.memory_space<vmem>>, vector<1x1x64xbf16>,
    return
  }
  func.func @transform_0(%arg0: i32) -> (i32, i32, i32) {
    %c0_i32 = arith.constant 0 : i32
    %c0_i32_0 = arith.constant 0 : i32
    %c0_i32_1 = arith.constant 0 : i32
    return %arg0, %c0_i32, %c0_i32_0 : i32, i32, i32
  }
  func.func @transform_1(%arg0: i32) -> (i32, i32, i32) {
    %c0_i32 = arith.constant 0 : i32
    %c0_i32_0 = arith.constant 0 : i32
    %c0_i32_1 = arith.constant 0 : i32
    %c0_i32_2 = arith.constant 0 : i32
    return %c0_i32, %c0_i32_0, %c0_i32_1 : i32, i32, i32
  }
  func.func @transform_2(%arg0: i32) -> (i32, i32) {
    %c0_i32 = arith.constant 0 : i32
    %c0_i32_0 = arith.constant 0 : i32
    %c0_i32_1 = arith.constant 0 : i32
    return %c0_i32, %c0_i32_0 : i32, i32
  }
  func.func @transform_3(%arg0: i32) -> (i32, i32, i32) {
    %c0_i32 = arith.constant 0 : i32
    %c0_i32_0 = arith.constant 0 : i32
    %c0_i32_1 = arith.constant 0 : i32
    return %arg0, %c0_i32, %c0_i32_0 : i32, i32, i32
  }
}

module attributes {stable_mosaic.version = 11 : i64} {
  func.func @_fc_head_kernel(%arg0: i32, %arg1: memref<2x64xbf16, #tpu.memory_space<vmem>>, %arg2: memref<64x512xbf16, #tpu.memory_space<vmem>>, %arg3: memref<1x512xf32, #tpu.memory_space<vmem>>, %arg4: memref<512x6xbf16, #tpu.memory_space<vmem>>, %arg5: memref<1x6xf32, #tpu.memory_space<vmem>>, %arg6: memref<2x6xf32, #tpu.memory_space<vmem>>, %arg7: memref<2x512xbf16, #tpu.memory_space<vmem>>) attributes {dimension_semantics = [#tpu.dimension_semantics<parallel>], iteration_bounds = array<i64: 1>, scalar_prefetch = 0 : i64, scratch_operands = 1 : i64, tpu.core_type = #tpu.core_type<tc>, window_params = [{transform_indices = @transform_0, window_bounds = array<i64: 2, 64>}, {pipeline_mode = #tpu.pipeline_mode<synchronous>, transform_indices = @transform_1, window_bounds = array<i64: 64, 512>}, {pipeline_mode = #tpu.pipeline_mode<synchronous>, transform_indices = @transform_2, window_bounds = array<i64: 1, 512>}, {pipeline_mode = #tpu.pipeline_mode<synchronous>, transform_indices = @transform_3, window_bounds = array<i64: 512, 6>}, {pipeline_mode = #tpu.pipeline_mode<synchronous>, transform_indices = @transform_4, window_bounds = array<i64: 1, 6>}, {transform_indices = @transform_5, window_bounds = array<i64: 2, 6>}]} {
    %c0 = arith.constant 0 : index
    %c0_0 = arith.constant 0 : index
    %0 = vector.load %arg1[%c0, %c0_0] : memref<2x64xbf16, #tpu.memory_space<vmem>>, vector<2x64xbf16>
    %c0_1 = arith.constant 0 : index
    %c0_2 = arith.constant 0 : index
    %1 = vector.load %arg2[%c0_1, %c0_2] : memref<64x512xbf16, #tpu.memory_space<vmem>>, vector<64x512xbf16>
    %cst = arith.constant dense<0.000000e+00> : vector<2x512xf32>
    %2 = tpu.matmul %0, %1, %cst {dimension_numbers = #tpu.dot_dimension_numbers<[1], [0], [0], [1], [0, 0, 1, 1], [], []>} : vector<2x64xbf16>, vector<64x512xbf16>, vector<2x512xf32> -> vector<2x512xf32>
    %c0_3 = arith.constant 0 : index
    %c0_4 = arith.constant 0 : index
    %3 = vector.load %arg3[%c0_3, %c0_4] : memref<1x512xf32, #tpu.memory_space<vmem>>, vector<1x512xf32>
    %4 = vector.broadcast %3 : vector<1x512xf32> to vector<2x512xf32>
    %5 = arith.addf %2, %4 : vector<2x512xf32>
    %cst_5 = arith.constant 0.000000e+00 : f32
    %6 = vector.broadcast %cst_5 : f32 to vector<2x512xf32>
    %7 = arith.maximumf %5, %6 : vector<2x512xf32>
    %8 = arith.truncf %7 : vector<2x512xf32> to vector<2x512xbf16>
    %c0_6 = arith.constant 0 : index
    %c0_7 = arith.constant 0 : index
    %9 = vector.load %arg7[%c0_6, %c0_7] : memref<2x512xbf16, #tpu.memory_space<vmem>>, vector<2x512xbf16>
    tpu.vector_store %arg7[%c0_6, %c0_7], %8 {strides = array<i32>} : memref<2x512xbf16, #tpu.memory_space<vmem>>, vector<2x512xbf16>,
    %c0_8 = arith.constant 0 : index
    %c0_9 = arith.constant 0 : index
    %10 = vector.load %arg7[%c0_8, %c0_9] : memref<2x512xbf16, #tpu.memory_space<vmem>>, vector<2x512xbf16>
    %c0_10 = arith.constant 0 : index
    %c0_11 = arith.constant 0 : index
    %11 = vector.load %arg4[%c0_10, %c0_11] : memref<512x6xbf16, #tpu.memory_space<vmem>>, vector<512x6xbf16>
    %cst_12 = arith.constant dense<0.000000e+00> : vector<2x6xf32>
    %12 = tpu.matmul %10, %11, %cst_12 {dimension_numbers = #tpu.dot_dimension_numbers<[1], [0], [0], [1], [0, 0, 1, 1], [], []>} : vector<2x512xbf16>, vector<512x6xbf16>, vector<2x6xf32> -> vector<2x6xf32>
    %c0_13 = arith.constant 0 : index
    %c0_14 = arith.constant 0 : index
    %13 = vector.load %arg5[%c0_13, %c0_14] : memref<1x6xf32, #tpu.memory_space<vmem>>, vector<1x6xf32>
    %14 = vector.broadcast %13 : vector<1x6xf32> to vector<2x6xf32>
    %15 = arith.addf %12, %14 : vector<2x6xf32>
    %c0_15 = arith.constant 0 : index
    %c0_16 = arith.constant 0 : index
    %16 = vector.load %arg6[%c0_15, %c0_16] : memref<2x6xf32, #tpu.memory_space<vmem>>, vector<2x6xf32>
    tpu.vector_store %arg6[%c0_15, %c0_16], %15 {strides = array<i32>} : memref<2x6xf32, #tpu.memory_space<vmem>>, vector<2x6xf32>,
    return
  }
  func.func @transform_0(%arg0: i32) -> (i32, i32) {
    %c0_i32 = arith.constant 0 : i32
    %c0_i32_0 = arith.constant 0 : i32
    return %arg0, %c0_i32 : i32, i32
  }
  func.func @transform_1(%arg0: i32) -> (i32, i32) {
    %c0_i32 = arith.constant 0 : i32
    %c0_i32_0 = arith.constant 0 : i32
    %c0_i32_1 = arith.constant 0 : i32
    return %c0_i32, %c0_i32_0 : i32, i32
  }
  func.func @transform_2(%arg0: i32) -> (i32, i32) {
    %c0_i32 = arith.constant 0 : i32
    %c0_i32_0 = arith.constant 0 : i32
    %c0_i32_1 = arith.constant 0 : i32
    return %c0_i32, %c0_i32_0 : i32, i32
  }
  func.func @transform_3(%arg0: i32) -> (i32, i32) {
    %c0_i32 = arith.constant 0 : i32
    %c0_i32_0 = arith.constant 0 : i32
    %c0_i32_1 = arith.constant 0 : i32
    return %c0_i32, %c0_i32_0 : i32, i32
  }
  func.func @transform_4(%arg0: i32) -> (i32, i32) {
    %c0_i32 = arith.constant 0 : i32
    %c0_i32_0 = arith.constant 0 : i32
    %c0_i32_1 = arith.constant 0 : i32
    return %c0_i32, %c0_i32_0 : i32, i32
  }
  func.func @transform_5(%arg0: i32) -> (i32, i32) {
    %c0_i32 = arith.constant 0 : i32
    %c0_i32_0 = arith.constant 0 : i32
    return %arg0, %c0_i32 : i32, i32
  }
}

</mosaic_0001>

<llo_original>
// kernel: dqn_forward.4
$region0: #{dqn_forward.4}
  #allocation0 [shape = 'u32[]', space=smem, size = 0x4, offset = 0x4, fixed_abs, tag = 'smem constant byte address 0x4 - core index']
  #allocation1 [shape = 'u32[144,128]{1,0:T(1,128)}', space=vmem, size = 0x12000, scoped, tag = 'internal scratch']
  %s0 = inlined_call_operand.vmem [shape: bf16[2,9,576], index: 0, kind: input, shape index: {}]
  %s1 = inlined_call_operand.vmem [shape: bf16[2,576,256], index: 1, kind: input, shape index: {}]
  %s2 = inlined_call_operand.vmem [shape: f32[1,256], index: 2, kind: input, shape index: {}]
  %s3 = inlined_call_operand.vmem [shape: bf16[2,8,256], index: 3, kind: output, shape index: {}]
  %s4 = sld [smem:[#allocation0]]
  $region45: #{dqn_forward.4} parent=0
    _
  %s6 = ssub.s32 1, %s4
  %s7 = scalar_select 0, %s6, %s4
  loop: start=0, step=1, limit=4
  $region2: #{dqn_forward.4} parent=0 // loop_pre_header
    _
  $region3: #{dqn_forward.4} parent=0 // loop_header
    %s9 = sphi 0, %s13
    %p10 = scmp.ge.s32.totalorder %s9, 4
    %s19 = sphi 0, %s21
    %s22 = sphi 0, %s19
    %s23 = sphi 0, %s22
    %s39 = sphi 0, %s23
    %s43 = sphi 0, %s43
    %s45 = sphi 0, %s43
    %s46 = sphi 0, %s45
    %s60 = sphi 0, %s46
    %s64 = sphi 0, %s64
    %s66 = sphi 0, %s64
    %s67 = sphi 0, %s66
    %s81 = sphi 0, %s67
    %s87 = sphi 0, %s89
    %s90 = sphi 0, %s87
    %s91 = sphi 0, %s90
    %s107 = sphi 0, %s91
  $region4: #{dqn_forward.4} parent=0 // loop_header_branch
    %12 = sbr.rel (%p10) target = $region8
  $region5: #{dqn_forward.4} parent=0 // loop_body
    %s14 = ssub.s32 %s9, 1
    %s15 = ssub.s32 %s9, 2
    %s16 = sadd.s32 %s9, 1
    %s17 = ssub.s32 %s9, %s16
    %p18 = scmp.eq.s32.totalorder %s17, 0
    %s20 = sadd.s32 %s19, 1
    %s21 = scalar_select %p18, %s19, %s20
    %p24 = pneg %p18
    %p25 = scmp.eq.s32.totalorder %s9, 1
    %p26 = por %p24, %p25
    %p27 = scmp.ne.s32.totalorder %s19, %s22
    %p28 = scmp.eq.s32.totalorder %s9, 0
    %p29 = por %p27, %p28
    %p30 = scmp.ne.s32.totalorder %s19, %s22
    %p31 = scmp.eq.s32.totalorder %s14, 1
    %p32 = por %p30, %p31
    %p33 = scmp.ne.s32.totalorder %s22, %s23
    %p34 = scmp.eq.s32.totalorder %s14, 0
    %p35 = por %p33, %p34
    %p36 = scmp.ne.s32.totalorder %s22, %s23
    %p37 = scmp.eq.s32.totalorder %s15, 1
    %p38 = por %p36, %p37
    %p40 = scmp.ne.s32.totalorder %s23, %s39
    %p41 = scmp.eq.s32.totalorder %s15, 0
    %p42 = por %p40, %p41
    %s44 = sadd.s32 %s43, 1
    %p47 = scmp.eq.s32.totalorder %s9, 1
    %p48 = scmp.ne.s32.totalorder %s43, %s45
    %p49 = scmp.eq.s32.totalorder %s9, 0
    %p50 = por %p48, %p49
    %p51 = scmp.ne.s32.totalorder %s43, %s45
    %p52 = scmp.eq.s32.totalorder %s14, 1
    %p53 = por %p51, %p52
    %p54 = scmp.ne.s32.totalorder %s45, %s46
    %p55 = scmp.eq.s32.totalorder %s14, 0
    %p56 = por %p54, %p55
    %p57 = scmp.ne.s32.totalorder %s45, %s46
    %p58 = scmp.eq.s32.totalorder %s15, 1
    %p59 = por %p57, %p58
    %p61 = scmp.ne.s32.totalorder %s46, %s60
    %p62 = scmp.eq.s32.totalorder %s15, 0
    %p63 = por %p61, %p62
    %s65 = sadd.s32 %s64, 1
    %p68 = scmp.eq.s32.totalorder %s9, 1
    %p69 = scmp.ne.s32.totalorder %s64, %s66
    %p70 = scmp.eq.s32.totalorder %s9, 0
    %p71 = por %p69, %p70
    %p72 = scmp.ne.s32.totalorder %s64, %s66
    %p73 = scmp.eq.s32.totalorder %s14, 1
    %p74 = por %p72, %p73
    %p75 = scmp.ne.s32.totalorder %s66, %s67
    %p76 = scmp.eq.s32.totalorder %s14, 0
    %p77 = por %p75, %p76
    %p78 = scmp.ne.s32.totalorder %s66, %s67
    %p79 = scmp.eq.s32.totalorder %s15, 1
    %p80 = por %p78, %p79
    %p82 = scmp.ne.s32.totalorder %s67, %s81
    %p83 = scmp.eq.s32.totalorder %s15, 0
    %p84 = por %p82, %p83
    %s85 = ssub.s32 %s9, %s16
    %p86 = scmp.eq.s32.totalorder %s85, 0
    %s88 = sadd.s32 %s87, 1
    %s89 = scalar_select %p86, %s87, %s88
    %p92 = pneg %p86
    %p93 = scmp.eq.s32.totalorder %s9, 1
    %p94 = por %p92, %p93
    %p95 = scmp.ne.s32.totalorder %s87, %s90
    %p96 = scmp.eq.s32.totalorder %s9, 0
    %p97 = por %p95, %p96
    %p98 = scmp.ne.s32.totalorder %s87, %s90
    %p99 = scmp.eq.s32.totalorder %s14, 1
    %p100 = por %p98, %p99
    %p101 = scmp.ne.s32.totalorder %s90, %s91
    %p102 = scmp.eq.s32.totalorder %s14, 0
    %p103 = por %p101, %p102
    %p104 = scmp.ne.s32.totalorder %s90, %s91
    %p105 = scmp.eq.s32.totalorder %s15, 1
    %p106 = por %p104, %p105
    %p108 = scmp.ne.s32.totalorder %s91, %s107
    %p109 = scmp.eq.s32.totalorder %s15, 0
    %p110 = por %p108, %p109
    %p111 = scmp.le.s32.totalorder 1, %s9
    %p112 = scmp.lt.s32.totalorder %s9, 3
    %p113 = pnand %p111, %p112
    %p114 = pneg %p113
    // Predicated region
    $region9: #{dqn_forward.4} parent=5 // pred_check
      _
    $region10: #{dqn_forward.4} parent=5 // pred_check_branch
      %116 = sbr.rel (%p113) target = $region12
    $region11: #{dqn_forward.4} parent=5 // pred_region
      %s117 = ssub.s32 %s9, 1
      // Predicated region
      $region13: #{dqn_forward.4} parent=11 // pred_check
        %p118 = pneg %p56
      $region14: #{dqn_forward.4} parent=11 // pred_check_branch
        %120 = sbr.rel (%p118) target = $region16
      $region15: #{dqn_forward.4} parent=11 // pred_region
        _
      $region16: #{dqn_forward.4} parent=11 // pred_fallthru
        _
      // Predicated region
      $region17: #{dqn_forward.4} parent=11 // pred_check
        %p121 = pneg %p77
      $region18: #{dqn_forward.4} parent=11 // pred_check_branch
        %123 = sbr.rel (%p121) target = $region20
      $region19: #{dqn_forward.4} parent=11 // pred_region
        _
      $region20: #{dqn_forward.4} parent=11 // pred_fallthru
        _
    $region12: #{dqn_forward.4} parent=5 // pred_fallthru
      _
    %p124 = scmp.lt.s32.totalorder %s9, 2
    // Predicated region
    $region21: #{dqn_forward.4} parent=5 // pred_check
      %p125 = pneg %p124
    $region22: #{dqn_forward.4} parent=5 // pred_check_branch
      %127 = sbr.rel (%p125) target = $region24
    $region23: #{dqn_forward.4} parent=5 // pred_region
      // Predicated region
      $region25: #{dqn_forward.4} parent=23 // pred_check
        %p128 = pneg %p29
      $region26: #{dqn_forward.4} parent=23 // pred_check_branch
        %130 = sbr.rel (%p128) target = $region28
      $region27: #{dqn_forward.4} parent=23 // pred_region
        %p131 = scmp.lt.s32.totalorder %s9, 1
        %s132 = scalar_select %p131, %s9, 1
        %s133 = smul.addr %s132, 10
        %s134 = smul.addr %s133, 4
        %s135 = scalar_lea.vmem %s0, %s134
      $region28: #{dqn_forward.4} parent=23 // pred_fallthru
        _
    $region24: #{dqn_forward.4} parent=5 // pred_fallthru
      _
    %p136 = scmp.le.s32.totalorder 1, %s9
    %p137 = scmp.lt.s32.totalorder %s9, 3
    %p138 = pnand %p136, %p137
    %p139 = pneg %p138
    // Predicated region
    $region29: #{dqn_forward.4} parent=5 // pred_check
      _
    $region30: #{dqn_forward.4} parent=5 // pred_check_branch
      %141 = sbr.rel (%p138) target = $region32
    $region31: #{dqn_forward.4} parent=5 // pred_region
      %s142 = ssub.s32 %s9, 1
      %p143 = scmp.lt.s32.totalorder %s14, 1
      %s144 = scalar_select %p143, %s14, 1
      %s145 = smul.addr %s144, 10
      %s146 = smul.addr %s145, 4
      %s147 = scalar_lea.vmem %s0, %s146
      %p148 = pneg %p35
      %p149 = pneg %p32
      %p150 = pneg %p56
      %p151 = pneg %p53
      %p152 = pneg %p77
      %p153 = pneg %p74
      %p154 = pneg %p103
      %p155 = pneg %p100
      %p156 = scmp.lt.s32.totalorder %s14, 1
      %s157 = scalar_select %p156, %s14, 1
      %s158 = smul.addr %s157, 2
      %s159 = smul.addr %s158, 4
      %s160 = scalar_lea.vmem %s3, %s159
      %p161 = scmp.lt.s32.totalorder %s14, 1
      %s162 = scalar_select %p161, %s14, 1
      %s163 = smul.addr %s162, 10
      %s164 = smul.addr %s163, 4
      %s165 = scalar_lea.vmem %s0, %s164
      %p166 = scmp.lt.s32.totalorder %s14, 1
      %s167 = scalar_select %p166, %s14, 1
      %s168 = smul.addr %s167, 2
      %s169 = smul.addr %s168, 4
      %s170 = scalar_lea.vmem %s3, %s169
      %v172 = vld [vmem:[%s165] sm:$0xff]
      %v173 = vld [vmem:[%s165 + $0x8] sm:$0xff]
      %v174 = vld [vmem:[%s165 + $0x10] sm:$0xf]
      %v175 = vld [vmem:[%s165 + $0x14] sm:$0x11]
      %v176 = vld [vmem:[%s165 + $0x1c] sm:$0x11]
      %v177 = vld [vmem:[%s165 + $0x24] sm:$0x1]
      %v178 = vld [vmem:[%s1] sm:$0xff]
      %v179 = vld [vmem:[%s1 + $0x8] sm:$0xff]
      %v180 = vld [vmem:[%s1 + $0x10] sm:$0xff]
      %v181 = vld [vmem:[%s1 + $0x18] sm:$0xff]
      %v182 = vld [vmem:[%s1 + $0x20] sm:$0xff]
      %v183 = vld [vmem:[%s1 + $0x28] sm:$0xff]
      %v184 = vld [vmem:[%s1 + $0x30] sm:$0xff]
      %v185 = vld [vmem:[%s1 + $0x38] sm:$0xff]
      %v186 = vld [vmem:[%s1 + $0x40] sm:$0xff]
      %v187 = vld [vmem:[%s1 + $0x48] sm:$0xff]
      %v188 = vld [vmem:[%s1 + $0x50] sm:$0xff]
      %v189 = vld [vmem:[%s1 + $0x58] sm:$0xff]
      %v190 = vld [vmem:[%s1 + $0x60] sm:$0xff]
      %v191 = vld [vmem:[%s1 + $0x68] sm:$0xff]
      %v192 = vld [vmem:[%s1 + $0x70] sm:$0xff]
      %v193 = vld [vmem:[%s1 + $0x78] sm:$0xff]
      %v194 = vld [vmem:[%s1 + $0x80] sm:$0xff]
      %v195 = vld [vmem:[%s1 + $0x88] sm:$0xff]
      %v196 = vld [vmem:[%s1 + $0x90] sm:$0xff]
      %v197 = vld [vmem:[%s1 + $0x98] sm:$0xff]
      %v198 = vld [vmem:[%s1 + $0xa0] sm:$0xff]
      %v199 = vld [vmem:[%s1 + $0xa8] sm:$0xff]
      %v200 = vld [vmem:[%s1 + $0xb0] sm:$0xff]
      %v201 = vld [vmem:[%s1 + $0xb8] sm:$0xff]
      %v202 = vld [vmem:[%s1 + $0xc0] sm:$0xff]
      %v203 = vld [vmem:[%s1 + $0xc8] sm:$0xff]
      %v204 = vld [vmem:[%s1 + $0xd0] sm:$0xff]
      %v205 = vld [vmem:[%s1 + $0xd8] sm:$0xff]
      %v206 = vld [vmem:[%s1 + $0xe0] sm:$0xff]
      %v207 = vld [vmem:[%s1 + $0xe8] sm:$0xff]
      %v208 = vld [vmem:[%s1 + $0xf0] sm:$0xff]
      %v209 = vld [vmem:[%s1 + $0xf8] sm:$0xff]
      %v210 = vld [vmem:[%s1 + $0x100] sm:$0xff]
      %v211 = vld [vmem:[%s1 + $0x108] sm:$0xff]
      %v212 = vld [vmem:[%s1 + $0x110] sm:$0xff]
      %v213 = vld [vmem:[%s1 + $0x118] sm:$0xff]
      %v214 = vld [vmem:[%s1 + $0x120] sm:$0xff]
      %v215 = vld [vmem:[%s1 + $0x128] sm:$0xff]
      %v216 = vld [vmem:[%s1 + $0x130] sm:$0xff]
      %v217 = vld [vmem:[%s1 + $0x138] sm:$0xff]
      %v218 = vld [vmem:[%s1 + $0x140] sm:$0xff]
      %v219 = vld [vmem:[%s1 + $0x148] sm:$0xff]
      %v220 = vld [vmem:[%s1 + $0x150] sm:$0xff]
      %v221 = vld [vmem:[%s1 + $0x158] sm:$0xff]
      %v222 = vld [vmem:[%s1 + $0x160] sm:$0xff]
      %v223 = vld [vmem:[%s1 + $0x168] sm:$0xff]
      %v224 = vld [vmem:[%s1 + $0x170] sm:$0xff]
      %v225 = vld [vmem:[%s1 + $0x178] sm:$0xff]
      %v226 = vld [vmem:[%s1 + $0x180] sm:$0xff]
      %v227 = vld [vmem:[%s1 + $0x188] sm:$0xff]
      %v228 = vld [vmem:[%s1 + $0x190] sm:$0xff]
      %v229 = vld [vmem:[%s1 + $0x198] sm:$0xff]
      %v230 = vld [vmem:[%s1 + $0x1a0] sm:$0xff]
      %v231 = vld [vmem:[%s1 + $0x1a8] sm:$0xff]
      %v232 = vld [vmem:[%s1 + $0x1b0] sm:$0xff]
      %v233 = vld [vmem:[%s1 + $0x1b8] sm:$0xff]
      %v234 = vld [vmem:[%s1 + $0x1c0] sm:$0xff]
      %v235 = vld [vmem:[%s1 + $0x1c8] sm:$0xff]
      %v236 = vld [vmem:[%s1 + $0x1d0] sm:$0xff]
      %v237 = vld [vmem:[%s1 + $0x1d8] sm:$0xff]
      %v238 = vld [vmem:[%s1 + $0x1e0] sm:$0xff]
      %v239 = vld [vmem:[%s1 + $0x1e8] sm:$0xff]
      %v240 = vld [vmem:[%s1 + $0x1f0] sm:$0xff]
      %v241 = vld [vmem:[%s1 + $0x1f8] sm:$0xff]
      %v242 = vld [vmem:[%s1 + $0x200] sm:$0xff]
      %v243 = vld [vmem:[%s1 + $0x208] sm:$0xff]
      %v244 = vld [vmem:[%s1 + $0x210] sm:$0xff]
      %v245 = vld [vmem:[%s1 + $0x218] sm:$0xff]
      %v246 = vld [vmem:[%s1 + $0x220] sm:$0xff]
      %v247 = vld [vmem:[%s1 + $0x228] sm:$0xff]
      %v248 = vld [vmem:[%s1 + $0x230] sm:$0xff]
      %v249 = vld [vmem:[%s1 + $0x238] sm:$0xff]
      %s250 = scalar_lea.vmem %s1, 576
      %v251 = vld [vmem:[%s250] sm:$0xff]
      %v252 = vld [vmem:[%s250 + $0x8] sm:$0xff]
      %v253 = vld [vmem:[%s250 + $0x10] sm:$0xff]
      %v254 = vld [vmem:[%s250 + $0x18] sm:$0xff]
      %v255 = vld [vmem:[%s250 + $0x20] sm:$0xff]
      %v256 = vld [vmem:[%s250 + $0x28] sm:$0xff]
      %v257 = vld [vmem:[%s250 + $0x30] sm:$0xff]
      %v258 = vld [vmem:[%s250 + $0x38] sm:$0xff]
      %v259 = vld [vmem:[%s250 + $0x40] sm:$0xff]
      %v260 = vld [vmem:[%s250 + $0x48] sm:$0xff]
      %v261 = vld [vmem:[%s250 + $0x50] sm:$0xff]
      %v262 = vld [vmem:[%s250 + $0x58] sm:$0xff]
      %v263 = vld [vmem:[%s250 + $0x60] sm:$0xff]
      %v264 = vld [vmem:[%s250 + $0x68] sm:$0xff]
      %v265 = vld [vmem:[%s250 + $0x70] sm:$0xff]
      %v266 = vld [vmem:[%s250 + $0x78] sm:$0xff]
      %v267 = vld [vmem:[%s250 + $0x80] sm:$0xff]
      %v268 = vld [vmem:[%s250 + $0x88] sm:$0xff]
      %v269 = vld [vmem:[%s250 + $0x90] sm:$0xff]
      %v270 = vld [vmem:[%s250 + $0x98] sm:$0xff]
      %v271 = vld [vmem:[%s250 + $0xa0] sm:$0xff]
      %v272 = vld [vmem:[%s250 + $0xa8] sm:$0xff]
      %v273 = vld [vmem:[%s250 + $0xb0] sm:$0xff]
      %v274 = vld [vmem:[%s250 + $0xb8] sm:$0xff]
      %v275 = vld [vmem:[%s250 + $0xc0] sm:$0xff]
      %v276 = vld [vmem:[%s250 + $0xc8] sm:$0xff]
      %v277 = vld [vmem:[%s250 + $0xd0] sm:$0xff]
      %v278 = vld [vmem:[%s250 + $0xd8] sm:$0xff]
      %v279 = vld [vmem:[%s250 + $0xe0] sm:$0xff]
      %v280 = vld [vmem:[%s250 + $0xe8] sm:$0xff]
      %v281 = vld [vmem:[%s250 + $0xf0] sm:$0xff]
      %v282 = vld [vmem:[%s250 + $0xf8] sm:$0xff]
      %v283 = vld [vmem:[%s250 + $0x100] sm:$0xff]
      %v284 = vld [vmem:[%s250 + $0x108] sm:$0xff]
      %v285 = vld [vmem:[%s250 + $0x110] sm:$0xff]
      %v286 = vld [vmem:[%s250 + $0x118] sm:$0xff]
      %v287 = vld [vmem:[%s250 + $0x120] sm:$0xff]
      %v288 = vld [vmem:[%s250 + $0x128] sm:$0xff]
      %v289 = vld [vmem:[%s250 + $0x130] sm:$0xff]
      %v290 = vld [vmem:[%s250 + $0x138] sm:$0xff]
      %v291 = vld [vmem:[%s250 + $0x140] sm:$0xff]
      %v292 = vld [vmem:[%s250 + $0x148] sm:$0xff]
      %v293 = vld [vmem:[%s250 + $0x150] sm:$0xff]
      %v294 = vld [vmem:[%s250 + $0x158] sm:$0xff]
      %v295 = vld [vmem:[%s250 + $0x160] sm:$0xff]
      %v296 = vld [vmem:[%s250 + $0x168] sm:$0xff]
      %v297 = vld [vmem:[%s250 + $0x170] sm:$0xff]
      %v298 = vld [vmem:[%s250 + $0x178] sm:$0xff]
      %v299 = vld [vmem:[%s250 + $0x180] sm:$0xff]
      %v300 = vld [vmem:[%s250 + $0x188] sm:$0xff]
      %v301 = vld [vmem:[%s250 + $0x190] sm:$0xff]
      %v302 = vld [vmem:[%s250 + $0x198] sm:$0xff]
      %v303 = vld [vmem:[%s250 + $0x1a0] sm:$0xff]
      %v304 = vld [vmem:[%s250 + $0x1a8] sm:$0xff]
      %v305 = vld [vmem:[%s250 + $0x1b0] sm:$0xff]
      %v306 = vld [vmem:[%s250 + $0x1b8] sm:$0xff]
      %v307 = vld [vmem:[%s250 + $0x1c0] sm:$0xff]
      %v308 = vld [vmem:[%s250 + $0x1c8] sm:$0xff]
      %v309 = vld [vmem:[%s250 + $0x1d0] sm:$0xff]
      %v310 = vld [vmem:[%s250 + $0x1d8] sm:$0xff]
      %v311 = vld [vmem:[%s250 + $0x1e0] sm:$0xff]
      %v312 = vld [vmem:[%s250 + $0x1e8] sm:$0xff]
      %v313 = vld [vmem:[%s250 + $0x1f0] sm:$0xff]
      %v314 = vld [vmem:[%s250 + $0x1f8] sm:$0xff]
      %v315 = vld [vmem:[%s250 + $0x200] sm:$0xff]
      %v316 = vld [vmem:[%s250 + $0x208] sm:$0xff]
      %v317 = vld [vmem:[%s250 + $0x210] sm:$0xff]
      %v318 = vld [vmem:[%s250 + $0x218] sm:$0xff]
      %v319 = vld [vmem:[%s250 + $0x220] sm:$0xff]
      %v320 = vld [vmem:[%s250 + $0x228] sm:$0xff]
      %v321 = vld [vmem:[%s250 + $0x230] sm:$0xff]
      %v322 = vld [vmem:[%s250 + $0x238] sm:$0xff]
      %v329 = vunpack.c.l.b16 %v172
      %v330 = vunpack.c.h.b16 %v172
      %v331 = vunpack.c.l.b16 %v173
      %v332 = vunpack.c.h.b16 %v173
      %v333 = vunpack.c.l.b16 %v174
      %v334 = vunpack.c.l.b16 %v175
      %v335 = vunpack.c.h.b16 %v175
      %v336 = vunpack.c.l.b16 %v176
      %v337 = vunpack.c.h.b16 %v176
      %v338 = vunpack.c.l.b16 %v177
      %v339 = vpack.c.b16 %v334, %v329
      %v340 = vpack.c.b16 %v335, %v330
      %v341 = vpack.c.b16 %v336, %v331
      %v342 = vpack.c.b16 %v337, %v332
      %v343 = vpack.c.b16 %v338, %v333
      %v345 = vshrl.u32 %v339, 16
      %v347 = vshll.u32 %v339, 16
      %v349 = vrot.slane %v347, 1
      %v350 = vor.u32 %v345, %v349
      %v352 = vshrl.u32 %v340, 16
      %v354 = vshll.u32 %v340, 16
      %v356 = vrot.slane %v354, 1
      %v357 = vor.u32 %v352, %v356
      %v359 = vshrl.u32 %v341, 16
      %v361 = vshll.u32 %v341, 16
      %v363 = vrot.slane %v361, 1
      %v364 = vor.u32 %v359, %v363
      %v366 = vshrl.u32 %v342, 16
      %v368 = vshll.u32 %v342, 16
      %v370 = vrot.slane %v368, 1
      %v371 = vor.u32 %v366, %v370
      %v373 = vshrl.u32 %v343, 16
      %v375 = vshll.u32 %v343, 16
      %v377 = vrot.slane %v375, 1
      %v378 = vor.u32 %v373, %v377
      %v455 = vunpack.c.l.b16 %v251
      %v456 = vunpack.c.h.b16 %v251
      %v457 = vunpack.c.l.b16 %v252
      %v458 = vunpack.c.h.b16 %v252
      %v459 = vunpack.c.l.b16 %v253
      %v460 = vunpack.c.h.b16 %v253
      %v461 = vunpack.c.l.b16 %v254
      %v462 = vunpack.c.h.b16 %v254
      %v463 = vunpack.c.l.b16 %v255
      %v464 = vunpack.c.h.b16 %v255
      %v465 = vunpack.c.l.b16 %v256
      %v466 = vunpack.c.h.b16 %v256
      %v467 = vunpack.c.l.b16 %v257
      %v468 = vunpack.c.h.b16 %v257
      %v469 = vunpack.c.l.b16 %v258
      %v470 = vunpack.c.h.b16 %v258
      %v471 = vunpack.c.l.b16 %v259
      %v472 = vunpack.c.h.b16 %v259
      %v473 = vunpack.c.l.b16 %v260
      %v474 = vunpack.c.h.b16 %v260
      %v475 = vunpack.c.l.b16 %v261
      %v476 = vunpack.c.h.b16 %v261
      %v477 = vunpack.c.l.b16 %v262
      %v478 = vunpack.c.h.b16 %v262
      %v479 = vunpack.c.l.b16 %v263
      %v480 = vunpack.c.h.b16 %v263
      %v481 = vunpack.c.l.b16 %v264
      %v482 = vunpack.c.h.b16 %v264
      %v483 = vunpack.c.l.b16 %v265
      %v484 = vunpack.c.h.b16 %v265
      %v485 = vunpack.c.l.b16 %v266
      %v486 = vunpack.c.h.b16 %v266
      %v487 = vunpack.c.l.b16 %v267
      %v488 = vunpack.c.h.b16 %v267
      %v489 = vunpack.c.l.b16 %v268
      %v490 = vunpack.c.h.b16 %v268
      %v491 = vunpack.c.l.b16 %v269
      %v492 = vunpack.c.h.b16 %v269
      %v493 = vunpack.c.l.b16 %v270
      %v494 = vunpack.c.h.b16 %v270
      %v495 = vunpack.c.l.b16 %v271
      %v496 = vunpack.c.h.b16 %v271
      %v497 = vunpack.c.l.b16 %v272
      %v498 = vunpack.c.h.b16 %v272
      %v499 = vunpack.c.l.b16 %v273
      %v500 = vunpack.c.h.b16 %v273
      %v501 = vunpack.c.l.b16 %v274
      %v502 = vunpack.c.h.b16 %v274
      %v503 = vunpack.c.l.b16 %v275
      %v504 = vunpack.c.h.b16 %v275
      %v505 = vunpack.c.l.b16 %v276
      %v506 = vunpack.c.h.b16 %v276
      %v507 = vunpack.c.l.b16 %v277
      %v508 = vunpack.c.h.b16 %v277
      %v509 = vunpack.c.l.b16 %v278
      %v510 = vunpack.c.h.b16 %v278
      %v511 = vunpack.c.l.b16 %v279
      %v512 = vunpack.c.h.b16 %v279
      %v513 = vunpack.c.l.b16 %v280
      %v514 = vunpack.c.h.b16 %v280
      %v515 = vunpack.c.l.b16 %v281
      %v516 = vunpack.c.h.b16 %v281
      %v517 = vunpack.c.l.b16 %v282
      %v518 = vunpack.c.h.b16 %v282
      %v519 = vunpack.c.l.b16 %v283
      %v520 = vunpack.c.h.b16 %v283
      %v521 = vunpack.c.l.b16 %v284
      %v522 = vunpack.c.h.b16 %v284
      %v523 = vunpack.c.l.b16 %v285
      %v524 = vunpack.c.h.b16 %v285
      %v525 = vunpack.c.l.b16 %v286
      %v526 = vunpack.c.h.b16 %v286
      %v527 = vunpack.c.l.b16 %v287
      %v528 = vunpack.c.h.b16 %v287
      %v529 = vunpack.c.l.b16 %v288
      %v530 = vunpack.c.h.b16 %v288
      %v531 = vunpack.c.l.b16 %v289
      %v532 = vunpack.c.h.b16 %v289
      %v533 = vunpack.c.l.b16 %v290
      %v534 = vunpack.c.h.b16 %v290
      %v535 = vunpack.c.l.b16 %v291
      %v536 = vunpack.c.h.b16 %v291
      %v537 = vunpack.c.l.b16 %v292
      %v538 = vunpack.c.h.b16 %v292
      %v539 = vunpack.c.l.b16 %v293
      %v540 = vunpack.c.h.b16 %v293
      %v541 = vunpack.c.l.b16 %v294
      %v542 = vunpack.c.h.b16 %v294
      %v543 = vunpack.c.l.b16 %v295
      %v544 = vunpack.c.h.b16 %v295
      %v545 = vunpack.c.l.b16 %v296
      %v546 = vunpack.c.h.b16 %v296
      %v547 = vunpack.c.l.b16 %v297
      %v548 = vunpack.c.h.b16 %v297
      %v549 = vunpack.c.l.b16 %v298
      %v550 = vunpack.c.h.b16 %v298
      %v551 = vunpack.c.l.b16 %v299
      %v552 = vunpack.c.h.b16 %v299
      %v553 = vunpack.c.l.b16 %v300
      %v554 = vunpack.c.h.b16 %v300
      %v555 = vunpack.c.l.b16 %v301
      %v556 = vunpack.c.h.b16 %v301
      %v557 = vunpack.c.l.b16 %v302
      %v558 = vunpack.c.h.b16 %v302
      %v559 = vunpack.c.l.b16 %v303
      %v560 = vunpack.c.h.b16 %v303
      %v561 = vunpack.c.l.b16 %v304
      %v562 = vunpack.c.h.b16 %v304
      %v563 = vunpack.c.l.b16 %v305
      %v564 = vunpack.c.h.b16 %v305
      %v565 = vunpack.c.l.b16 %v306
      %v566 = vunpack.c.h.b16 %v306
      %v567 = vunpack.c.l.b16 %v307
      %v568 = vunpack.c.h.b16 %v307
      %v569 = vunpack.c.l.b16 %v308
      %v570 = vunpack.c.h.b16 %v308
      %v571 = vunpack.c.l.b16 %v309
      %v572 = vunpack.c.h.b16 %v309
      %v573 = vunpack.c.l.b16 %v310
      %v574 = vunpack.c.h.b16 %v310
      %v575 = vunpack.c.l.b16 %v311
      %v576 = vunpack.c.h.b16 %v311
      %v577 = vunpack.c.l.b16 %v312
      %v578 = vunpack.c.h.b16 %v312
      %v579 = vunpack.c.l.b16 %v313
      %v580 = vunpack.c.h.b16 %v313
      %v581 = vunpack.c.l.b16 %v314
      %v582 = vunpack.c.h.b16 %v314
      %v583 = vunpack.c.l.b16 %v315
      %v584 = vunpack.c.h.b16 %v315
      %v585 = vunpack.c.l.b16 %v316
      %v586 = vunpack.c.h.b16 %v316
      %v587 = vunpack.c.l.b16 %v317
      %v588 = vunpack.c.h.b16 %v317
      %v589 = vunpack.c.l.b16 %v318
      %v590 = vunpack.c.h.b16 %v318
      %v591 = vunpack.c.l.b16 %v319
      %v592 = vunpack.c.h.b16 %v319
      %v593 = vunpack.c.l.b16 %v320
      %v594 = vunpack.c.h.b16 %v320
      %v595 = vunpack.c.l.b16 %v321
      %v596 = vunpack.c.h.b16 %v321
      %v597 = vunpack.c.l.b16 %v322
      %v598 = vunpack.c.h.b16 %v322
      %v599 = vpack.c.b16 %v457, %v455
      %v600 = vpack.c.b16 %v458, %v456
      %v601 = vpack.c.b16 %v461, %v459
      %v602 = vpack.c.b16 %v462, %v460
      %v603 = vpack.c.b16 %v465, %v463
      %v604 = vpack.c.b16 %v466, %v464
      %v605 = vpack.c.b16 %v469, %v467
      %v606 = vpack.c.b16 %v470, %v468
      %v607 = vpack.c.b16 %v473, %v471
      %v608 = vpack.c.b16 %v474, %v472
      %v609 = vpack.c.b16 %v477, %v475
      %v610 = vpack.c.b16 %v478, %v476
      %v611 = vpack.c.b16 %v481, %v479
      %v612 = vpack.c.b16 %v482, %v480
      %v613 = vpack.c.b16 %v485, %v483
      %v614 = vpack.c.b16 %v486, %v484
      %v615 = vpack.c.b16 %v489, %v487
      %v616 = vpack.c.b16 %v490, %v488
      %v617 = vpack.c.b16 %v493, %v491
      %v618 = vpack.c.b16 %v494, %v492
      %v619 = vpack.c.b16 %v497, %v495
      %v620 = vpack.c.b16 %v498, %v496
      %v621 = vpack.c.b16 %v501, %v499
      %v622 = vpack.c.b16 %v502, %v500
      %v623 = vpack.c.b16 %v505, %v503
      %v624 = vpack.c.b16 %v506, %v504
      %v625 = vpack.c.b16 %v509, %v507
      %v626 = vpack.c.b16 %v510, %v508
      %v627 = vpack.c.b16 %v513, %v511
      %v628 = vpack.c.b16 %v514, %v512
      %v629 = vpack.c.b16 %v517, %v515
      %v630 = vpack.c.b16 %v518, %v516
      %v631 = vpack.c.b16 %v521, %v519
      %v632 = vpack.c.b16 %v522, %v520
      %v633 = vpack.c.b16 %v525, %v523
      %v634 = vpack.c.b16 %v526, %v524
      %v635 = vpack.c.b16 %v529, %v527
      %v636 = vpack.c.b16 %v530, %v528
      %v637 = vpack.c.b16 %v533, %v531
      %v638 = vpack.c.b16 %v534, %v532
      %v639 = vpack.c.b16 %v537, %v535
      %v640 = vpack.c.b16 %v538, %v536
      %v641 = vpack.c.b16 %v541, %v539
      %v642 = vpack.c.b16 %v542, %v540
      %v643 = vpack.c.b16 %v545, %v543
      %v644 = vpack.c.b16 %v546, %v544
      %v645 = vpack.c.b16 %v549, %v547
      %v646 = vpack.c.b16 %v550, %v548
      %v647 = vpack.c.b16 %v553, %v551
      %v648 = vpack.c.b16 %v554, %v552
      %v649 = vpack.c.b16 %v557, %v555
      %v650 = vpack.c.b16 %v558, %v556
      %v651 = vpack.c.b16 %v561, %v559
      %v652 = vpack.c.b16 %v562, %v560
      %v653 = vpack.c.b16 %v565, %v563
      %v654 = vpack.c.b16 %v566, %v564
      %v655 = vpack.c.b16 %v569, %v567
      %v656 = vpack.c.b16 %v570, %v568
      %v657 = vpack.c.b16 %v573, %v571
      %v658 = vpack.c.b16 %v574, %v572
      %v659 = vpack.c.b16 %v577, %v575
      %v660 = vpack.c.b16 %v578, %v576
      %v661 = vpack.c.b16 %v581, %v579
      %v662 = vpack.c.b16 %v582, %v580
      %v663 = vpack.c.b16 %v585, %v583
      %v664 = vpack.c.b16 %v586, %v584
      %v665 = vpack.c.b16 %v589, %v587
      %v666 = vpack.c.b16 %v590, %v588
      %v667 = vpack.c.b16 %v593, %v591
      %v668 = vpack.c.b16 %v594, %v592
      %v669 = vpack.c.b16 %v597, %v595
      %v670 = vpack.c.b16 %v598, %v596
      %vm743 = vcmask 523264
      %v745 = vsel %vm743, %v378, 0
      %747 = vmatprep.subr.bf16.mxu0 %v600
      %748 = vmatpush1.bf16.msra.mxu0 %v599
      %749 = vmatprep.subr.bf16.mxu0 %v602
      %750 = vmatpush1.bf16.msra.mxu0 %v601
      %751 = vmatprep.subr.bf16.mxu0 %v604
      %752 = vmatpush1.bf16.msra.mxu0 %v603
      %753 = vmatprep.subr.bf16.mxu0 %v606
      %754 = vmatpush1.bf16.msra.mxu0 %v605
      %755 = vmatprep.subr.bf16.mxu0 %v608
      %756 = vmatpush1.bf16.msra.mxu0 %v607
      %757 = vmatprep.subr.bf16.mxu0 %v610
      %758 = vmatpush1.bf16.msra.mxu0 %v609
      %759 = vmatprep.subr.bf16.mxu0 %v612
      %760 = vmatpush1.bf16.msra.mxu0 %v611
      %761 = vmatprep.subr.bf16.mxu0 %v614
      %762 = vmatpush1.bf16.msra.mxu0 %v613
      %763 = vmatprep.subr.bf16.mxu0 %v616
      %764 = vmatpush1.bf16.msra.mxu0 %v615
      %765 = vmatprep.subr.bf16.mxu0 %v618
      %766 = vmatpush1.bf16.msra.mxu0 %v617
      %767 = vmatprep.subr.bf16.mxu0 %v620
      %768 = vmatpush1.bf16.msra.mxu0 %v619
      %769 = vmatprep.subr.bf16.mxu0 %v622
      %770 = vmatpush1.bf16.msra.mxu0 %v621
      %771 = vmatprep.subr.bf16.mxu0 %v624
      %772 = vmatpush1.bf16.msra.mxu0 %v623
      %773 = vmatprep.subr.bf16.mxu0 %v626
      %774 = vmatpush1.bf16.msra.mxu0 %v625
      %775 = vmatprep.subr.bf16.mxu0 %v628
      %776 = vmatpush1.bf16.msra.mxu0 %v627
      %777 = vmatprep.subr.bf16.mxu0 %v630
      %778 = vmatpush1.bf16.msra.mxu0 %v629
      %779 = vmatprep.mubr.bf16.mxu0 %v357
      %780 = vmatmul.mubr.bf16.gmra.mrb[0].mxu0 %v350
      %v781 = vpop.f32.mrb[0].mxu0
      %v782 = vadd.f32 0.0, %v781
      %v783 = vpop.f32.mrb[0].mxu0
      %v784 = vadd.f32 0.0, %v783
      %v785 = vpop.f32.mrb[0].mxu0
      %v786 = vpop.f32.mrb[0].mxu0
      %787 = vdwg.mxu0
      %788 = vmatprep.subr.bf16.mxu0 %v632
      %789 = vmatpush1.bf16.msra.mxu0 %v631
      %790 = vmatprep.subr.bf16.mxu0 %v634
      %791 = vmatpush1.bf16.msra.mxu0 %v633
      %792 = vmatprep.subr.bf16.mxu0 %v636
      %793 = vmatpush1.bf16.msra.mxu0 %v635
      %794 = vmatprep.subr.bf16.mxu0 %v638
      %795 = vmatpush1.bf16.msra.mxu0 %v637
      %796 = vmatprep.subr.bf16.mxu0 %v640
      %797 = vmatpush1.bf16.msra.mxu0 %v639
      %798 = vmatprep.subr.bf16.mxu0 %v642
      %799 = vmatpush1.bf16.msra.mxu0 %v641
      %800 = vmatprep.subr.bf16.mxu0 %v644
      %801 = vmatpush1.bf16.msra.mxu0 %v643
      %802 = vmatprep.subr.bf16.mxu0 %v646
      %803 = vmatpush1.bf16.msra.mxu0 %v645
      %804 = vmatprep.subr.bf16.mxu0 %v648
      %805 = vmatpush1.bf16.msra.mxu0 %v647
      %806 = vmatprep.subr.bf16.mxu0 %v650
      %807 = vmatpush1.bf16.msra.mxu0 %v649
      %808 = vmatprep.subr.bf16.mxu0 %v652
      %809 = vmatpush1.bf16.msra.mxu0 %v651
      %810 = vmatprep.subr.bf16.mxu0 %v654
      %811 = vmatpush1.bf16.msra.mxu0 %v653
      %812 = vmatprep.subr.bf16.mxu0 %v656
      %813 = vmatpush1.bf16.msra.mxu0 %v655
      %814 = vmatprep.subr.bf16.mxu0 %v658
      %815 = vmatpush1.bf16.msra.mxu0 %v657
      %816 = vmatprep.subr.bf16.mxu0 %v660
      %817 = vmatpush1.bf16.msra.mxu0 %v659
      %818 = vmatprep.subr.bf16.mxu0 %v662
      %819 = vmatpush1.bf16.msra.mxu0 %v661
      %820 = vmatprep.mubr.bf16.mxu0 %v371
      %821 = vmatmul.mubr.bf16.gmra.mrb[0].mxu0 %v364
      %v822 = vpop.f32.mrb[0].mxu0
      %v823 = vadd.f32 %v782, %v822
      %v824 = vpop.f32.mrb[0].mxu0
      %v825 = vadd.f32 %v784, %v824
      %v826 = vpop.f32.mrb[0].mxu0
      %v827 = vpop.f32.mrb[0].mxu0
      %828 = vdwg.mxu0
      %829 = vmatprep.subr.bf16.mxu0 %v664
      %830 = vmatpush1.bf16.msra.mxu0 %v663
      %831 = vmatprep.subr.bf16.mxu0 %v666
      %832 = vmatpush1.bf16.msra.mxu0 %v665
      %833 = vmatprep.subr.bf16.mxu0 %v668
      %834 = vmatpush1.bf16.msra.mxu0 %v667
      %835 = vmatprep.subr.bf16.mxu0 %v670
      %836 = vmatpush1.bf16.msra.mxu0 %v669
      %837 = vmatprep.subr.bf16.mxu0 0
      %838 = vmatpush1.bf16.msra.mxu0 0
      %839 = vmatprep.subr.bf16.mxu0 0
      %840 = vmatpush1.bf16.msra.mxu0 0
      %841 = vmatprep.subr.bf16.mxu0 0
      %842 = vmatpush1.bf16.msra.mxu0 0
      %843 = vmatprep.subr.bf16.mxu0 0
      %844 = vmatpush1.bf16.msra.mxu0 0
      %845 = vmatprep.subr.bf16.mxu0 0
      %846 = vmatpush1.bf16.msra.mxu0 0
      %847 = vmatprep.subr.bf16.mxu0 0
      %848 = vmatpush1.bf16.msra.mxu0 0
      %849 = vmatprep.subr.bf16.mxu0 0
      %850 = vmatpush1.bf16.msra.mxu0 0
      %851 = vmatprep.subr.bf16.mxu0 0
      %852 = vmatpush1.bf16.msra.mxu0 0
      %853 = vmatprep.subr.bf16.mxu0 0
      %854 = vmatpush1.bf16.msra.mxu0 0
      %855 = vmatprep.subr.bf16.mxu0 0
      %856 = vmatpush1.bf16.msra.mxu0 0
      %857 = vmatprep.subr.bf16.mxu0 0
      %858 = vmatpush1.bf16.msra.mxu0 0
      %859 = vmatprep.subr.bf16.mxu0 0
      %860 = vmatpush1.bf16.msra.mxu0 0
      %861 = vmatprep.mubr.bf16.mxu0 0
      %862 = vmatmul.mubr.bf16.gmra.mrb[0].mxu0 %v745
      %v863 = vpop.f32.mrb[0].mxu0
      %v864 = vadd.f32 %v823, %v863
      %v865 = vpop.f32.mrb[0].mxu0
      %v866 = vadd.f32 %v825, %v865
      %v867 = vpop.f32.mrb[0].mxu0
      %v868 = vpop.f32.mrb[0].mxu0
      %869 = vdwg.mxu0
      %v870 = vpack.c.b16 %v329, %v329
      %v871 = vpack.c.b16 %v330, %v330
      %v872 = vpack.c.b16 %v331, %v331
      %v873 = vpack.c.b16 %v332, %v332
      %v874 = vpack.c.b16 %v333, %v333
      %v951 = vunpack.c.l.b16 %v178
      %v952 = vunpack.c.h.b16 %v178
      %v953 = vunpack.c.l.b16 %v179
      %v954 = vunpack.c.h.b16 %v179
      %v955 = vunpack.c.l.b16 %v180
      %v956 = vunpack.c.h.b16 %v180
      %v957 = vunpack.c.l.b16 %v181
      %v958 = vunpack.c.h.b16 %v181
      %v959 = vunpack.c.l.b16 %v182
      %v960 = vunpack.c.h.b16 %v182
      %v961 = vunpack.c.l.b16 %v183
      %v962 = vunpack.c.h.b16 %v183
      %v963 = vunpack.c.l.b16 %v184
      %v964 = vunpack.c.h.b16 %v184
      %v965 = vunpack.c.l.b16 %v185
      %v966 = vunpack.c.h.b16 %v185
      %v967 = vunpack.c.l.b16 %v186
      %v968 = vunpack.c.h.b16 %v186
      %v969 = vunpack.c.l.b16 %v187
      %v970 = vunpack.c.h.b16 %v187
      %v971 = vunpack.c.l.b16 %v188
      %v972 = vunpack.c.h.b16 %v188
      %v973 = vunpack.c.l.b16 %v189
      %v974 = vunpack.c.h.b16 %v189
      %v975 = vunpack.c.l.b16 %v190
      %v976 = vunpack.c.h.b16 %v190
      %v977 = vunpack.c.l.b16 %v191
      %v978 = vunpack.c.h.b16 %v191
      %v979 = vunpack.c.l.b16 %v192
      %v980 = vunpack.c.h.b16 %v192
      %v981 = vunpack.c.l.b16 %v193
      %v982 = vunpack.c.h.b16 %v193
      %v983 = vunpack.c.l.b16 %v194
      %v984 = vunpack.c.h.b16 %v194
      %v985 = vunpack.c.l.b16 %v195
      %v986 = vunpack.c.h.b16 %v195
      %v987 = vunpack.c.l.b16 %v196
      %v988 = vunpack.c.h.b16 %v196
      %v989 = vunpack.c.l.b16 %v197
      %v990 = vunpack.c.h.b16 %v197
      %v991 = vunpack.c.l.b16 %v198
      %v992 = vunpack.c.h.b16 %v198
      %v993 = vunpack.c.l.b16 %v199
      %v994 = vunpack.c.h.b16 %v199
      %v995 = vunpack.c.l.b16 %v200
      %v996 = vunpack.c.h.b16 %v200
      %v997 = vunpack.c.l.b16 %v201
      %v998 = vunpack.c.h.b16 %v201
      %v999 = vunpack.c.l.b16 %v202
      %v1000 = vunpack.c.h.b16 %v202
      %v1001 = vunpack.c.l.b16 %v203
      %v1002 = vunpack.c.h.b16 %v203
      %v1003 = vunpack.c.l.b16 %v204
      %v1004 = vunpack.c.h.b16 %v204
      %v1005 = vunpack.c.l.b16 %v205
      %v1006 = vunpack.c.h.b16 %v205
      %v1007 = vunpack.c.l.b16 %v206
      %v1008 = vunpack.c.h.b16 %v206
      %v1009 = vunpack.c.l.b16 %v207
      %v1010 = vunpack.c.h.b16 %v207
      %v1011 = vunpack.c.l.b16 %v208
      %v1012 = vunpack.c.h.b16 %v208
      %v1013 = vunpack.c.l.b16 %v209
      %v1014 = vunpack.c.h.b16 %v209
      %v1015 = vunpack.c.l.b16 %v210
      %v1016 = vunpack.c.h.b16 %v210
      %v1017 = vunpack.c.l.b16 %v211
      %v1018 = vunpack.c.h.b16 %v211
      %v1019 = vunpack.c.l.b16 %v212
      %v1020 = vunpack.c.h.b16 %v212
      %v1021 = vunpack.c.l.b16 %v213
      %v1022 = vunpack.c.h.b16 %v213
      %v1023 = vunpack.c.l.b16 %v214
      %v1024 = vunpack.c.h.b16 %v214
      %v1025 = vunpack.c.l.b16 %v215
      %v1026 = vunpack.c.h.b16 %v215
      %v1027 = vunpack.c.l.b16 %v216
      %v1028 = vunpack.c.h.b16 %v216
      %v1029 = vunpack.c.l.b16 %v217
      %v1030 = vunpack.c.h.b16 %v217
      %v1031 = vunpack.c.l.b16 %v218
      %v1032 = vunpack.c.h.b16 %v218
      %v1033 = vunpack.c.l.b16 %v219
      %v1034 = vunpack.c.h.b16 %v219
      %v1035 = vunpack.c.l.b16 %v220
      %v1036 = vunpack.c.h.b16 %v220
      %v1037 = vunpack.c.l.b16 %v221
      %v1038 = vunpack.c.h.b16 %v221
      %v1039 = vunpack.c.l.b16 %v222
      %v1040 = vunpack.c.h.b16 %v222
      %v1041 = vunpack.c.l.b16 %v223
      %v1042 = vunpack.c.h.b16 %v223
      %v1043 = vunpack.c.l.b16 %v224
      %v1044 = vunpack.c.h.b16 %v224
      %v1045 = vunpack.c.l.b16 %v225
      %v1046 = vunpack.c.h.b16 %v225
      %v1047 = vunpack.c.l.b16 %v226
      %v1048 = vunpack.c.h.b16 %v226
      %v1049 = vunpack.c.l.b16 %v227
      %v1050 = vunpack.c.h.b16 %v227
      %v1051 = vunpack.c.l.b16 %v228
      %v1052 = vunpack.c.h.b16 %v228
      %v1053 = vunpack.c.l.b16 %v229
      %v1054 = vunpack.c.h.b16 %v229
      %v1055 = vunpack.c.l.b16 %v230
      %v1056 = vunpack.c.h.b16 %v230
      %v1057 = vunpack.c.l.b16 %v231
      %v1058 = vunpack.c.h.b16 %v231
      %v1059 = vunpack.c.l.b16 %v232
      %v1060 = vunpack.c.h.b16 %v232
      %v1061 = vunpack.c.l.b16 %v233
      %v1062 = vunpack.c.h.b16 %v233
      %v1063 = vunpack.c.l.b16 %v234
      %v1064 = vunpack.c.h.b16 %v234
      %v1065 = vunpack.c.l.b16 %v235
      %v1066 = vunpack.c.h.b16 %v235
      %v1067 = vunpack.c.l.b16 %v236
      %v1068 = vunpack.c.h.b16 %v236
      %v1069 = vunpack.c.l.b16 %v237
      %v1070 = vunpack.c.h.b16 %v237
      %v1071 = vunpack.c.l.b16 %v238
      %v1072 = vunpack.c.h.b16 %v238
      %v1073 = vunpack.c.l.b16 %v239
      %v1074 = vunpack.c.h.b16 %v239
      %v1075 = vunpack.c.l.b16 %v240
      %v1076 = vunpack.c.h.b16 %v240
      %v1077 = vunpack.c.l.b16 %v241
      %v1078 = vunpack.c.h.b16 %v241
      %v1079 = vunpack.c.l.b16 %v242
      %v1080 = vunpack.c.h.b16 %v242
      %v1081 = vunpack.c.l.b16 %v243
      %v1082 = vunpack.c.h.b16 %v243
      %v1083 = vunpack.c.l.b16 %v244
      %v1084 = vunpack.c.h.b16 %v244
      %v1085 = vunpack.c.l.b16 %v245
      %v1086 = vunpack.c.h.b16 %v245
      %v1087 = vunpack.c.l.b16 %v246
      %v1088 = vunpack.c.h.b16 %v246
      %v1089 = vunpack.c.l.b16 %v247
      %v1090 = vunpack.c.h.b16 %v247
      %v1091 = vunpack.c.l.b16 %v248
      %v1092 = vunpack.c.h.b16 %v248
      %v1093 = vunpack.c.l.b16 %v249
      %v1094 = vunpack.c.h.b16 %v249
      %v1095 = vpack.c.b16 %v953, %v951
      %v1096 = vpack.c.b16 %v954, %v952
      %v1097 = vpack.c.b16 %v957, %v955
      %v1098 = vpack.c.b16 %v958, %v956
      %v1099 = vpack.c.b16 %v961, %v959
      %v1100 = vpack.c.b16 %v962, %v960
      %v1101 = vpack.c.b16 %v965, %v963
      %v1102 = vpack.c.b16 %v966, %v964
      %v1103 = vpack.c.b16 %v969, %v967
      %v1104 = vpack.c.b16 %v970, %v968
      %v1105 = vpack.c.b16 %v973, %v971
      %v1106 = vpack.c.b16 %v974, %v972
      %v1107 = vpack.c.b16 %v977, %v975
      %v1108 = vpack.c.b16 %v978, %v976
      %v1109 = vpack.c.b16 %v981, %v979
      %v1110 = vpack.c.b16 %v982, %v980
      %v1111 = vpack.c.b16 %v985, %v983
      %v1112 = vpack.c.b16 %v986, %v984
      %v1113 = vpack.c.b16 %v989, %v987
      %v1114 = vpack.c.b16 %v990, %v988
      %v1115 = vpack.c.b16 %v993, %v991
      %v1116 = vpack.c.b16 %v994, %v992
      %v1117 = vpack.c.b16 %v997, %v995
      %v1118 = vpack.c.b16 %v998, %v996
      %v1119 = vpack.c.b16 %v1001, %v999
      %v1120 = vpack.c.b16 %v1002, %v1000
      %v1121 = vpack.c.b16 %v1005, %v1003
      %v1122 = vpack.c.b16 %v1006, %v1004
      %v1123 = vpack.c.b16 %v1009, %v1007
      %v1124 = vpack.c.b16 %v1010, %v1008
      %v1125 = vpack.c.b16 %v1013, %v1011
      %v1126 = vpack.c.b16 %v1014, %v1012
      %v1127 = vpack.c.b16 %v1017, %v1015
      %v1128 = vpack.c.b16 %v1018, %v1016
      %v1129 = vpack.c.b16 %v1021, %v1019
      %v1130 = vpack.c.b16 %v1022, %v1020
      %v1131 = vpack.c.b16 %v1025, %v1023
      %v1132 = vpack.c.b16 %v1026, %v1024
      %v1133 = vpack.c.b16 %v1029, %v1027
      %v1134 = vpack.c.b16 %v1030, %v1028
      %v1135 = vpack.c.b16 %v1033, %v1031
      %v1136 = vpack.c.b16 %v1034, %v1032
      %v1137 = vpack.c.b16 %v1037, %v1035
      %v1138 = vpack.c.b16 %v1038, %v1036
      %v1139 = vpack.c.b16 %v1041, %v1039
      %v1140 = vpack.c.b16 %v1042, %v1040
      %v1141 = vpack.c.b16 %v1045, %v1043
      %v1142 = vpack.c.b16 %v1046, %v1044
      %v1143 = vpack.c.b16 %v1049, %v1047
      %v1144 = vpack.c.b16 %v1050, %v1048
      %v1145 = vpack.c.b16 %v1053, %v1051
      %v1146 = vpack.c.b16 %v1054, %v1052
      %v1147 = vpack.c.b16 %v1057, %v1055
      %v1148 = vpack.c.b16 %v1058, %v1056
      %v1149 = vpack.c.b16 %v1061, %v1059
      %v1150 = vpack.c.b16 %v1062, %v1060
      %v1151 = vpack.c.b16 %v1065, %v1063
      %v1152 = vpack.c.b16 %v1066, %v1064
      %v1153 = vpack.c.b16 %v1069, %v1067
      %v1154 = vpack.c.b16 %v1070, %v1068
      %v1155 = vpack.c.b16 %v1073, %v1071
      %v1156 = vpack.c.b16 %v1074, %v1072
      %v1157 = vpack.c.b16 %v1077, %v1075
      %v1158 = vpack.c.b16 %v1078, %v1076
      %v1159 = vpack.c.b16 %v1081, %v1079
      %v1160 = vpack.c.b16 %v1082, %v1080
      %v1161 = vpack.c.b16 %v1085, %v1083
      %v1162 = vpack.c.b16 %v1086, %v1084
      %v1163 = vpack.c.b16 %v1089, %v1087
      %v1164 = vpack.c.b16 %v1090, %v1088
      %v1165 = vpack.c.b16 %v1093, %v1091
      %v1166 = vpack.c.b16 %v1094, %v1092
      %v1240 = vsel %vm743, %v874, 0
      %1242 = vmatprep.subr.bf16.mxu0 %v1096
      %1243 = vmatpush1.bf16.msra.mxu0 %v1095
      %1244 = vmatprep.subr.bf16.mxu0 %v1098
      %1245 = vmatpush1.bf16.msra.mxu0 %v1097
      %1246 = vmatprep.subr.bf16.mxu0 %v1100
      %1247 = vmatpush1.bf16.msra.mxu0 %v1099
      %1248 = vmatprep.subr.bf16.mxu0 %v1102
      %1249 = vmatpush1.bf16.msra.mxu0 %v1101
      %1250 = vmatprep.subr.bf16.mxu0 %v1104
      %1251 = vmatpush1.bf16.msra.mxu0 %v1103
      %1252 = vmatprep.subr.bf16.mxu0 %v1106
      %1253 = vmatpush1.bf16.msra.mxu0 %v1105
      %1254 = vmatprep.subr.bf16.mxu0 %v1108
      %1255 = vmatpush1.bf16.msra.mxu0 %v1107
      %1256 = vmatprep.subr.bf16.mxu0 %v1110
      %1257 = vmatpush1.bf16.msra.mxu0 %v1109
      %1258 = vmatprep.subr.bf16.mxu0 %v1112
      %1259 = vmatpush1.bf16.msra.mxu0 %v1111
      %1260 = vmatprep.subr.bf16.mxu0 %v1114
      %1261 = vmatpush1.bf16.msra.mxu0 %v1113
      %1262 = vmatprep.subr.bf16.mxu0 %v1116
      %1263 = vmatpush1.bf16.msra.mxu0 %v1115
      %1264 = vmatprep.subr.bf16.mxu0 %v1118
      %1265 = vmatpush1.bf16.msra.mxu0 %v1117
      %1266 = vmatprep.subr.bf16.mxu0 %v1120
      %1267 = vmatpush1.bf16.msra.mxu0 %v1119
      %1268 = vmatprep.subr.bf16.mxu0 %v1122
      %1269 = vmatpush1.bf16.msra.mxu0 %v1121
      %1270 = vmatprep.subr.bf16.mxu0 %v1124
      %1271 = vmatpush1.bf16.msra.mxu0 %v1123
      %1272 = vmatprep.subr.bf16.mxu0 %v1126
      %1273 = vmatpush1.bf16.msra.mxu0 %v1125
      %1274 = vmatprep.mubr.bf16.mxu0 %v871
      %1275 = vmatmul.mubr.bf16.gmra.mrb[0].mxu0 %v870
      %v1276 = vpop.f32.mrb[0].mxu0
      %v1277 = vadd.f32 %v864, %v1276
      %v1278 = vpop.f32.mrb[0].mxu0
      %v1279 = vadd.f32 %v866, %v1278
      %v1280 = vpop.f32.mrb[0].mxu0
      %v1281 = vpop.f32.mrb[0].mxu0
      %1282 = vdwg.mxu0
      %1283 = vmatprep.subr.bf16.mxu0 %v1128
      %1284 = vmatpush1.bf16.msra.mxu0 %v1127
      %1285 = vmatprep.subr.bf16.mxu0 %v1130
      %1286 = vmatpush1.bf16.msra.mxu0 %v1129
      %1287 = vmatprep.subr.bf16.mxu0 %v1132
      %1288 = vmatpush1.bf16.msra.mxu0 %v1131
      %1289 = vmatprep.subr.bf16.mxu0 %v1134
      %1290 = vmatpush1.bf16.msra.mxu0 %v1133
      %1291 = vmatprep.subr.bf16.mxu0 %v1136
      %1292 = vmatpush1.bf16.msra.mxu0 %v1135
      %1293 = vmatprep.subr.bf16.mxu0 %v1138
      %1294 = vmatpush1.bf16.msra.mxu0 %v1137
      %1295 = vmatprep.subr.bf16.mxu0 %v1140
      %1296 = vmatpush1.bf16.msra.mxu0 %v1139
      %1297 = vmatprep.subr.bf16.mxu0 %v1142
      %1298 = vmatpush1.bf16.msra.mxu0 %v1141
      %1299 = vmatprep.subr.bf16.mxu0 %v1144
      %1300 = vmatpush1.bf16.msra.mxu0 %v1143
      %1301 = vmatprep.subr.bf16.mxu0 %v1146
      %1302 = vmatpush1.bf16.msra.mxu0 %v1145
      %1303 = vmatprep.subr.bf16.mxu0 %v1148
      %1304 = vmatpush1.bf16.msra.mxu0 %v1147
      %1305 = vmatprep.subr.bf16.mxu0 %v1150
      %1306 = vmatpush1.bf16.msra.mxu0 %v1149
      %1307 = vmatprep.subr.bf16.mxu0 %v1152
      %1308 = vmatpush1.bf16.msra.mxu0 %v1151
      %1309 = vmatprep.subr.bf16.mxu0 %v1154
      %1310 = vmatpush1.bf16.msra.mxu0 %v1153
      %1311 = vmatprep.subr.bf16.mxu0 %v1156
      %1312 = vmatpush1.bf16.msra.mxu0 %v1155
      %1313 = vmatprep.subr.bf16.mxu0 %v1158
      %1314 = vmatpush1.bf16.msra.mxu0 %v1157
      %1315 = vmatprep.mubr.bf16.mxu0 %v873
      %1316 = vmatmul.mubr.bf16.gmra.mrb[0].mxu0 %v872
      %v1317 = vpop.f32.mrb[0].mxu0
      %v1318 = vadd.f32 %v1277, %v1317
      %v1319 = vpop.f32.mrb[0].mxu0
      %v1320 = vadd.f32 %v1279, %v1319
      %v1321 = vpop.f32.mrb[0].mxu0
      %v1322 = vpop.f32.mrb[0].mxu0
      %1323 = vdwg.mxu0
      %1324 = vmatprep.subr.bf16.mxu0 %v1160
      %1325 = vmatpush1.bf16.msra.mxu0 %v1159
      %1326 = vmatprep.subr.bf16.mxu0 %v1162
      %1327 = vmatpush1.bf16.msra.mxu0 %v1161
      %1328 = vmatprep.subr.bf16.mxu0 %v1164
      %1329 = vmatpush1.bf16.msra.mxu0 %v1163
      %1330 = vmatprep.subr.bf16.mxu0 %v1166
      %1331 = vmatpush1.bf16.msra.mxu0 %v1165
      %1332 = vmatprep.subr.bf16.mxu0 0
      %1333 = vmatpush1.bf16.msra.mxu0 0
      %1334 = vmatprep.subr.bf16.mxu0 0
      %1335 = vmatpush1.bf16.msra.mxu0 0
      %1336 = vmatprep.subr.bf16.mxu0 0
      %1337 = vmatpush1.bf16.msra.mxu0 0
      %1338 = vmatprep.subr.bf16.mxu0 0
      %1339 = vmatpush1.bf16.msra.mxu0 0
      %1340 = vmatprep.subr.bf16.mxu0 0
      %1341 = vmatpush1.bf16.msra.mxu0 0
      %1342 = vmatprep.subr.bf16.mxu0 0
      %1343 = vmatpush1.bf16.msra.mxu0 0
      %1344 = vmatprep.subr.bf16.mxu0 0
      %1345 = vmatpush1.bf16.msra.mxu0 0
      %1346 = vmatprep.subr.bf16.mxu0 0
      %1347 = vmatpush1.bf16.msra.mxu0 0
      %1348 = vmatprep.subr.bf16.mxu0 0
      %1349 = vmatpush1.bf16.msra.mxu0 0
      %1350 = vmatprep.subr.bf16.mxu0 0
      %1351 = vmatpush1.bf16.msra.mxu0 0
      %1352 = vmatprep.subr.bf16.mxu0 0
      %1353 = vmatpush1.bf16.msra.mxu0 0
      %1354 = vmatprep.subr.bf16.mxu0 0
      %1355 = vmatpush1.bf16.msra.mxu0 0
      %1356 = vmatprep.mubr.bf16.mxu0 0
      %1357 = vmatmul.mubr.bf16.gmra.mrb[0].mxu0 %v1240
      %v1358 = vpop.f32.mrb[0].mxu0
      %v1359 = vadd.f32 %v1318, %v1358
      %v1360 = vpop.f32.mrb[0].mxu0
      %v1361 = vadd.f32 %v1320, %v1360
      %v1362 = vpop.f32.mrb[0].mxu0
      %v1363 = vpop.f32.mrb[0].mxu0
      %1364 = vdwg.mxu0
      %v1365 = vld [vmem:[%s2] sm:$0x3]
      %v1367 = vlaneseq
      %v1368 = vshrl.u32 %v1367, 7
      %v1369 = vsub.s32 0, %v1368
      %v1370 = vrot.slane %v1365, %v1369
      %v1371 = vlaneseq
      %v1372 = vshrl.u32 %v1371, 7
      %v1373 = vsub.s32 1, %v1372
      %v1374 = vrot.slane %v1365, %v1373
      %v1377 = vadd.f32 %v1359, %v1370
      %v1378 = vadd.f32 %v1361, %v1374
      %v1379 = vmax.f32 %v1377, 0.0
      %v1380 = vmax.f32 %v1378, 0.0
      %v1381 = vpack.c.bf16 %v1379, %v1379
      %v1382 = vpack.c.bf16 %v1380, %v1380
      %v1385 = vunpack.c.l.b16 %v1381
      %v1386 = vunpack.c.l.b16 %v1382
      %v1387 = vpack.c.b16 %v1386, %v1385
      %1389 = vst [vmem:[%s170] sm:$0xff] %v1387
      %p1390 = scmp.lt.s32.totalorder %s14, 1
      %s1391 = scalar_select %p1390, %s14, 1
      %s1392 = smul.addr %s1391, 2
      %s1393 = smul.addr %s1392, 4
      %s1394 = scalar_lea.vmem %s3, %s1393
      // Predicated region
      $region33: #{dqn_forward.4} parent=31 // pred_check
        %p1395 = pneg %p100
      $region34: #{dqn_forward.4} parent=31 // pred_check_branch
        %1397 = sbr.rel (%p1395) target = $region36
      $region35: #{dqn_forward.4} parent=31 // pred_region
        _
      $region36: #{dqn_forward.4} parent=31 // pred_fallthru
        _
    $region32: #{dqn_forward.4} parent=5 // pred_fallthru
      _
    %p1398 = scmp.le.s32.totalorder 2, %s9
    // Predicated region
    $region37: #{dqn_forward.4} parent=5 // pred_check
      %p1399 = pneg %p1398
    $region38: #{dqn_forward.4} parent=5 // pred_check_branch
      %1401 = sbr.rel (%p1399) target = $region40
    $region39: #{dqn_forward.4} parent=5 // pred_region
      %s1402 = ssub.s32 %s9, 2
      // Predicated region
      $region41: #{dqn_forward.4} parent=39 // pred_check
        %p1403 = pneg %p106
      $region42: #{dqn_forward.4} parent=39 // pred_check_branch
        %1405 = sbr.rel (%p1403) target = $region44
      $region43: #{dqn_forward.4} parent=39 // pred_region
        %p1406 = scmp.lt.s32.totalorder %s15, 1
        %s1407 = scalar_select %p1406, %s15, 1
        %s1408 = smul.addr %s1407, 2
        %s1409 = smul.addr %s1408, 4
        %s1410 = scalar_lea.vmem %s3, %s1409
      $region44: #{dqn_forward.4} parent=39 // pred_fallthru
        _
    $region40: #{dqn_forward.4} parent=5 // pred_fallthru
      _
  $region6: #{dqn_forward.4} parent=0 // loop_footer
    %s13 = sadd.s32 1, %s9
  $region7: #{dqn_forward.4} parent=0 // loop_footer_branch
    %8 = sbr.rel target = $region3
  $region8: #{dqn_forward.4} parent=0 // loop_exit
    _

// kernel: dqn_forward.6
$region0: #{dqn_forward.6}
  #allocation0 [shape = 'u32[]', space=smem, size = 0x4, offset = 0x4, fixed_abs, tag = 'smem constant byte address 0x4 - core index']
  #allocation1 [shape = 'u32[144,128]{1,0:T(1,128)}', space=vmem, size = 0x12000, scoped, tag = 'internal scratch']
  %s0 = inlined_call_operand.vmem [shape: bf16[2,3,192], index: 0, kind: input, shape index: {}]
  %s1 = inlined_call_operand.vmem [shape: bf16[3,192,64], index: 1, kind: input, shape index: {}]
  %s2 = inlined_call_operand.vmem [shape: f32[1,64], index: 2, kind: input, shape index: {}]
  %s3 = inlined_call_operand.vmem [shape: bf16[2,1,64], index: 3, kind: output, shape index: {}]
  %s4 = sld [smem:[#allocation0]]
  $region45: #{dqn_forward.6} parent=0
    _
  %s6 = ssub.s32 1, %s4
  %s7 = scalar_select 0, %s6, %s4
  loop: start=0, step=1, limit=4
  $region2: #{dqn_forward.6} parent=0 // loop_pre_header
    _
  $region3: #{dqn_forward.6} parent=0 // loop_header
    %s9 = sphi 0, %s13
    %p10 = scmp.ge.s32.totalorder %s9, 4
    %s19 = sphi 0, %s21
    %s22 = sphi 0, %s19
    %s23 = sphi 0, %s22
    %s39 = sphi 0, %s23
    %s43 = sphi 0, %s43
    %s45 = sphi 0, %s43
    %s46 = sphi 0, %s45
    %s60 = sphi 0, %s46
    %s64 = sphi 0, %s64
    %s66 = sphi 0, %s64
    %s67 = sphi 0, %s66
    %s81 = sphi 0, %s67
    %s87 = sphi 0, %s89
    %s90 = sphi 0, %s87
    %s91 = sphi 0, %s90
    %s107 = sphi 0, %s91
  $region4: #{dqn_forward.6} parent=0 // loop_header_branch
    %12 = sbr.rel (%p10) target = $region8
  $region5: #{dqn_forward.6} parent=0 // loop_body
    %s14 = ssub.s32 %s9, 1
    %s15 = ssub.s32 %s9, 2
    %s16 = sadd.s32 %s9, 1
    %s17 = ssub.s32 %s9, %s16
    %p18 = scmp.eq.s32.totalorder %s17, 0
    %s20 = sadd.s32 %s19, 1
    %s21 = scalar_select %p18, %s19, %s20
    %p24 = pneg %p18
    %p25 = scmp.eq.s32.totalorder %s9, 1
    %p26 = por %p24, %p25
    %p27 = scmp.ne.s32.totalorder %s19, %s22
    %p28 = scmp.eq.s32.totalorder %s9, 0
    %p29 = por %p27, %p28
    %p30 = scmp.ne.s32.totalorder %s19, %s22
    %p31 = scmp.eq.s32.totalorder %s14, 1
    %p32 = por %p30, %p31
    %p33 = scmp.ne.s32.totalorder %s22, %s23
    %p34 = scmp.eq.s32.totalorder %s14, 0
    %p35 = por %p33, %p34
    %p36 = scmp.ne.s32.totalorder %s22, %s23
    %p37 = scmp.eq.s32.totalorder %s15, 1
    %p38 = por %p36, %p37
    %p40 = scmp.ne.s32.totalorder %s23, %s39
    %p41 = scmp.eq.s32.totalorder %s15, 0
    %p42 = por %p40, %p41
    %s44 = sadd.s32 %s43, 1
    %p47 = scmp.eq.s32.totalorder %s9, 1
    %p48 = scmp.ne.s32.totalorder %s43, %s45
    %p49 = scmp.eq.s32.totalorder %s9, 0
    %p50 = por %p48, %p49
    %p51 = scmp.ne.s32.totalorder %s43, %s45
    %p52 = scmp.eq.s32.totalorder %s14, 1
    %p53 = por %p51, %p52
    %p54 = scmp.ne.s32.totalorder %s45, %s46
    %p55 = scmp.eq.s32.totalorder %s14, 0
    %p56 = por %p54, %p55
    %p57 = scmp.ne.s32.totalorder %s45, %s46
    %p58 = scmp.eq.s32.totalorder %s15, 1
    %p59 = por %p57, %p58
    %p61 = scmp.ne.s32.totalorder %s46, %s60
    %p62 = scmp.eq.s32.totalorder %s15, 0
    %p63 = por %p61, %p62
    %s65 = sadd.s32 %s64, 1
    %p68 = scmp.eq.s32.totalorder %s9, 1
    %p69 = scmp.ne.s32.totalorder %s64, %s66
    %p70 = scmp.eq.s32.totalorder %s9, 0
    %p71 = por %p69, %p70
    %p72 = scmp.ne.s32.totalorder %s64, %s66
    %p73 = scmp.eq.s32.totalorder %s14, 1
    %p74 = por %p72, %p73
    %p75 = scmp.ne.s32.totalorder %s66, %s67
    %p76 = scmp.eq.s32.totalorder %s14, 0
    %p77 = por %p75, %p76
    %p78 = scmp.ne.s32.totalorder %s66, %s67
    %p79 = scmp.eq.s32.totalorder %s15, 1
    %p80 = por %p78, %p79
    %p82 = scmp.ne.s32.totalorder %s67, %s81
    %p83 = scmp.eq.s32.totalorder %s15, 0
    %p84 = por %p82, %p83
    %s85 = ssub.s32 %s9, %s16
    %p86 = scmp.eq.s32.totalorder %s85, 0
    %s88 = sadd.s32 %s87, 1
    %s89 = scalar_select %p86, %s87, %s88
    %p92 = pneg %p86
    %p93 = scmp.eq.s32.totalorder %s9, 1
    %p94 = por %p92, %p93
    %p95 = scmp.ne.s32.totalorder %s87, %s90
    %p96 = scmp.eq.s32.totalorder %s9, 0
    %p97 = por %p95, %p96
    %p98 = scmp.ne.s32.totalorder %s87, %s90
    %p99 = scmp.eq.s32.totalorder %s14, 1
    %p100 = por %p98, %p99
    %p101 = scmp.ne.s32.totalorder %s90, %s91
    %p102 = scmp.eq.s32.totalorder %s14, 0
    %p103 = por %p101, %p102
    %p104 = scmp.ne.s32.totalorder %s90, %s91
    %p105 = scmp.eq.s32.totalorder %s15, 1
    %p106 = por %p104, %p105
    %p108 = scmp.ne.s32.totalorder %s91, %s107
    %p109 = scmp.eq.s32.totalorder %s15, 0
    %p110 = por %p108, %p109
    %p111 = scmp.le.s32.totalorder 1, %s9
    %p112 = scmp.lt.s32.totalorder %s9, 3
    %p113 = pnand %p111, %p112
    %p114 = pneg %p113
    // Predicated region
    $region9: #{dqn_forward.6} parent=5 // pred_check
      _
    $region10: #{dqn_forward.6} parent=5 // pred_check_branch
      %116 = sbr.rel (%p113) target = $region12
    $region11: #{dqn_forward.6} parent=5 // pred_region
      %s117 = ssub.s32 %s9, 1
      // Predicated region
      $region13: #{dqn_forward.6} parent=11 // pred_check
        %p118 = pneg %p56
      $region14: #{dqn_forward.6} parent=11 // pred_check_branch
        %120 = sbr.rel (%p118) target = $region16
      $region15: #{dqn_forward.6} parent=11 // pred_region
        _
      $region16: #{dqn_forward.6} parent=11 // pred_fallthru
        _
      // Predicated region
      $region17: #{dqn_forward.6} parent=11 // pred_check
        %p121 = pneg %p77
      $region18: #{dqn_forward.6} parent=11 // pred_check_branch
        %123 = sbr.rel (%p121) target = $region20
      $region19: #{dqn_forward.6} parent=11 // pred_region
        _
      $region20: #{dqn_forward.6} parent=11 // pred_fallthru
        _
    $region12: #{dqn_forward.6} parent=5 // pred_fallthru
      _
    %p124 = scmp.lt.s32.totalorder %s9, 2
    // Predicated region
    $region21: #{dqn_forward.6} parent=5 // pred_check
      %p125 = pneg %p124
    $region22: #{dqn_forward.6} parent=5 // pred_check_branch
      %127 = sbr.rel (%p125) target = $region24
    $region23: #{dqn_forward.6} parent=5 // pred_region
      // Predicated region
      $region25: #{dqn_forward.6} parent=23 // pred_check
        %p128 = pneg %p29
      $region26: #{dqn_forward.6} parent=23 // pred_check_branch
        %130 = sbr.rel (%p128) target = $region28
      $region27: #{dqn_forward.6} parent=23 // pred_region
        %p131 = scmp.lt.s32.totalorder %s9, 1
        %s132 = scalar_select %p131, %s9, 1
        %s133 = smul.addr %s132, 2
        %s134 = smul.addr %s133, 2
        %s135 = scalar_lea.vmem %s0, %s134
      $region28: #{dqn_forward.6} parent=23 // pred_fallthru
        _
    $region24: #{dqn_forward.6} parent=5 // pred_fallthru
      _
    %p136 = scmp.le.s32.totalorder 1, %s9
    %p137 = scmp.lt.s32.totalorder %s9, 3
    %p138 = pnand %p136, %p137
    %p139 = pneg %p138
    // Predicated region
    $region29: #{dqn_forward.6} parent=5 // pred_check
      _
    $region30: #{dqn_forward.6} parent=5 // pred_check_branch
      %141 = sbr.rel (%p138) target = $region32
    $region31: #{dqn_forward.6} parent=5 // pred_region
      %s142 = ssub.s32 %s9, 1
      %p143 = scmp.lt.s32.totalorder %s14, 1
      %s144 = scalar_select %p143, %s14, 1
      %s145 = smul.addr %s144, 2
      %s146 = smul.addr %s145, 2
      %s147 = scalar_lea.vmem %s0, %s146
      %p148 = pneg %p35
      %p149 = pneg %p32
      %p150 = pneg %p56
      %p151 = pneg %p53
      %p152 = pneg %p77
      %p153 = pneg %p74
      %p154 = pneg %p103
      %p155 = pneg %p100
      %p156 = scmp.lt.s32.totalorder %s14, 1
      %s157 = scalar_select %p156, %s14, 1
      %s158 = scalar_lea.vmem %s3, %s157
      %p159 = scmp.lt.s32.totalorder %s14, 1
      %s160 = scalar_select %p159, %s14, 1
      %s161 = smul.addr %s160, 2
      %s162 = smul.addr %s161, 2
      %s163 = scalar_lea.vmem %s0, %s162
      %p164 = scmp.lt.s32.totalorder %s14, 1
      %s165 = scalar_select %p164, %s14, 1
      %s166 = scalar_lea.vmem %s3, %s165
      %v168 = vld [vmem:[%s163] sm:$0xf]
      %v169 = vld [vmem:[%s1] sm:$0xf]
      %v170 = vld [vmem:[%s1 + $0x4] sm:$0xf]
      %v171 = vld [vmem:[%s1 + $0x8] sm:$0xf]
      %v172 = vld [vmem:[%s1 + $0xc] sm:$0xf]
      %v173 = vld [vmem:[%s1 + $0x10] sm:$0xf]
      %v174 = vld [vmem:[%s1 + $0x14] sm:$0xf]
      %v175 = vld [vmem:[%s1 + $0x18] sm:$0xf]
      %v176 = vld [vmem:[%s1 + $0x1c] sm:$0xf]
      %v177 = vld [vmem:[%s1 + $0x20] sm:$0xf]
      %v178 = vld [vmem:[%s1 + $0x24] sm:$0xf]
      %v179 = vld [vmem:[%s1 + $0x28] sm:$0xf]
      %v180 = vld [vmem:[%s1 + $0x2c] sm:$0xf]
      %v181 = vld [vmem:[%s1 + $0x30] sm:$0xf]
      %v182 = vld [vmem:[%s1 + $0x34] sm:$0xf]
      %v183 = vld [vmem:[%s1 + $0x38] sm:$0xf]
      %v184 = vld [vmem:[%s1 + $0x3c] sm:$0xf]
      %v185 = vld [vmem:[%s1 + $0x40] sm:$0xf]
      %v186 = vld [vmem:[%s1 + $0x44] sm:$0xf]
      %v187 = vld [vmem:[%s1 + $0x48] sm:$0xf]
      %v188 = vld [vmem:[%s1 + $0x4c] sm:$0xf]
      %v189 = vld [vmem:[%s1 + $0x50] sm:$0xf]
      %v190 = vld [vmem:[%s1 + $0x54] sm:$0xf]
      %v191 = vld [vmem:[%s1 + $0x58] sm:$0xf]
      %v192 = vld [vmem:[%s1 + $0x5c] sm:$0xf]
      %s193 = scalar_lea.vmem %s1, 96
      %v194 = vld [vmem:[%s193] sm:$0xf]
      %v195 = vld [vmem:[%s193 + $0x4] sm:$0xf]
      %v196 = vld [vmem:[%s193 + $0x8] sm:$0xf]
      %v197 = vld [vmem:[%s193 + $0xc] sm:$0xf]
      %v198 = vld [vmem:[%s193 + $0x10] sm:$0xf]
      %v199 = vld [vmem:[%s193 + $0x14] sm:$0xf]
      %v200 = vld [vmem:[%s193 + $0x18] sm:$0xf]
      %v201 = vld [vmem:[%s193 + $0x1c] sm:$0xf]
      %v202 = vld [vmem:[%s193 + $0x20] sm:$0xf]
      %v203 = vld [vmem:[%s193 + $0x24] sm:$0xf]
      %v204 = vld [vmem:[%s193 + $0x28] sm:$0xf]
      %v205 = vld [vmem:[%s193 + $0x2c] sm:$0xf]
      %v206 = vld [vmem:[%s193 + $0x30] sm:$0xf]
      %v207 = vld [vmem:[%s193 + $0x34] sm:$0xf]
      %v208 = vld [vmem:[%s193 + $0x38] sm:$0xf]
      %v209 = vld [vmem:[%s193 + $0x3c] sm:$0xf]
      %v210 = vld [vmem:[%s193 + $0x40] sm:$0xf]
      %v211 = vld [vmem:[%s193 + $0x44] sm:$0xf]
      %v212 = vld [vmem:[%s193 + $0x48] sm:$0xf]
      %v213 = vld [vmem:[%s193 + $0x4c] sm:$0xf]
      %v214 = vld [vmem:[%s193 + $0x50] sm:$0xf]
      %v215 = vld [vmem:[%s193 + $0x54] sm:$0xf]
      %v216 = vld [vmem:[%s193 + $0x58] sm:$0xf]
      %v217 = vld [vmem:[%s193 + $0x5c] sm:$0xf]
      %v220 = vunpack.c.l.s4 1983009808
      %v221 = vunpack.c.0.s8 %v220
      %v222 = vlaneseq
      %v223 = vshrl.u32 %v222, 7
      %v224 = vsub.s32 %v221, %v223
      %v225 = vrot.slane %v168, %v224
      %v226 = vcombine.high %v225, %v225
      %v228 = vshrl.u32 %v225, 16
      %v231 = vshrl.u32 %v226, 16
      %v258 = vunpack.c.l.b16 %v194
      %v259 = vunpack.c.l.b16 %v195
      %v260 = vunpack.c.l.b16 %v196
      %v261 = vunpack.c.l.b16 %v197
      %v262 = vunpack.c.l.b16 %v198
      %v263 = vunpack.c.l.b16 %v199
      %v264 = vunpack.c.l.b16 %v200
      %v265 = vunpack.c.l.b16 %v201
      %v266 = vunpack.c.l.b16 %v202
      %v267 = vunpack.c.l.b16 %v203
      %v268 = vunpack.c.l.b16 %v204
      %v269 = vunpack.c.l.b16 %v205
      %v270 = vunpack.c.l.b16 %v206
      %v271 = vunpack.c.l.b16 %v207
      %v272 = vunpack.c.l.b16 %v208
      %v273 = vunpack.c.l.b16 %v209
      %v274 = vunpack.c.l.b16 %v210
      %v275 = vunpack.c.l.b16 %v211
      %v276 = vunpack.c.l.b16 %v212
      %v277 = vunpack.c.l.b16 %v213
      %v278 = vunpack.c.l.b16 %v214
      %v279 = vunpack.c.l.b16 %v215
      %v280 = vunpack.c.l.b16 %v216
      %v281 = vunpack.c.l.b16 %v217
      %v282 = vpack.c.b16 %v259, %v258
      %v283 = vpack.c.b16 %v261, %v260
      %v284 = vpack.c.b16 %v263, %v262
      %v285 = vpack.c.b16 %v265, %v264
      %v286 = vpack.c.b16 %v267, %v266
      %v287 = vpack.c.b16 %v269, %v268
      %v288 = vpack.c.b16 %v271, %v270
      %v289 = vpack.c.b16 %v273, %v272
      %v290 = vpack.c.b16 %v275, %v274
      %v291 = vpack.c.b16 %v277, %v276
      %v292 = vpack.c.b16 %v279, %v278
      %v293 = vpack.c.b16 %v281, %v280
      %vm306 = vcmask 523264
      %v308 = vsel %vm306, %v231, 0
      %310 = vmatprep.subr.bf16.mxu0 0
      %311 = vmatpush1.bf16.msra.mxu0 %v282
      %312 = vmatprep.subr.bf16.mxu0 0
      %313 = vmatpush1.bf16.msra.mxu0 %v283
      %314 = vmatprep.subr.bf16.mxu0 0
      %315 = vmatpush1.bf16.msra.mxu0 %v284
      %316 = vmatprep.subr.bf16.mxu0 0
      %317 = vmatpush1.bf16.msra.mxu0 %v285
      %318 = vmatprep.subr.bf16.mxu0 0
      %319 = vmatpush1.bf16.msra.mxu0 %v286
      %320 = vmatprep.subr.bf16.mxu0 0
      %321 = vmatpush1.bf16.msra.mxu0 %v287
      %322 = vmatprep.subr.bf16.mxu0 0
      %323 = vmatpush1.bf16.msra.mxu0 %v288
      %324 = vmatprep.subr.bf16.mxu0 0
      %325 = vmatpush1.bf16.msra.mxu0 %v289
      %326 = vmatprep.subr.bf16.mxu0 0
      %327 = vmatpush1.bf16.msra.mxu0 %v290
      %328 = vmatprep.subr.bf16.mxu0 0
      %329 = vmatpush1.bf16.msra.mxu0 %v291
      %330 = vmatprep.subr.bf16.mxu0 0
      %331 = vmatpush1.bf16.msra.mxu0 %v292
      %332 = vmatprep.subr.bf16.mxu0 0
      %333 = vmatpush1.bf16.msra.mxu0 %v293
      %334 = vmatprep.subr.bf16.mxu0 0
      %335 = vmatpush1.bf16.msra.mxu0 0
      %336 = vmatprep.subr.bf16.mxu0 0
      %337 = vmatpush1.bf16.msra.mxu0 0
      %338 = vmatprep.subr.bf16.mxu0 0
      %339 = vmatpush1.bf16.msra.mxu0 0
      %340 = vmatprep.subr.bf16.mxu0 0
      %341 = vmatpush1.bf16.msra.mxu0 0
      %342 = vmatprep.mubr.bf16.mxu0 %v308
      %343 = vmatmul.mubr.bf16.gmra.mrb[0].mxu0 %v228
      %v344 = vpop.f32.mrb[0].mxu0
      %v345 = vadd.f32 0.0, %v344
      %v346 = vpop.f32.mrb[0].mxu0
      %v347 = vpop.f32.mrb[0].mxu0
      %v348 = vpop.f32.mrb[0].mxu0
      %349 = vdwg.mxu0
      %v375 = vunpack.c.l.b16 %v169
      %v376 = vunpack.c.l.b16 %v170
      %v377 = vunpack.c.l.b16 %v171
      %v378 = vunpack.c.l.b16 %v172
      %v379 = vunpack.c.l.b16 %v173
      %v380 = vunpack.c.l.b16 %v174
      %v381 = vunpack.c.l.b16 %v175
      %v382 = vunpack.c.l.b16 %v176
      %v383 = vunpack.c.l.b16 %v177
      %v384 = vunpack.c.l.b16 %v178
      %v385 = vunpack.c.l.b16 %v179
      %v386 = vunpack.c.l.b16 %v180
      %v387 = vunpack.c.l.b16 %v181
      %v388 = vunpack.c.l.b16 %v182
      %v389 = vunpack.c.l.b16 %v183
      %v390 = vunpack.c.l.b16 %v184
      %v391 = vunpack.c.l.b16 %v185
      %v392 = vunpack.c.l.b16 %v186
      %v393 = vunpack.c.l.b16 %v187
      %v394 = vunpack.c.l.b16 %v188
      %v395 = vunpack.c.l.b16 %v189
      %v396 = vunpack.c.l.b16 %v190
      %v397 = vunpack.c.l.b16 %v191
      %v398 = vunpack.c.l.b16 %v192
      %v399 = vpack.c.b16 %v376, %v375
      %v400 = vpack.c.b16 %v378, %v377
      %v401 = vpack.c.b16 %v380, %v379
      %v402 = vpack.c.b16 %v382, %v381
      %v403 = vpack.c.b16 %v384, %v383
      %v404 = vpack.c.b16 %v386, %v385
      %v405 = vpack.c.b16 %v388, %v387
      %v406 = vpack.c.b16 %v390, %v389
      %v407 = vpack.c.b16 %v392, %v391
      %v408 = vpack.c.b16 %v394, %v393
      %v409 = vpack.c.b16 %v396, %v395
      %v410 = vpack.c.b16 %v398, %v397
      %v423 = vsel %vm306, %v226, 0
      %425 = vmatprep.subr.bf16.mxu0 0
      %426 = vmatpush1.bf16.msra.mxu0 %v399
      %427 = vmatprep.subr.bf16.mxu0 0
      %428 = vmatpush1.bf16.msra.mxu0 %v400
      %429 = vmatprep.subr.bf16.mxu0 0
      %430 = vmatpush1.bf16.msra.mxu0 %v401
      %431 = vmatprep.subr.bf16.mxu0 0
      %432 = vmatpush1.bf16.msra.mxu0 %v402
      %433 = vmatprep.subr.bf16.mxu0 0
      %434 = vmatpush1.bf16.msra.mxu0 %v403
      %435 = vmatprep.subr.bf16.mxu0 0
      %436 = vmatpush1.bf16.msra.mxu0 %v404
      %437 = vmatprep.subr.bf16.mxu0 0
      %438 = vmatpush1.bf16.msra.mxu0 %v405
      %439 = vmatprep.subr.bf16.mxu0 0
      %440 = vmatpush1.bf16.msra.mxu0 %v406
      %441 = vmatprep.subr.bf16.mxu0 0
      %442 = vmatpush1.bf16.msra.mxu0 %v407
      %443 = vmatprep.subr.bf16.mxu0 0
      %444 = vmatpush1.bf16.msra.mxu0 %v408
      %445 = vmatprep.subr.bf16.mxu0 0
      %446 = vmatpush1.bf16.msra.mxu0 %v409
      %447 = vmatprep.subr.bf16.mxu0 0
      %448 = vmatpush1.bf16.msra.mxu0 %v410
      %449 = vmatprep.subr.bf16.mxu0 0
      %450 = vmatpush1.bf16.msra.mxu0 0
      %451 = vmatprep.subr.bf16.mxu0 0
      %452 = vmatpush1.bf16.msra.mxu0 0
      %453 = vmatprep.subr.bf16.mxu0 0
      %454 = vmatpush1.bf16.msra.mxu0 0
      %455 = vmatprep.subr.bf16.mxu0 0
      %456 = vmatpush1.bf16.msra.mxu0 0
      %457 = vmatprep.mubr.bf16.mxu0 %v423
      %458 = vmatmul.mubr.bf16.gmra.mrb[0].mxu0 %v225
      %v459 = vpop.f32.mrb[0].mxu0
      %v460 = vadd.f32 %v345, %v459
      %v461 = vpop.f32.mrb[0].mxu0
      %v462 = vpop.f32.mrb[0].mxu0
      %v463 = vpop.f32.mrb[0].mxu0
      %464 = vdwg.mxu0
      %s465 = scalar_lea.vmem %s1, 192
      %v466 = vld [vmem:[%s465] sm:$0xf]
      %v467 = vld [vmem:[%s465 + $0x4] sm:$0xf]
      %v468 = vld [vmem:[%s465 + $0x8] sm:$0xf]
      %v469 = vld [vmem:[%s465 + $0xc] sm:$0xf]
      %v470 = vld [vmem:[%s465 + $0x10] sm:$0xf]
      %v471 = vld [vmem:[%s465 + $0x14] sm:$0xf]
      %v472 = vld [vmem:[%s465 + $0x18] sm:$0xf]
      %v473 = vld [vmem:[%s465 + $0x1c] sm:$0xf]
      %v474 = vld [vmem:[%s465 + $0x20] sm:$0xf]
      %v475 = vld [vmem:[%s465 + $0x24] sm:$0xf]
      %v476 = vld [vmem:[%s465 + $0x28] sm:$0xf]
      %v477 = vld [vmem:[%s465 + $0x2c] sm:$0xf]
      %v478 = vld [vmem:[%s465 + $0x30] sm:$0xf]
      %v479 = vld [vmem:[%s465 + $0x34] sm:$0xf]
      %v480 = vld [vmem:[%s465 + $0x38] sm:$0xf]
      %v481 = vld [vmem:[%s465 + $0x3c] sm:$0xf]
      %v482 = vld [vmem:[%s465 + $0x40] sm:$0xf]
      %v483 = vld [vmem:[%s465 + $0x44] sm:$0xf]
      %v484 = vld [vmem:[%s465 + $0x48] sm:$0xf]
      %v485 = vld [vmem:[%s465 + $0x4c] sm:$0xf]
      %v486 = vld [vmem:[%s465 + $0x50] sm:$0xf]
      %v487 = vld [vmem:[%s465 + $0x54] sm:$0xf]
      %v488 = vld [vmem:[%s465 + $0x58] sm:$0xf]
      %v489 = vld [vmem:[%s465 + $0x5c] sm:$0xf]
      %v490 = vrot.slane %v225, 1
      %v491 = vrot.slane %v226, 1
      %v517 = vunpack.c.l.b16 %v466
      %v518 = vunpack.c.l.b16 %v467
      %v519 = vunpack.c.l.b16 %v468
      %v520 = vunpack.c.l.b16 %v469
      %v521 = vunpack.c.l.b16 %v470
      %v522 = vunpack.c.l.b16 %v471
      %v523 = vunpack.c.l.b16 %v472
      %v524 = vunpack.c.l.b16 %v473
      %v525 = vunpack.c.l.b16 %v474
      %v526 = vunpack.c.l.b16 %v475
      %v527 = vunpack.c.l.b16 %v476
      %v528 = vunpack.c.l.b16 %v477
      %v529 = vunpack.c.l.b16 %v478
      %v530 = vunpack.c.l.b16 %v479
      %v531 = vunpack.c.l.b16 %v480
      %v532 = vunpack.c.l.b16 %v481
      %v533 = vunpack.c.l.b16 %v482
      %v534 = vunpack.c.l.b16 %v483
      %v535 = vunpack.c.l.b16 %v484
      %v536 = vunpack.c.l.b16 %v485
      %v537 = vunpack.c.l.b16 %v486
      %v538 = vunpack.c.l.b16 %v487
      %v539 = vunpack.c.l.b16 %v488
      %v540 = vunpack.c.l.b16 %v489
      %v541 = vpack.c.b16 %v518, %v517
      %v542 = vpack.c.b16 %v520, %v519
      %v543 = vpack.c.b16 %v522, %v521
      %v544 = vpack.c.b16 %v524, %v523
      %v545 = vpack.c.b16 %v526, %v525
      %v546 = vpack.c.b16 %v528, %v527
      %v547 = vpack.c.b16 %v530, %v529
      %v548 = vpack.c.b16 %v532, %v531
      %v549 = vpack.c.b16 %v534, %v533
      %v550 = vpack.c.b16 %v536, %v535
      %v551 = vpack.c.b16 %v538, %v537
      %v552 = vpack.c.b16 %v540, %v539
      %v566 = vsel %vm306, %v491, 0
      %568 = vmatprep.subr.bf16.mxu0 0
      %569 = vmatpush1.bf16.msra.mxu0 %v541
      %570 = vmatprep.subr.bf16.mxu0 0
      %571 = vmatpush1.bf16.msra.mxu0 %v542
      %572 = vmatprep.subr.bf16.mxu0 0
      %573 = vmatpush1.bf16.msra.mxu0 %v543
      %574 = vmatprep.subr.bf16.mxu0 0
      %575 = vmatpush1.bf16.msra.mxu0 %v544
      %576 = vmatprep.subr.bf16.mxu0 0
      %577 = vmatpush1.bf16.msra.mxu0 %v545
      %578 = vmatprep.subr.bf16.mxu0 0
      %579 = vmatpush1.bf16.msra.mxu0 %v546
      %580 = vmatprep.subr.bf16.mxu0 0
      %581 = vmatpush1.bf16.msra.mxu0 %v547
      %582 = vmatprep.subr.bf16.mxu0 0
      %583 = vmatpush1.bf16.msra.mxu0 %v548
      %584 = vmatprep.subr.bf16.mxu0 0
      %585 = vmatpush1.bf16.msra.mxu0 %v549
      %586 = vmatprep.subr.bf16.mxu0 0
      %587 = vmatpush1.bf16.msra.mxu0 %v550
      %588 = vmatprep.subr.bf16.mxu0 0
      %589 = vmatpush1.bf16.msra.mxu0 %v551
      %590 = vmatprep.subr.bf16.mxu0 0
      %591 = vmatpush1.bf16.msra.mxu0 %v552
      %592 = vmatprep.subr.bf16.mxu0 0
      %593 = vmatpush1.bf16.msra.mxu0 0
      %594 = vmatprep.subr.bf16.mxu0 0
      %595 = vmatpush1.bf16.msra.mxu0 0
      %596 = vmatprep.subr.bf16.mxu0 0
      %597 = vmatpush1.bf16.msra.mxu0 0
      %598 = vmatprep.subr.bf16.mxu0 0
      %599 = vmatpush1.bf16.msra.mxu0 0
      %600 = vmatprep.mubr.bf16.mxu0 %v566
      %601 = vmatmul.mubr.bf16.gmra.mrb[0].mxu0 %v490
      %v602 = vpop.f32.mrb[0].mxu0
      %v603 = vadd.f32 0.0, %v602
      %v604 = vpop.f32.mrb[0].mxu0
      %v605 = vpop.f32.mrb[0].mxu0
      %v606 = vpop.f32.mrb[0].mxu0
      %607 = vdwg.mxu0
      %v608 = vadd.f32 %v460, %v603
      %v609 = vld [vmem:[%s2] sm:$0x1]
      %v610 = vadd.f32 %v608, %v609
      %v611 = vpack.c.bf16 %v610, %v610
      %vm612 = vcmask 516096
      %vm613 = vsmask.f32 256
      %vm614 = vmand %vm612, %vm613
      %v615 = vld [vmem:[%s166] sm:$0x1]
      %v616 = vsel %vm614, %v611, %v615
      %617 = vst [vmem:[%s166] sm:$0x1] %v616
      %p618 = scmp.lt.s32.totalorder %s14, 1
      %s619 = scalar_select %p618, %s14, 1
      %s620 = scalar_lea.vmem %s3, %s619
      // Predicated region
      $region33: #{dqn_forward.6} parent=31 // pred_check
        %p621 = pneg %p100
      $region34: #{dqn_forward.6} parent=31 // pred_check_branch
        %623 = sbr.rel (%p621) target = $region36
      $region35: #{dqn_forward.6} parent=31 // pred_region
        _
      $region36: #{dqn_forward.6} parent=31 // pred_fallthru
        _
    $region32: #{dqn_forward.6} parent=5 // pred_fallthru
      _
    %p624 = scmp.le.s32.totalorder 2, %s9
    // Predicated region
    $region37: #{dqn_forward.6} parent=5 // pred_check
      %p625 = pneg %p624
    $region38: #{dqn_forward.6} parent=5 // pred_check_branch
      %627 = sbr.rel (%p625) target = $region40
    $region39: #{dqn_forward.6} parent=5 // pred_region
      %s628 = ssub.s32 %s9, 2
      // Predicated region
      $region41: #{dqn_forward.6} parent=39 // pred_check
        %p629 = pneg %p106
      $region42: #{dqn_forward.6} parent=39 // pred_check_branch
        %631 = sbr.rel (%p629) target = $region44
      $region43: #{dqn_forward.6} parent=39 // pred_region
        %p632 = scmp.lt.s32.totalorder %s15, 1
        %s633 = scalar_select %p632, %s15, 1
        %s634 = scalar_lea.vmem %s3, %s633
      $region44: #{dqn_forward.6} parent=39 // pred_fallthru
        _
    $region40: #{dqn_forward.6} parent=5 // pred_fallthru
      _
  $region6: #{dqn_forward.6} parent=0 // loop_footer
    %s13 = sadd.s32 1, %s9
  $region7: #{dqn_forward.6} parent=0 // loop_footer_branch
    %8 = sbr.rel target = $region3
  $region8: #{dqn_forward.6} parent=0 // loop_exit
    _

// kernel: dqn_forward.5
$region0: #{dqn_forward.5}
  #allocation0 [shape = 'u32[]', space=smem, size = 0x4, offset = 0x4, fixed_abs, tag = 'smem constant byte address 0x4 - core index']
  #allocation1 [shape = 'u32[144,128]{1,0:T(1,128)}', space=vmem, size = 0x12000, scoped, tag = 'internal scratch']
  %s0 = inlined_call_operand.vmem [shape: bf16[2,4,512], index: 0, kind: input, shape index: {}]
  %s1 = inlined_call_operand.vmem [shape: bf16[2,512,192], index: 1, kind: input, shape index: {}]
  %s2 = inlined_call_operand.vmem [shape: f32[1,192], index: 2, kind: input, shape index: {}]
  %s3 = inlined_call_operand.vmem [shape: bf16[2,3,192], index: 3, kind: output, shape index: {}]
  %s4 = sld [smem:[#allocation0]]
  $region45: #{dqn_forward.5} parent=0
    _
  %s6 = ssub.s32 1, %s4
  %s7 = scalar_select 0, %s6, %s4
  loop: start=0, step=1, limit=4
  $region2: #{dqn_forward.5} parent=0 // loop_pre_header
    _
  $region3: #{dqn_forward.5} parent=0 // loop_header
    %s9 = sphi 0, %s13
    %p10 = scmp.ge.s32.totalorder %s9, 4
    %s19 = sphi 0, %s21
    %s22 = sphi 0, %s19
    %s23 = sphi 0, %s22
    %s39 = sphi 0, %s23
    %s43 = sphi 0, %s43
    %s45 = sphi 0, %s43
    %s46 = sphi 0, %s45
    %s60 = sphi 0, %s46
    %s64 = sphi 0, %s64
    %s66 = sphi 0, %s64
    %s67 = sphi 0, %s66
    %s81 = sphi 0, %s67
    %s87 = sphi 0, %s89
    %s90 = sphi 0, %s87
    %s91 = sphi 0, %s90
    %s107 = sphi 0, %s91
  $region4: #{dqn_forward.5} parent=0 // loop_header_branch
    %12 = sbr.rel (%p10) target = $region8
  $region5: #{dqn_forward.5} parent=0 // loop_body
    %s14 = ssub.s32 %s9, 1
    %s15 = ssub.s32 %s9, 2
    %s16 = sadd.s32 %s9, 1
    %s17 = ssub.s32 %s9, %s16
    %p18 = scmp.eq.s32.totalorder %s17, 0
    %s20 = sadd.s32 %s19, 1
    %s21 = scalar_select %p18, %s19, %s20
    %p24 = pneg %p18
    %p25 = scmp.eq.s32.totalorder %s9, 1
    %p26 = por %p24, %p25
    %p27 = scmp.ne.s32.totalorder %s19, %s22
    %p28 = scmp.eq.s32.totalorder %s9, 0
    %p29 = por %p27, %p28
    %p30 = scmp.ne.s32.totalorder %s19, %s22
    %p31 = scmp.eq.s32.totalorder %s14, 1
    %p32 = por %p30, %p31
    %p33 = scmp.ne.s32.totalorder %s22, %s23
    %p34 = scmp.eq.s32.totalorder %s14, 0
    %p35 = por %p33, %p34
    %p36 = scmp.ne.s32.totalorder %s22, %s23
    %p37 = scmp.eq.s32.totalorder %s15, 1
    %p38 = por %p36, %p37
    %p40 = scmp.ne.s32.totalorder %s23, %s39
    %p41 = scmp.eq.s32.totalorder %s15, 0
    %p42 = por %p40, %p41
    %s44 = sadd.s32 %s43, 1
    %p47 = scmp.eq.s32.totalorder %s9, 1
    %p48 = scmp.ne.s32.totalorder %s43, %s45
    %p49 = scmp.eq.s32.totalorder %s9, 0
    %p50 = por %p48, %p49
    %p51 = scmp.ne.s32.totalorder %s43, %s45
    %p52 = scmp.eq.s32.totalorder %s14, 1
    %p53 = por %p51, %p52
    %p54 = scmp.ne.s32.totalorder %s45, %s46
    %p55 = scmp.eq.s32.totalorder %s14, 0
    %p56 = por %p54, %p55
    %p57 = scmp.ne.s32.totalorder %s45, %s46
    %p58 = scmp.eq.s32.totalorder %s15, 1
    %p59 = por %p57, %p58
    %p61 = scmp.ne.s32.totalorder %s46, %s60
    %p62 = scmp.eq.s32.totalorder %s15, 0
    %p63 = por %p61, %p62
    %s65 = sadd.s32 %s64, 1
    %p68 = scmp.eq.s32.totalorder %s9, 1
    %p69 = scmp.ne.s32.totalorder %s64, %s66
    %p70 = scmp.eq.s32.totalorder %s9, 0
    %p71 = por %p69, %p70
    %p72 = scmp.ne.s32.totalorder %s64, %s66
    %p73 = scmp.eq.s32.totalorder %s14, 1
    %p74 = por %p72, %p73
    %p75 = scmp.ne.s32.totalorder %s66, %s67
    %p76 = scmp.eq.s32.totalorder %s14, 0
    %p77 = por %p75, %p76
    %p78 = scmp.ne.s32.totalorder %s66, %s67
    %p79 = scmp.eq.s32.totalorder %s15, 1
    %p80 = por %p78, %p79
    %p82 = scmp.ne.s32.totalorder %s67, %s81
    %p83 = scmp.eq.s32.totalorder %s15, 0
    %p84 = por %p82, %p83
    %s85 = ssub.s32 %s9, %s16
    %p86 = scmp.eq.s32.totalorder %s85, 0
    %s88 = sadd.s32 %s87, 1
    %s89 = scalar_select %p86, %s87, %s88
    %p92 = pneg %p86
    %p93 = scmp.eq.s32.totalorder %s9, 1
    %p94 = por %p92, %p93
    %p95 = scmp.ne.s32.totalorder %s87, %s90
    %p96 = scmp.eq.s32.totalorder %s9, 0
    %p97 = por %p95, %p96
    %p98 = scmp.ne.s32.totalorder %s87, %s90
    %p99 = scmp.eq.s32.totalorder %s14, 1
    %p100 = por %p98, %p99
    %p101 = scmp.ne.s32.totalorder %s90, %s91
    %p102 = scmp.eq.s32.totalorder %s14, 0
    %p103 = por %p101, %p102
    %p104 = scmp.ne.s32.totalorder %s90, %s91
    %p105 = scmp.eq.s32.totalorder %s15, 1
    %p106 = por %p104, %p105
    %p108 = scmp.ne.s32.totalorder %s91, %s107
    %p109 = scmp.eq.s32.totalorder %s15, 0
    %p110 = por %p108, %p109
    %p111 = scmp.le.s32.totalorder 1, %s9
    %p112 = scmp.lt.s32.totalorder %s9, 3
    %p113 = pnand %p111, %p112
    %p114 = pneg %p113
    // Predicated region
    $region9: #{dqn_forward.5} parent=5 // pred_check
      _
    $region10: #{dqn_forward.5} parent=5 // pred_check_branch
      %116 = sbr.rel (%p113) target = $region12
    $region11: #{dqn_forward.5} parent=5 // pred_region
      %s117 = ssub.s32 %s9, 1
      // Predicated region
      $region13: #{dqn_forward.5} parent=11 // pred_check
        %p118 = pneg %p56
      $region14: #{dqn_forward.5} parent=11 // pred_check_branch
        %120 = sbr.rel (%p118) target = $region16
      $region15: #{dqn_forward.5} parent=11 // pred_region
        _
      $region16: #{dqn_forward.5} parent=11 // pred_fallthru
        _
      // Predicated region
      $region17: #{dqn_forward.5} parent=11 // pred_check
        %p121 = pneg %p77
      $region18: #{dqn_forward.5} parent=11 // pred_check_branch
        %123 = sbr.rel (%p121) target = $region20
      $region19: #{dqn_forward.5} parent=11 // pred_region
        _
      $region20: #{dqn_forward.5} parent=11 // pred_fallthru
        _
    $region12: #{dqn_forward.5} parent=5 // pred_fallthru
      _
    %p124 = scmp.lt.s32.totalorder %s9, 2
    // Predicated region
    $region21: #{dqn_forward.5} parent=5 // pred_check
      %p125 = pneg %p124
    $region22: #{dqn_forward.5} parent=5 // pred_check_branch
      %127 = sbr.rel (%p125) target = $region24
    $region23: #{dqn_forward.5} parent=5 // pred_region
      // Predicated region
      $region25: #{dqn_forward.5} parent=23 // pred_check
        %p128 = pneg %p29
      $region26: #{dqn_forward.5} parent=23 // pred_check_branch
        %130 = sbr.rel (%p128) target = $region28
      $region27: #{dqn_forward.5} parent=23 // pred_region
        %p131 = scmp.lt.s32.totalorder %s9, 1
        %s132 = scalar_select %p131, %s9, 1
        %s133 = smul.addr %s132, 4
        %s134 = smul.addr %s133, 2
        %s135 = scalar_lea.vmem %s0, %s134
      $region28: #{dqn_forward.5} parent=23 // pred_fallthru
        _
    $region24: #{dqn_forward.5} parent=5 // pred_fallthru
      _
    %p136 = scmp.le.s32.totalorder 1, %s9
    %p137 = scmp.lt.s32.totalorder %s9, 3
    %p138 = pnand %p136, %p137
    %p139 = pneg %p138
    // Predicated region
    $region29: #{dqn_forward.5} parent=5 // pred_check
      _
    $region30: #{dqn_forward.5} parent=5 // pred_check_branch
      %141 = sbr.rel (%p138) target = $region32
    $region31: #{dqn_forward.5} parent=5 // pred_region
      %s142 = ssub.s32 %s9, 1
      %p143 = scmp.lt.s32.totalorder %s14, 1
      %s144 = scalar_select %p143, %s14, 1
      %s145 = smul.addr %s144, 4
      %s146 = smul.addr %s145, 2
      %s147 = scalar_lea.vmem %s0, %s146
      %p148 = pneg %p35
      %p149 = pneg %p32
      %p150 = pneg %p56
      %p151 = pneg %p53
      %p152 = pneg %p77
      %p153 = pneg %p74
      %p154 = pneg %p103
      %p155 = pneg %p100
      %p156 = scmp.lt.s32.totalorder %s14, 1
      %s157 = scalar_select %p156, %s14, 1
      %s158 = smul.addr %s157, 2
      %s159 = smul.addr %s158, 2
      %s160 = scalar_lea.vmem %s3, %s159
      %p161 = scmp.lt.s32.totalorder %s14, 1
      %s162 = scalar_select %p161, %s14, 1
      %s163 = smul.addr %s162, 4
      %s164 = smul.addr %s163, 2
      %s165 = scalar_lea.vmem %s0, %s164
      %p166 = scmp.lt.s32.totalorder %s14, 1
      %s167 = scalar_select %p166, %s14, 1
      %s168 = smul.addr %s167, 2
      %s169 = smul.addr %s168, 2
      %s170 = scalar_lea.vmem %s3, %s169
      %v171 = vld [vmem:[%s165] sm:$0xff]
      %v172 = vld [vmem:[%s1] sm:$0xff]
      %v173 = vld [vmem:[%s1 + $0x8] sm:$0xff]
      %v174 = vld [vmem:[%s1 + $0x10] sm:$0xff]
      %v175 = vld [vmem:[%s1 + $0x18] sm:$0xff]
      %v176 = vld [vmem:[%s1 + $0x20] sm:$0xff]
      %v177 = vld [vmem:[%s1 + $0x28] sm:$0xff]
      %v178 = vld [vmem:[%s1 + $0x30] sm:$0xff]
      %v179 = vld [vmem:[%s1 + $0x38] sm:$0xff]
      %v180 = vld [vmem:[%s1 + $0x40] sm:$0xff]
      %v181 = vld [vmem:[%s1 + $0x48] sm:$0xff]
      %v182 = vld [vmem:[%s1 + $0x50] sm:$0xff]
      %v183 = vld [vmem:[%s1 + $0x58] sm:$0xff]
      %v184 = vld [vmem:[%s1 + $0x60] sm:$0xff]
      %v185 = vld [vmem:[%s1 + $0x68] sm:$0xff]
      %v186 = vld [vmem:[%s1 + $0x70] sm:$0xff]
      %v187 = vld [vmem:[%s1 + $0x78] sm:$0xff]
      %v188 = vld [vmem:[%s1 + $0x80] sm:$0xff]
      %v189 = vld [vmem:[%s1 + $0x88] sm:$0xff]
      %v190 = vld [vmem:[%s1 + $0x90] sm:$0xff]
      %v191 = vld [vmem:[%s1 + $0x98] sm:$0xff]
      %v192 = vld [vmem:[%s1 + $0xa0] sm:$0xff]
      %v193 = vld [vmem:[%s1 + $0xa8] sm:$0xff]
      %v194 = vld [vmem:[%s1 + $0xb0] sm:$0xff]
      %v195 = vld [vmem:[%s1 + $0xb8] sm:$0xff]
      %v196 = vld [vmem:[%s1 + $0xc0] sm:$0xff]
      %v197 = vld [vmem:[%s1 + $0xc8] sm:$0xff]
      %v198 = vld [vmem:[%s1 + $0xd0] sm:$0xff]
      %v199 = vld [vmem:[%s1 + $0xd8] sm:$0xff]
      %v200 = vld [vmem:[%s1 + $0xe0] sm:$0xff]
      %v201 = vld [vmem:[%s1 + $0xe8] sm:$0xff]
      %v202 = vld [vmem:[%s1 + $0xf0] sm:$0xff]
      %v203 = vld [vmem:[%s1 + $0xf8] sm:$0xff]
      %v204 = vld [vmem:[%s1 + $0x100] sm:$0xff]
      %v205 = vld [vmem:[%s1 + $0x108] sm:$0xff]
      %v206 = vld [vmem:[%s1 + $0x110] sm:$0xff]
      %v207 = vld [vmem:[%s1 + $0x118] sm:$0xff]
      %v208 = vld [vmem:[%s1 + $0x120] sm:$0xff]
      %v209 = vld [vmem:[%s1 + $0x128] sm:$0xff]
      %v210 = vld [vmem:[%s1 + $0x130] sm:$0xff]
      %v211 = vld [vmem:[%s1 + $0x138] sm:$0xff]
      %v212 = vld [vmem:[%s1 + $0x140] sm:$0xff]
      %v213 = vld [vmem:[%s1 + $0x148] sm:$0xff]
      %v214 = vld [vmem:[%s1 + $0x150] sm:$0xff]
      %v215 = vld [vmem:[%s1 + $0x158] sm:$0xff]
      %v216 = vld [vmem:[%s1 + $0x160] sm:$0xff]
      %v217 = vld [vmem:[%s1 + $0x168] sm:$0xff]
      %v218 = vld [vmem:[%s1 + $0x170] sm:$0xff]
      %v219 = vld [vmem:[%s1 + $0x178] sm:$0xff]
      %v220 = vld [vmem:[%s1 + $0x180] sm:$0xff]
      %v221 = vld [vmem:[%s1 + $0x188] sm:$0xff]
      %v222 = vld [vmem:[%s1 + $0x190] sm:$0xff]
      %v223 = vld [vmem:[%s1 + $0x198] sm:$0xff]
      %v224 = vld [vmem:[%s1 + $0x1a0] sm:$0xff]
      %v225 = vld [vmem:[%s1 + $0x1a8] sm:$0xff]
      %v226 = vld [vmem:[%s1 + $0x1b0] sm:$0xff]
      %v227 = vld [vmem:[%s1 + $0x1b8] sm:$0xff]
      %v228 = vld [vmem:[%s1 + $0x1c0] sm:$0xff]
      %v229 = vld [vmem:[%s1 + $0x1c8] sm:$0xff]
      %v230 = vld [vmem:[%s1 + $0x1d0] sm:$0xff]
      %v231 = vld [vmem:[%s1 + $0x1d8] sm:$0xff]
      %v232 = vld [vmem:[%s1 + $0x1e0] sm:$0xff]
      %v233 = vld [vmem:[%s1 + $0x1e8] sm:$0xff]
      %v234 = vld [vmem:[%s1 + $0x1f0] sm:$0xff]
      %v235 = vld [vmem:[%s1 + $0x1f8] sm:$0xff]
      %s236 = scalar_lea.vmem %s1, 512
      %v237 = vld [vmem:[%s236] sm:$0xff]
      %v238 = vld [vmem:[%s236 + $0x8] sm:$0xff]
      %v239 = vld [vmem:[%s236 + $0x10] sm:$0xff]
      %v240 = vld [vmem:[%s236 + $0x18] sm:$0xff]
      %v241 = vld [vmem:[%s236 + $0x20] sm:$0xff]
      %v242 = vld [vmem:[%s236 + $0x28] sm:$0xff]
      %v243 = vld [vmem:[%s236 + $0x30] sm:$0xff]
      %v244 = vld [vmem:[%s236 + $0x38] sm:$0xff]
      %v245 = vld [vmem:[%s236 + $0x40] sm:$0xff]
      %v246 = vld [vmem:[%s236 + $0x48] sm:$0xff]
      %v247 = vld [vmem:[%s236 + $0x50] sm:$0xff]
      %v248 = vld [vmem:[%s236 + $0x58] sm:$0xff]
      %v249 = vld [vmem:[%s236 + $0x60] sm:$0xff]
      %v250 = vld [vmem:[%s236 + $0x68] sm:$0xff]
      %v251 = vld [vmem:[%s236 + $0x70] sm:$0xff]
      %v252 = vld [vmem:[%s236 + $0x78] sm:$0xff]
      %v253 = vld [vmem:[%s236 + $0x80] sm:$0xff]
      %v254 = vld [vmem:[%s236 + $0x88] sm:$0xff]
      %v255 = vld [vmem:[%s236 + $0x90] sm:$0xff]
      %v256 = vld [vmem:[%s236 + $0x98] sm:$0xff]
      %v257 = vld [vmem:[%s236 + $0xa0] sm:$0xff]
      %v258 = vld [vmem:[%s236 + $0xa8] sm:$0xff]
      %v259 = vld [vmem:[%s236 + $0xb0] sm:$0xff]
      %v260 = vld [vmem:[%s236 + $0xb8] sm:$0xff]
      %v261 = vld [vmem:[%s236 + $0xc0] sm:$0xff]
      %v262 = vld [vmem:[%s236 + $0xc8] sm:$0xff]
      %v263 = vld [vmem:[%s236 + $0xd0] sm:$0xff]
      %v264 = vld [vmem:[%s236 + $0xd8] sm:$0xff]
      %v265 = vld [vmem:[%s236 + $0xe0] sm:$0xff]
      %v266 = vld [vmem:[%s236 + $0xe8] sm:$0xff]
      %v267 = vld [vmem:[%s236 + $0xf0] sm:$0xff]
      %v268 = vld [vmem:[%s236 + $0xf8] sm:$0xff]
      %v269 = vld [vmem:[%s236 + $0x100] sm:$0xff]
      %v270 = vld [vmem:[%s236 + $0x108] sm:$0xff]
      %v271 = vld [vmem:[%s236 + $0x110] sm:$0xff]
      %v272 = vld [vmem:[%s236 + $0x118] sm:$0xff]
      %v273 = vld [vmem:[%s236 + $0x120] sm:$0xff]
      %v274 = vld [vmem:[%s236 + $0x128] sm:$0xff]
      %v275 = vld [vmem:[%s236 + $0x130] sm:$0xff]
      %v276 = vld [vmem:[%s236 + $0x138] sm:$0xff]
      %v277 = vld [vmem:[%s236 + $0x140] sm:$0xff]
      %v278 = vld [vmem:[%s236 + $0x148] sm:$0xff]
      %v279 = vld [vmem:[%s236 + $0x150] sm:$0xff]
      %v280 = vld [vmem:[%s236 + $0x158] sm:$0xff]
      %v281 = vld [vmem:[%s236 + $0x160] sm:$0xff]
      %v282 = vld [vmem:[%s236 + $0x168] sm:$0xff]
      %v283 = vld [vmem:[%s236 + $0x170] sm:$0xff]
      %v284 = vld [vmem:[%s236 + $0x178] sm:$0xff]
      %v285 = vld [vmem:[%s236 + $0x180] sm:$0xff]
      %v286 = vld [vmem:[%s236 + $0x188] sm:$0xff]
      %v287 = vld [vmem:[%s236 + $0x190] sm:$0xff]
      %v288 = vld [vmem:[%s236 + $0x198] sm:$0xff]
      %v289 = vld [vmem:[%s236 + $0x1a0] sm:$0xff]
      %v290 = vld [vmem:[%s236 + $0x1a8] sm:$0xff]
      %v291 = vld [vmem:[%s236 + $0x1b0] sm:$0xff]
      %v292 = vld [vmem:[%s236 + $0x1b8] sm:$0xff]
      %v293 = vld [vmem:[%s236 + $0x1c0] sm:$0xff]
      %v294 = vld [vmem:[%s236 + $0x1c8] sm:$0xff]
      %v295 = vld [vmem:[%s236 + $0x1d0] sm:$0xff]
      %v296 = vld [vmem:[%s236 + $0x1d8] sm:$0xff]
      %v297 = vld [vmem:[%s236 + $0x1e0] sm:$0xff]
      %v298 = vld [vmem:[%s236 + $0x1e8] sm:$0xff]
      %v299 = vld [vmem:[%s236 + $0x1f0] sm:$0xff]
      %v300 = vld [vmem:[%s236 + $0x1f8] sm:$0xff]
      %v302 = vcombine.high %v171, %v171
      %v304 = vunpack.c.l.s4 1983009808
      %v305 = vunpack.c.0.s8 %v304
      %v306 = vlaneseq
      %v307 = vshrl.u32 %v306, 7
      %v308 = vsub.s32 %v305, %v307
      %v309 = vrot.slane %v171, %v308
      %v311 = vunpack.c.l.s4 1983009808
      %v312 = vunpack.c.0.s8 %v311
      %v313 = vlaneseq
      %v314 = vshrl.u32 %v313, 7
      %v315 = vsub.s32 %v312, %v314
      %v316 = vrot.slane %v302, %v315
      %v317 = vcombine.high %v309, %v309
      %v318 = vcombine.high %v316, %v316
      %v320 = vshrl.u32 %v309, 16
      %v322 = vshll.u32 %v309, 16
      %v324 = vrot.slane %v322, 1
      %v325 = vor.u32 %v320, %v324
      %v327 = vshrl.u32 %v317, 16
      %v329 = vshll.u32 %v317, 16
      %v331 = vrot.slane %v329, 1
      %v332 = vor.u32 %v327, %v331
      %v334 = vshrl.u32 %v316, 16
      %v336 = vshll.u32 %v316, 16
      %v338 = vrot.slane %v336, 1
      %v339 = vor.u32 %v334, %v338
      %v341 = vshrl.u32 %v318, 16
      %v343 = vshll.u32 %v318, 16
      %v345 = vrot.slane %v343, 1
      %v346 = vor.u32 %v341, %v345
      %v415 = vunpack.c.l.b16 %v237
      %v416 = vunpack.c.h.b16 %v237
      %v417 = vunpack.c.l.b16 %v238
      %v418 = vunpack.c.h.b16 %v238
      %v419 = vunpack.c.l.b16 %v239
      %v420 = vunpack.c.h.b16 %v239
      %v421 = vunpack.c.l.b16 %v240
      %v422 = vunpack.c.h.b16 %v240
      %v423 = vunpack.c.l.b16 %v241
      %v424 = vunpack.c.h.b16 %v241
      %v425 = vunpack.c.l.b16 %v242
      %v426 = vunpack.c.h.b16 %v242
      %v427 = vunpack.c.l.b16 %v243
      %v428 = vunpack.c.h.b16 %v243
      %v429 = vunpack.c.l.b16 %v244
      %v430 = vunpack.c.h.b16 %v244
      %v431 = vunpack.c.l.b16 %v245
      %v432 = vunpack.c.h.b16 %v245
      %v433 = vunpack.c.l.b16 %v246
      %v434 = vunpack.c.h.b16 %v246
      %v435 = vunpack.c.l.b16 %v247
      %v436 = vunpack.c.h.b16 %v247
      %v437 = vunpack.c.l.b16 %v248
      %v438 = vunpack.c.h.b16 %v248
      %v439 = vunpack.c.l.b16 %v249
      %v440 = vunpack.c.h.b16 %v249
      %v441 = vunpack.c.l.b16 %v250
      %v442 = vunpack.c.h.b16 %v250
      %v443 = vunpack.c.l.b16 %v251
      %v444 = vunpack.c.h.b16 %v251
      %v445 = vunpack.c.l.b16 %v252
      %v446 = vunpack.c.h.b16 %v252
      %v447 = vunpack.c.l.b16 %v253
      %v448 = vunpack.c.h.b16 %v253
      %v449 = vunpack.c.l.b16 %v254
      %v450 = vunpack.c.h.b16 %v254
      %v451 = vunpack.c.l.b16 %v255
      %v452 = vunpack.c.h.b16 %v255
      %v453 = vunpack.c.l.b16 %v256
      %v454 = vunpack.c.h.b16 %v256
      %v455 = vunpack.c.l.b16 %v257
      %v456 = vunpack.c.h.b16 %v257
      %v457 = vunpack.c.l.b16 %v258
      %v458 = vunpack.c.h.b16 %v258
      %v459 = vunpack.c.l.b16 %v259
      %v460 = vunpack.c.h.b16 %v259
      %v461 = vunpack.c.l.b16 %v260
      %v462 = vunpack.c.h.b16 %v260
      %v463 = vunpack.c.l.b16 %v261
      %v464 = vunpack.c.h.b16 %v261
      %v465 = vunpack.c.l.b16 %v262
      %v466 = vunpack.c.h.b16 %v262
      %v467 = vunpack.c.l.b16 %v263
      %v468 = vunpack.c.h.b16 %v263
      %v469 = vunpack.c.l.b16 %v264
      %v470 = vunpack.c.h.b16 %v264
      %v471 = vunpack.c.l.b16 %v265
      %v472 = vunpack.c.h.b16 %v265
      %v473 = vunpack.c.l.b16 %v266
      %v474 = vunpack.c.h.b16 %v266
      %v475 = vunpack.c.l.b16 %v267
      %v476 = vunpack.c.h.b16 %v267
      %v477 = vunpack.c.l.b16 %v268
      %v478 = vunpack.c.h.b16 %v268
      %v479 = vunpack.c.l.b16 %v269
      %v480 = vunpack.c.h.b16 %v269
      %v481 = vunpack.c.l.b16 %v270
      %v482 = vunpack.c.h.b16 %v270
      %v483 = vunpack.c.l.b16 %v271
      %v484 = vunpack.c.h.b16 %v271
      %v485 = vunpack.c.l.b16 %v272
      %v486 = vunpack.c.h.b16 %v272
      %v487 = vunpack.c.l.b16 %v273
      %v488 = vunpack.c.h.b16 %v273
      %v489 = vunpack.c.l.b16 %v274
      %v490 = vunpack.c.h.b16 %v274
      %v491 = vunpack.c.l.b16 %v275
      %v492 = vunpack.c.h.b16 %v275
      %v493 = vunpack.c.l.b16 %v276
      %v494 = vunpack.c.h.b16 %v276
      %v495 = vunpack.c.l.b16 %v277
      %v496 = vunpack.c.h.b16 %v277
      %v497 = vunpack.c.l.b16 %v278
      %v498 = vunpack.c.h.b16 %v278
      %v499 = vunpack.c.l.b16 %v279
      %v500 = vunpack.c.h.b16 %v279
      %v501 = vunpack.c.l.b16 %v280
      %v502 = vunpack.c.h.b16 %v280
      %v503 = vunpack.c.l.b16 %v281
      %v504 = vunpack.c.h.b16 %v281
      %v505 = vunpack.c.l.b16 %v282
      %v506 = vunpack.c.h.b16 %v282
      %v507 = vunpack.c.l.b16 %v283
      %v508 = vunpack.c.h.b16 %v283
      %v509 = vunpack.c.l.b16 %v284
      %v510 = vunpack.c.h.b16 %v284
      %v511 = vunpack.c.l.b16 %v285
      %v512 = vunpack.c.h.b16 %v285
      %v513 = vunpack.c.l.b16 %v286
      %v514 = vunpack.c.h.b16 %v286
      %v515 = vunpack.c.l.b16 %v287
      %v516 = vunpack.c.h.b16 %v287
      %v517 = vunpack.c.l.b16 %v288
      %v518 = vunpack.c.h.b16 %v288
      %v519 = vunpack.c.l.b16 %v289
      %v520 = vunpack.c.h.b16 %v289
      %v521 = vunpack.c.l.b16 %v290
      %v522 = vunpack.c.h.b16 %v290
      %v523 = vunpack.c.l.b16 %v291
      %v524 = vunpack.c.h.b16 %v291
      %v525 = vunpack.c.l.b16 %v292
      %v526 = vunpack.c.h.b16 %v292
      %v527 = vunpack.c.l.b16 %v293
      %v528 = vunpack.c.h.b16 %v293
      %v529 = vunpack.c.l.b16 %v294
      %v530 = vunpack.c.h.b16 %v294
      %v531 = vunpack.c.l.b16 %v295
      %v532 = vunpack.c.h.b16 %v295
      %v533 = vunpack.c.l.b16 %v296
      %v534 = vunpack.c.h.b16 %v296
      %v535 = vunpack.c.l.b16 %v297
      %v536 = vunpack.c.h.b16 %v297
      %v537 = vunpack.c.l.b16 %v298
      %v538 = vunpack.c.h.b16 %v298
      %v539 = vunpack.c.l.b16 %v299
      %v540 = vunpack.c.h.b16 %v299
      %v541 = vunpack.c.l.b16 %v300
      %v542 = vunpack.c.h.b16 %v300
      %v543 = vpack.c.b16 %v417, %v415
      %v544 = vpack.c.b16 %v418, %v416
      %v545 = vpack.c.b16 %v421, %v419
      %v546 = vpack.c.b16 %v422, %v420
      %v547 = vpack.c.b16 %v425, %v423
      %v548 = vpack.c.b16 %v426, %v424
      %v549 = vpack.c.b16 %v429, %v427
      %v550 = vpack.c.b16 %v430, %v428
      %v551 = vpack.c.b16 %v433, %v431
      %v552 = vpack.c.b16 %v434, %v432
      %v553 = vpack.c.b16 %v437, %v435
      %v554 = vpack.c.b16 %v438, %v436
      %v555 = vpack.c.b16 %v441, %v439
      %v556 = vpack.c.b16 %v442, %v440
      %v557 = vpack.c.b16 %v445, %v443
      %v558 = vpack.c.b16 %v446, %v444
      %v559 = vpack.c.b16 %v449, %v447
      %v560 = vpack.c.b16 %v450, %v448
      %v561 = vpack.c.b16 %v453, %v451
      %v562 = vpack.c.b16 %v454, %v452
      %v563 = vpack.c.b16 %v457, %v455
      %v564 = vpack.c.b16 %v458, %v456
      %v565 = vpack.c.b16 %v461, %v459
      %v566 = vpack.c.b16 %v462, %v460
      %v567 = vpack.c.b16 %v465, %v463
      %v568 = vpack.c.b16 %v466, %v464
      %v569 = vpack.c.b16 %v469, %v467
      %v570 = vpack.c.b16 %v470, %v468
      %v571 = vpack.c.b16 %v473, %v471
      %v572 = vpack.c.b16 %v474, %v472
      %v573 = vpack.c.b16 %v477, %v475
      %v574 = vpack.c.b16 %v478, %v476
      %v575 = vpack.c.b16 %v481, %v479
      %v576 = vpack.c.b16 %v482, %v480
      %v577 = vpack.c.b16 %v485, %v483
      %v578 = vpack.c.b16 %v486, %v484
      %v579 = vpack.c.b16 %v489, %v487
      %v580 = vpack.c.b16 %v490, %v488
      %v581 = vpack.c.b16 %v493, %v491
      %v582 = vpack.c.b16 %v494, %v492
      %v583 = vpack.c.b16 %v497, %v495
      %v584 = vpack.c.b16 %v498, %v496
      %v585 = vpack.c.b16 %v501, %v499
      %v586 = vpack.c.b16 %v502, %v500
      %v587 = vpack.c.b16 %v505, %v503
      %v588 = vpack.c.b16 %v506, %v504
      %v589 = vpack.c.b16 %v509, %v507
      %v590 = vpack.c.b16 %v510, %v508
      %v591 = vpack.c.b16 %v513, %v511
      %v592 = vpack.c.b16 %v514, %v512
      %v593 = vpack.c.b16 %v517, %v515
      %v594 = vpack.c.b16 %v518, %v516
      %v595 = vpack.c.b16 %v521, %v519
      %v596 = vpack.c.b16 %v522, %v520
      %v597 = vpack.c.b16 %v525, %v523
      %v598 = vpack.c.b16 %v526, %v524
      %v599 = vpack.c.b16 %v529, %v527
      %v600 = vpack.c.b16 %v530, %v528
      %v601 = vpack.c.b16 %v533, %v531
      %v602 = vpack.c.b16 %v534, %v532
      %v603 = vpack.c.b16 %v537, %v535
      %v604 = vpack.c.b16 %v538, %v536
      %v605 = vpack.c.b16 %v541, %v539
      %v606 = vpack.c.b16 %v542, %v540
      %671 = vmatprep.subr.bf16.mxu0 %v544
      %672 = vmatpush1.bf16.msra.mxu0 %v543
      %673 = vmatprep.subr.bf16.mxu0 %v546
      %674 = vmatpush1.bf16.msra.mxu0 %v545
      %675 = vmatprep.subr.bf16.mxu0 %v548
      %676 = vmatpush1.bf16.msra.mxu0 %v547
      %677 = vmatprep.subr.bf16.mxu0 %v550
      %678 = vmatpush1.bf16.msra.mxu0 %v549
      %679 = vmatprep.subr.bf16.mxu0 %v552
      %680 = vmatpush1.bf16.msra.mxu0 %v551
      %681 = vmatprep.subr.bf16.mxu0 %v554
      %682 = vmatpush1.bf16.msra.mxu0 %v553
      %683 = vmatprep.subr.bf16.mxu0 %v556
      %684 = vmatpush1.bf16.msra.mxu0 %v555
      %685 = vmatprep.subr.bf16.mxu0 %v558
      %686 = vmatpush1.bf16.msra.mxu0 %v557
      %687 = vmatprep.subr.bf16.mxu0 %v560
      %688 = vmatpush1.bf16.msra.mxu0 %v559
      %689 = vmatprep.subr.bf16.mxu0 %v562
      %690 = vmatpush1.bf16.msra.mxu0 %v561
      %691 = vmatprep.subr.bf16.mxu0 %v564
      %692 = vmatpush1.bf16.msra.mxu0 %v563
      %693 = vmatprep.subr.bf16.mxu0 %v566
      %694 = vmatpush1.bf16.msra.mxu0 %v565
      %695 = vmatprep.subr.bf16.mxu0 %v568
      %696 = vmatpush1.bf16.msra.mxu0 %v567
      %697 = vmatprep.subr.bf16.mxu0 %v570
      %698 = vmatpush1.bf16.msra.mxu0 %v569
      %699 = vmatprep.subr.bf16.mxu0 %v572
      %700 = vmatpush1.bf16.msra.mxu0 %v571
      %701 = vmatprep.subr.bf16.mxu0 %v574
      %702 = vmatpush1.bf16.msra.mxu0 %v573
      %703 = vmatprep.mubr.bf16.mxu0 %v332
      %704 = vmatmul.mubr.bf16.gmra.mrb[0].mxu0 %v325
      %v705 = vpop.f32.mrb[0].mxu0
      %v706 = vadd.f32 0.0, %v705
      %v707 = vpop.f32.mrb[0].mxu0
      %v708 = vadd.f32 0.0, %v707
      %v709 = vpop.f32.mrb[0].mxu0
      %v710 = vpop.f32.mrb[0].mxu0
      %711 = vdwg.mxu0
      %712 = vmatprep.subr.bf16.mxu0 %v576
      %713 = vmatpush1.bf16.msra.mxu0 %v575
      %714 = vmatprep.subr.bf16.mxu0 %v578
      %715 = vmatpush1.bf16.msra.mxu0 %v577
      %716 = vmatprep.subr.bf16.mxu0 %v580
      %717 = vmatpush1.bf16.msra.mxu0 %v579
      %718 = vmatprep.subr.bf16.mxu0 %v582
      %719 = vmatpush1.bf16.msra.mxu0 %v581
      %720 = vmatprep.subr.bf16.mxu0 %v584
      %721 = vmatpush1.bf16.msra.mxu0 %v583
      %722 = vmatprep.subr.bf16.mxu0 %v586
      %723 = vmatpush1.bf16.msra.mxu0 %v585
      %724 = vmatprep.subr.bf16.mxu0 %v588
      %725 = vmatpush1.bf16.msra.mxu0 %v587
      %726 = vmatprep.subr.bf16.mxu0 %v590
      %727 = vmatpush1.bf16.msra.mxu0 %v589
      %728 = vmatprep.subr.bf16.mxu0 %v592
      %729 = vmatpush1.bf16.msra.mxu0 %v591
      %730 = vmatprep.subr.bf16.mxu0 %v594
      %731 = vmatpush1.bf16.msra.mxu0 %v593
      %732 = vmatprep.subr.bf16.mxu0 %v596
      %733 = vmatpush1.bf16.msra.mxu0 %v595
      %734 = vmatprep.subr.bf16.mxu0 %v598
      %735 = vmatpush1.bf16.msra.mxu0 %v597
      %736 = vmatprep.subr.bf16.mxu0 %v600
      %737 = vmatpush1.bf16.msra.mxu0 %v599
      %738 = vmatprep.subr.bf16.mxu0 %v602
      %739 = vmatpush1.bf16.msra.mxu0 %v601
      %740 = vmatprep.subr.bf16.mxu0 %v604
      %741 = vmatpush1.bf16.msra.mxu0 %v603
      %742 = vmatprep.subr.bf16.mxu0 %v606
      %743 = vmatpush1.bf16.msra.mxu0 %v605
      %744 = vmatprep.mubr.bf16.mxu0 %v346
      %745 = vmatmul.mubr.bf16.gmra.mrb[0].mxu0 %v339
      %v746 = vpop.f32.mrb[0].mxu0
      %v747 = vadd.f32 %v706, %v746
      %v748 = vpop.f32.mrb[0].mxu0
      %v749 = vadd.f32 %v708, %v748
      %v750 = vpop.f32.mrb[0].mxu0
      %v751 = vpop.f32.mrb[0].mxu0
      %752 = vdwg.mxu0
      %v821 = vunpack.c.l.b16 %v172
      %v822 = vunpack.c.h.b16 %v172
      %v823 = vunpack.c.l.b16 %v173
      %v824 = vunpack.c.h.b16 %v173
      %v825 = vunpack.c.l.b16 %v174
      %v826 = vunpack.c.h.b16 %v174
      %v827 = vunpack.c.l.b16 %v175
      %v828 = vunpack.c.h.b16 %v175
      %v829 = vunpack.c.l.b16 %v176
      %v830 = vunpack.c.h.b16 %v176
      %v831 = vunpack.c.l.b16 %v177
      %v832 = vunpack.c.h.b16 %v177
      %v833 = vunpack.c.l.b16 %v178
      %v834 = vunpack.c.h.b16 %v178
      %v835 = vunpack.c.l.b16 %v179
      %v836 = vunpack.c.h.b16 %v179
      %v837 = vunpack.c.l.b16 %v180
      %v838 = vunpack.c.h.b16 %v180
      %v839 = vunpack.c.l.b16 %v181
      %v840 = vunpack.c.h.b16 %v181
      %v841 = vunpack.c.l.b16 %v182
      %v842 = vunpack.c.h.b16 %v182
      %v843 = vunpack.c.l.b16 %v183
      %v844 = vunpack.c.h.b16 %v183
      %v845 = vunpack.c.l.b16 %v184
      %v846 = vunpack.c.h.b16 %v184
      %v847 = vunpack.c.l.b16 %v185
      %v848 = vunpack.c.h.b16 %v185
      %v849 = vunpack.c.l.b16 %v186
      %v850 = vunpack.c.h.b16 %v186
      %v851 = vunpack.c.l.b16 %v187
      %v852 = vunpack.c.h.b16 %v187
      %v853 = vunpack.c.l.b16 %v188
      %v854 = vunpack.c.h.b16 %v188
      %v855 = vunpack.c.l.b16 %v189
      %v856 = vunpack.c.h.b16 %v189
      %v857 = vunpack.c.l.b16 %v190
      %v858 = vunpack.c.h.b16 %v190
      %v859 = vunpack.c.l.b16 %v191
      %v860 = vunpack.c.h.b16 %v191
      %v861 = vunpack.c.l.b16 %v192
      %v862 = vunpack.c.h.b16 %v192
      %v863 = vunpack.c.l.b16 %v193
      %v864 = vunpack.c.h.b16 %v193
      %v865 = vunpack.c.l.b16 %v194
      %v866 = vunpack.c.h.b16 %v194
      %v867 = vunpack.c.l.b16 %v195
      %v868 = vunpack.c.h.b16 %v195
      %v869 = vunpack.c.l.b16 %v196
      %v870 = vunpack.c.h.b16 %v196
      %v871 = vunpack.c.l.b16 %v197
      %v872 = vunpack.c.h.b16 %v197
      %v873 = vunpack.c.l.b16 %v198
      %v874 = vunpack.c.h.b16 %v198
      %v875 = vunpack.c.l.b16 %v199
      %v876 = vunpack.c.h.b16 %v199
      %v877 = vunpack.c.l.b16 %v200
      %v878 = vunpack.c.h.b16 %v200
      %v879 = vunpack.c.l.b16 %v201
      %v880 = vunpack.c.h.b16 %v201
      %v881 = vunpack.c.l.b16 %v202
      %v882 = vunpack.c.h.b16 %v202
      %v883 = vunpack.c.l.b16 %v203
      %v884 = vunpack.c.h.b16 %v203
      %v885 = vunpack.c.l.b16 %v204
      %v886 = vunpack.c.h.b16 %v204
      %v887 = vunpack.c.l.b16 %v205
      %v888 = vunpack.c.h.b16 %v205
      %v889 = vunpack.c.l.b16 %v206
      %v890 = vunpack.c.h.b16 %v206
      %v891 = vunpack.c.l.b16 %v207
      %v892 = vunpack.c.h.b16 %v207
      %v893 = vunpack.c.l.b16 %v208
      %v894 = vunpack.c.h.b16 %v208
      %v895 = vunpack.c.l.b16 %v209
      %v896 = vunpack.c.h.b16 %v209
      %v897 = vunpack.c.l.b16 %v210
      %v898 = vunpack.c.h.b16 %v210
      %v899 = vunpack.c.l.b16 %v211
      %v900 = vunpack.c.h.b16 %v211
      %v901 = vunpack.c.l.b16 %v212
      %v902 = vunpack.c.h.b16 %v212
      %v903 = vunpack.c.l.b16 %v213
      %v904 = vunpack.c.h.b16 %v213
      %v905 = vunpack.c.l.b16 %v214
      %v906 = vunpack.c.h.b16 %v214
      %v907 = vunpack.c.l.b16 %v215
      %v908 = vunpack.c.h.b16 %v215
      %v909 = vunpack.c.l.b16 %v216
      %v910 = vunpack.c.h.b16 %v216
      %v911 = vunpack.c.l.b16 %v217
      %v912 = vunpack.c.h.b16 %v217
      %v913 = vunpack.c.l.b16 %v218
      %v914 = vunpack.c.h.b16 %v218
      %v915 = vunpack.c.l.b16 %v219
      %v916 = vunpack.c.h.b16 %v219
      %v917 = vunpack.c.l.b16 %v220
      %v918 = vunpack.c.h.b16 %v220
      %v919 = vunpack.c.l.b16 %v221
      %v920 = vunpack.c.h.b16 %v221
      %v921 = vunpack.c.l.b16 %v222
      %v922 = vunpack.c.h.b16 %v222
      %v923 = vunpack.c.l.b16 %v223
      %v924 = vunpack.c.h.b16 %v223
      %v925 = vunpack.c.l.b16 %v224
      %v926 = vunpack.c.h.b16 %v224
      %v927 = vunpack.c.l.b16 %v225
      %v928 = vunpack.c.h.b16 %v225
      %v929 = vunpack.c.l.b16 %v226
      %v930 = vunpack.c.h.b16 %v226
      %v931 = vunpack.c.l.b16 %v227
      %v932 = vunpack.c.h.b16 %v227
      %v933 = vunpack.c.l.b16 %v228
      %v934 = vunpack.c.h.b16 %v228
      %v935 = vunpack.c.l.b16 %v229
      %v936 = vunpack.c.h.b16 %v229
      %v937 = vunpack.c.l.b16 %v230
      %v938 = vunpack.c.h.b16 %v230
      %v939 = vunpack.c.l.b16 %v231
      %v940 = vunpack.c.h.b16 %v231
      %v941 = vunpack.c.l.b16 %v232
      %v942 = vunpack.c.h.b16 %v232
      %v943 = vunpack.c.l.b16 %v233
      %v944 = vunpack.c.h.b16 %v233
      %v945 = vunpack.c.l.b16 %v234
      %v946 = vunpack.c.h.b16 %v234
      %v947 = vunpack.c.l.b16 %v235
      %v948 = vunpack.c.h.b16 %v235
      %v949 = vpack.c.b16 %v823, %v821
      %v950 = vpack.c.b16 %v824, %v822
      %v951 = vpack.c.b16 %v827, %v825
      %v952 = vpack.c.b16 %v828, %v826
      %v953 = vpack.c.b16 %v831, %v829
      %v954 = vpack.c.b16 %v832, %v830
      %v955 = vpack.c.b16 %v835, %v833
      %v956 = vpack.c.b16 %v836, %v834
      %v957 = vpack.c.b16 %v839, %v837
      %v958 = vpack.c.b16 %v840, %v838
      %v959 = vpack.c.b16 %v843, %v841
      %v960 = vpack.c.b16 %v844, %v842
      %v961 = vpack.c.b16 %v847, %v845
      %v962 = vpack.c.b16 %v848, %v846
      %v963 = vpack.c.b16 %v851, %v849
      %v964 = vpack.c.b16 %v852, %v850
      %v965 = vpack.c.b16 %v855, %v853
      %v966 = vpack.c.b16 %v856, %v854
      %v967 = vpack.c.b16 %v859, %v857
      %v968 = vpack.c.b16 %v860, %v858
      %v969 = vpack.c.b16 %v863, %v861
      %v970 = vpack.c.b16 %v864, %v862
      %v971 = vpack.c.b16 %v867, %v865
      %v972 = vpack.c.b16 %v868, %v866
      %v973 = vpack.c.b16 %v871, %v869
      %v974 = vpack.c.b16 %v872, %v870
      %v975 = vpack.c.b16 %v875, %v873
      %v976 = vpack.c.b16 %v876, %v874
      %v977 = vpack.c.b16 %v879, %v877
      %v978 = vpack.c.b16 %v880, %v878
      %v979 = vpack.c.b16 %v883, %v881
      %v980 = vpack.c.b16 %v884, %v882
      %v981 = vpack.c.b16 %v887, %v885
      %v982 = vpack.c.b16 %v888, %v886
      %v983 = vpack.c.b16 %v891, %v889
      %v984 = vpack.c.b16 %v892, %v890
      %v985 = vpack.c.b16 %v895, %v893
      %v986 = vpack.c.b16 %v896, %v894
      %v987 = vpack.c.b16 %v899, %v897
      %v988 = vpack.c.b16 %v900, %v898
      %v989 = vpack.c.b16 %v903, %v901
      %v990 = vpack.c.b16 %v904, %v902
      %v991 = vpack.c.b16 %v907, %v905
      %v992 = vpack.c.b16 %v908, %v906
      %v993 = vpack.c.b16 %v911, %v909
      %v994 = vpack.c.b16 %v912, %v910
      %v995 = vpack.c.b16 %v915, %v913
      %v996 = vpack.c.b16 %v916, %v914
      %v997 = vpack.c.b16 %v919, %v917
      %v998 = vpack.c.b16 %v920, %v918
      %v999 = vpack.c.b16 %v923, %v921
      %v1000 = vpack.c.b16 %v924, %v922
      %v1001 = vpack.c.b16 %v927, %v925
      %v1002 = vpack.c.b16 %v928, %v926
      %v1003 = vpack.c.b16 %v931, %v929
      %v1004 = vpack.c.b16 %v932, %v930
      %v1005 = vpack.c.b16 %v935, %v933
      %v1006 = vpack.c.b16 %v936, %v934
      %v1007 = vpack.c.b16 %v939, %v937
      %v1008 = vpack.c.b16 %v940, %v938
      %v1009 = vpack.c.b16 %v943, %v941
      %v1010 = vpack.c.b16 %v944, %v942
      %v1011 = vpack.c.b16 %v947, %v945
      %v1012 = vpack.c.b16 %v948, %v946
      %1077 = vmatprep.subr.bf16.mxu0 %v950
      %1078 = vmatpush1.bf16.msra.mxu0 %v949
      %1079 = vmatprep.subr.bf16.mxu0 %v952
      %1080 = vmatpush1.bf16.msra.mxu0 %v951
      %1081 = vmatprep.subr.bf16.mxu0 %v954
      %1082 = vmatpush1.bf16.msra.mxu0 %v953
      %1083 = vmatprep.subr.bf16.mxu0 %v956
      %1084 = vmatpush1.bf16.msra.mxu0 %v955
      %1085 = vmatprep.subr.bf16.mxu0 %v958
      %1086 = vmatpush1.bf16.msra.mxu0 %v957
      %1087 = vmatprep.subr.bf16.mxu0 %v960
      %1088 = vmatpush1.bf16.msra.mxu0 %v959
      %1089 = vmatprep.subr.bf16.mxu0 %v962
      %1090 = vmatpush1.bf16.msra.mxu0 %v961
      %1091 = vmatprep.subr.bf16.mxu0 %v964
      %1092 = vmatpush1.bf16.msra.mxu0 %v963
      %1093 = vmatprep.subr.bf16.mxu0 %v966
      %1094 = vmatpush1.bf16.msra.mxu0 %v965
      %1095 = vmatprep.subr.bf16.mxu0 %v968
      %1096 = vmatpush1.bf16.msra.mxu0 %v967
      %1097 = vmatprep.subr.bf16.mxu0 %v970
      %1098 = vmatpush1.bf16.msra.mxu0 %v969
      %1099 = vmatprep.subr.bf16.mxu0 %v972
      %1100 = vmatpush1.bf16.msra.mxu0 %v971
      %1101 = vmatprep.subr.bf16.mxu0 %v974
      %1102 = vmatpush1.bf16.msra.mxu0 %v973
      %1103 = vmatprep.subr.bf16.mxu0 %v976
      %1104 = vmatpush1.bf16.msra.mxu0 %v975
      %1105 = vmatprep.subr.bf16.mxu0 %v978
      %1106 = vmatpush1.bf16.msra.mxu0 %v977
      %1107 = vmatprep.subr.bf16.mxu0 %v980
      %1108 = vmatpush1.bf16.msra.mxu0 %v979
      %1109 = vmatprep.mubr.bf16.mxu0 %v317
      %1110 = vmatmul.mubr.bf16.gmra.mrb[0].mxu0 %v309
      %v1111 = vpop.f32.mrb[0].mxu0
      %v1112 = vadd.f32 %v747, %v1111
      %v1113 = vpop.f32.mrb[0].mxu0
      %v1114 = vadd.f32 %v749, %v1113
      %v1115 = vpop.f32.mrb[0].mxu0
      %v1116 = vpop.f32.mrb[0].mxu0
      %1117 = vdwg.mxu0
      %1118 = vmatprep.subr.bf16.mxu0 %v982
      %1119 = vmatpush1.bf16.msra.mxu0 %v981
      %1120 = vmatprep.subr.bf16.mxu0 %v984
      %1121 = vmatpush1.bf16.msra.mxu0 %v983
      %1122 = vmatprep.subr.bf16.mxu0 %v986
      %1123 = vmatpush1.bf16.msra.mxu0 %v985
      %1124 = vmatprep.subr.bf16.mxu0 %v988
      %1125 = vmatpush1.bf16.msra.mxu0 %v987
      %1126 = vmatprep.subr.bf16.mxu0 %v990
      %1127 = vmatpush1.bf16.msra.mxu0 %v989
      %1128 = vmatprep.subr.bf16.mxu0 %v992
      %1129 = vmatpush1.bf16.msra.mxu0 %v991
      %1130 = vmatprep.subr.bf16.mxu0 %v994
      %1131 = vmatpush1.bf16.msra.mxu0 %v993
      %1132 = vmatprep.subr.bf16.mxu0 %v996
      %1133 = vmatpush1.bf16.msra.mxu0 %v995
      %1134 = vmatprep.subr.bf16.mxu0 %v998
      %1135 = vmatpush1.bf16.msra.mxu0 %v997
      %1136 = vmatprep.subr.bf16.mxu0 %v1000
      %1137 = vmatpush1.bf16.msra.mxu0 %v999
      %1138 = vmatprep.subr.bf16.mxu0 %v1002
      %1139 = vmatpush1.bf16.msra.mxu0 %v1001
      %1140 = vmatprep.subr.bf16.mxu0 %v1004
      %1141 = vmatpush1.bf16.msra.mxu0 %v1003
      %1142 = vmatprep.subr.bf16.mxu0 %v1006
      %1143 = vmatpush1.bf16.msra.mxu0 %v1005
      %1144 = vmatprep.subr.bf16.mxu0 %v1008
      %1145 = vmatpush1.bf16.msra.mxu0 %v1007
      %1146 = vmatprep.subr.bf16.mxu0 %v1010
      %1147 = vmatpush1.bf16.msra.mxu0 %v1009
      %1148 = vmatprep.subr.bf16.mxu0 %v1012
      %1149 = vmatpush1.bf16.msra.mxu0 %v1011
      %1150 = vmatprep.mubr.bf16.mxu0 %v318
      %1151 = vmatmul.mubr.bf16.gmra.mrb[0].mxu0 %v316
      %v1152 = vpop.f32.mrb[0].mxu0
      %v1153 = vadd.f32 %v1112, %v1152
      %v1154 = vpop.f32.mrb[0].mxu0
      %v1155 = vadd.f32 %v1114, %v1154
      %v1156 = vpop.f32.mrb[0].mxu0
      %v1157 = vpop.f32.mrb[0].mxu0
      %1158 = vdwg.mxu0
      %v1159 = vld [vmem:[%s2] sm:$0x3]
      %v1161 = vlaneseq
      %v1162 = vshrl.u32 %v1161, 7
      %v1163 = vsub.s32 0, %v1162
      %v1164 = vrot.slane %v1159, %v1163
      %v1165 = vlaneseq
      %v1166 = vshrl.u32 %v1165, 7
      %v1167 = vsub.s32 1, %v1166
      %v1168 = vrot.slane %v1159, %v1167
      %v1171 = vadd.f32 %v1153, %v1164
      %v1172 = vadd.f32 %v1155, %v1168
      %v1173 = vmax.f32 %v1171, 0.0
      %v1174 = vmax.f32 %v1172, 0.0
      %v1175 = vpack.c.bf16 %v1173, %v1173
      %v1176 = vpack.c.bf16 %v1174, %v1174
      %v1179 = vcombine.low %v1175, %v1176
      %v1181 = vunpack.c.l.s4 1983009808
      %v1182 = vunpack.c.0.s8 %v1181
      %v1183 = vlaneseq
      %v1184 = vshrl.u32 %v1183, 7
      %v1185 = vsub.s32 %v1182, %v1184
      %v1186 = vrot.slane %v1179, %v1185
      %vm1188 = vcmask 1041408
      %vm1189 = vsmask.f32 1280
      %vm1190 = vmand %vm1188, %vm1189
      %vm1191 = vcmask 519170
      %vm1192 = vsmask.f32 3328
      %vm1193 = vmand %vm1191, %vm1192
      %vm1194 = vmor %vm1193, %vm1190
      %v1195 = vld [vmem:[%s170] sm:$0xf]
      %v1196 = vsel %vm1194, %v1186, %v1195
      %1197 = vst [vmem:[%s170] sm:$0xf] %v1196
      %p1198 = scmp.lt.s32.totalorder %s14, 1
      %s1199 = scalar_select %p1198, %s14, 1
      %s1200 = smul.addr %s1199, 2
      %s1201 = smul.addr %s1200, 2
      %s1202 = scalar_lea.vmem %s3, %s1201
      // Predicated region
      $region33: #{dqn_forward.5} parent=31 // pred_check
        %p1203 = pneg %p100
      $region34: #{dqn_forward.5} parent=31 // pred_check_branch
        %1205 = sbr.rel (%p1203) target = $region36
      $region35: #{dqn_forward.5} parent=31 // pred_region
        _
      $region36: #{dqn_forward.5} parent=31 // pred_fallthru
        _
    $region32: #{dqn_forward.5} parent=5 // pred_fallthru
      _
    %p1206 = scmp.le.s32.totalorder 2, %s9
    // Predicated region
    $region37: #{dqn_forward.5} parent=5 // pred_check
      %p1207 = pneg %p1206
    $region38: #{dqn_forward.5} parent=5 // pred_check_branch
      %1209 = sbr.rel (%p1207) target = $region40
    $region39: #{dqn_forward.5} parent=5 // pred_region
      %s1210 = ssub.s32 %s9, 2
      // Predicated region
      $region41: #{dqn_forward.5} parent=39 // pred_check
        %p1211 = pneg %p106
      $region42: #{dqn_forward.5} parent=39 // pred_check_branch
        %1213 = sbr.rel (%p1211) target = $region44
      $region43: #{dqn_forward.5} parent=39 // pred_region
        %p1214 = scmp.lt.s32.totalorder %s15, 1
        %s1215 = scalar_select %p1214, %s15, 1
        %s1216 = smul.addr %s1215, 2
        %s1217 = smul.addr %s1216, 2
        %s1218 = scalar_lea.vmem %s3, %s1217
      $region44: #{dqn_forward.5} parent=39 // pred_fallthru
        _
    $region40: #{dqn_forward.5} parent=5 // pred_fallthru
      _
  $region6: #{dqn_forward.5} parent=0 // loop_footer
    %s13 = sadd.s32 1, %s9
  $region7: #{dqn_forward.5} parent=0 // loop_footer_branch
    %8 = sbr.rel target = $region3
  $region8: #{dqn_forward.5} parent=0 // loop_exit
    _

// kernel: dqn_forward.7
$region0: #{dqn_forward.7}
  #allocation0 [shape = 'u32[]', space=smem, size = 0x4, offset = 0x4, fixed_abs, tag = 'smem constant byte address 0x4 - core index']
  #allocation1 [shape = 'u32[144,128]{1,0:T(1,128)}', space=vmem, size = 0x12000, scoped, tag = 'internal scratch']
  #allocation2 [shape = 'bf16[2,512]{1,0:T(2,128)(2,1)}', space=vmem, size = 0x800, scoped, tag = 'scratch operand']
  %s0 = inlined_call_operand.vmem [shape: bf16[2,64], index: 0, kind: input, shape index: {}]
  %s1 = inlined_call_operand.vmem [shape: bf16[64,512], index: 1, kind: input, shape index: {}]
  %s2 = inlined_call_operand.vmem [shape: f32[1,512], index: 2, kind: input, shape index: {}]
  %s3 = inlined_call_operand.vmem [shape: bf16[512,6], index: 3, kind: input, shape index: {}]
  %s4 = inlined_call_operand.vmem [shape: f32[1,6], index: 4, kind: input, shape index: {}]
  %s5 = inlined_call_operand.hbm [shape: f32[2,6], index: 5, kind: output, shape index: {}]
  %s6 = sld [smem:[#allocation0]]
  $region30: #{dqn_forward.7} parent=0
    _
  %s8 = ssub.s32 1, %s6
  %s9 = scalar_select 0, %s8, %s6
  $region1: #{dqn_forward.7} parent=0
    #allocation3 [shape = 'u8[1024]{0}', space=vmem, size = 0x400, scoped, tag = 'output window, operand 0, single buffered']
    #allocation4 [shape = 's32[1]{0}', space=sflag, size = 0x4, scoped, tag = 'scoped memory for dqn_forward.7']
    %10 = vsyncpa [#allocation4], 0
    // Predicated region
    $region2: #{dqn_forward.7} parent=1 // pred_check
      _
    $region3: #{dqn_forward.7} parent=1 // pred_check_branch
      %12 = sbr.rel (0) target = $region5
    $region4: #{dqn_forward.7} parent=1 // pred_region
      _
    $region5: #{dqn_forward.7} parent=1 // pred_fallthru
      _
    // Predicated region
    $region6: #{dqn_forward.7} parent=1 // pred_check
      _
    $region7: #{dqn_forward.7} parent=1 // pred_check_branch
      %14 = sbr.rel (0) target = $region9
    $region8: #{dqn_forward.7} parent=1 // pred_region
      _
    $region9: #{dqn_forward.7} parent=1 // pred_fallthru
      _
    // Predicated region
    $region10: #{dqn_forward.7} parent=1 // pred_check
      _
    $region11: #{dqn_forward.7} parent=1 // pred_check_branch
      %16 = sbr.rel (0) target = $region13
    $region12: #{dqn_forward.7} parent=1 // pred_region
      _
    $region13: #{dqn_forward.7} parent=1 // pred_fallthru
      _
    // Predicated region
    $region14: #{dqn_forward.7} parent=1 // pred_check
      _
    $region15: #{dqn_forward.7} parent=1 // pred_check_branch
      %18 = sbr.rel (0) target = $region17
    $region16: #{dqn_forward.7} parent=1 // pred_region
      _
    $region17: #{dqn_forward.7} parent=1 // pred_fallthru
      _
    // Predicated region
    $region18: #{dqn_forward.7} parent=1 // pred_check
      _
    $region19: #{dqn_forward.7} parent=1 // pred_check_branch
      %20 = sbr.rel (0) target = $region21
    $region20: #{dqn_forward.7} parent=1 // pred_region
      _
    $region21: #{dqn_forward.7} parent=1 // pred_fallthru
      _
    %v22 = vld [vmem:[%s0] sm:$0x1]
    %v23 = vld [vmem:[%s1] sm:$0xff]
    %v24 = vld [vmem:[%s1 + $0x8] sm:$0xff]
    %v25 = vld [vmem:[%s1 + $0x10] sm:$0xff]
    %v26 = vld [vmem:[%s1 + $0x18] sm:$0xff]
    %v27 = vld [vmem:[%s1 + $0x20] sm:$0xff]
    %v28 = vld [vmem:[%s1 + $0x28] sm:$0xff]
    %v29 = vld [vmem:[%s1 + $0x30] sm:$0xff]
    %v30 = vld [vmem:[%s1 + $0x38] sm:$0xff]
    %v31 = vld [vmem:[%s1 + $0x40] sm:$0xff]
    %v32 = vld [vmem:[%s1 + $0x48] sm:$0xff]
    %v33 = vld [vmem:[%s1 + $0x50] sm:$0xff]
    %v34 = vld [vmem:[%s1 + $0x58] sm:$0xff]
    %v35 = vld [vmem:[%s1 + $0x60] sm:$0xff]
    %v36 = vld [vmem:[%s1 + $0x68] sm:$0xff]
    %v37 = vld [vmem:[%s1 + $0x70] sm:$0xff]
    %v38 = vld [vmem:[%s1 + $0x78] sm:$0xff]
    %v39 = vld [vmem:[%s2] sm:$0xf]
    %v41 = vlaneseq
    %v42 = vshrl.u32 %v41, 7
    %v43 = vsub.s32 0, %v42
    %v44 = vrot.slane %v39, %v43
    %v45 = vlaneseq
    %v46 = vshrl.u32 %v45, 7
    %v47 = vsub.s32 1, %v46
    %v48 = vrot.slane %v39, %v47
    %v49 = vlaneseq
    %v50 = vshrl.u32 %v49, 7
    %v51 = vsub.s32 2, %v50
    %v52 = vrot.slane %v39, %v51
    %v53 = vlaneseq
    %v54 = vshrl.u32 %v53, 7
    %v55 = vsub.s32 3, %v54
    %v56 = vrot.slane %v39, %v55
    %v77 = vunpack.c.l.b16 %v23
    %v78 = vunpack.c.h.b16 %v23
    %v79 = vunpack.c.l.b16 %v24
    %v80 = vunpack.c.h.b16 %v24
    %v81 = vunpack.c.l.b16 %v25
    %v82 = vunpack.c.h.b16 %v25
    %v83 = vunpack.c.l.b16 %v26
    %v84 = vunpack.c.h.b16 %v26
    %v85 = vunpack.c.l.b16 %v27
    %v86 = vunpack.c.h.b16 %v27
    %v87 = vunpack.c.l.b16 %v28
    %v88 = vunpack.c.h.b16 %v28
    %v89 = vunpack.c.l.b16 %v29
    %v90 = vunpack.c.h.b16 %v29
    %v91 = vunpack.c.l.b16 %v30
    %v92 = vunpack.c.h.b16 %v30
    %v93 = vunpack.c.l.b16 %v31
    %v94 = vunpack.c.h.b16 %v31
    %v95 = vunpack.c.l.b16 %v32
    %v96 = vunpack.c.h.b16 %v32
    %v97 = vunpack.c.l.b16 %v33
    %v98 = vunpack.c.h.b16 %v33
    %v99 = vunpack.c.l.b16 %v34
    %v100 = vunpack.c.h.b16 %v34
    %v101 = vunpack.c.l.b16 %v35
    %v102 = vunpack.c.h.b16 %v35
    %v103 = vunpack.c.l.b16 %v36
    %v104 = vunpack.c.h.b16 %v36
    %v105 = vunpack.c.l.b16 %v37
    %v106 = vunpack.c.h.b16 %v37
    %v107 = vunpack.c.l.b16 %v38
    %v108 = vunpack.c.h.b16 %v38
    %v109 = vpack.c.b16 %v81, %v77
    %v110 = vpack.c.b16 %v82, %v78
    %v111 = vpack.c.b16 %v83, %v79
    %v112 = vpack.c.b16 %v84, %v80
    %v113 = vpack.c.b16 %v89, %v85
    %v114 = vpack.c.b16 %v90, %v86
    %v115 = vpack.c.b16 %v91, %v87
    %v116 = vpack.c.b16 %v92, %v88
    %v117 = vpack.c.b16 %v97, %v93
    %v118 = vpack.c.b16 %v98, %v94
    %v119 = vpack.c.b16 %v99, %v95
    %v120 = vpack.c.b16 %v100, %v96
    %v121 = vpack.c.b16 %v105, %v101
    %v122 = vpack.c.b16 %v106, %v102
    %v123 = vpack.c.b16 %v107, %v103
    %v124 = vpack.c.b16 %v108, %v104
    %vm141 = vcmask 523264
    %v143 = vsel %vm141, %v22, 0
    %145 = vmatprep.subr.bf16.mxu0 %v110
    %146 = vmatpush1.bf16.msra.mxu0 %v109
    %147 = vmatprep.subr.bf16.mxu0 %v114
    %148 = vmatpush1.bf16.msra.mxu0 %v113
    %149 = vmatprep.subr.bf16.mxu0 %v118
    %150 = vmatpush1.bf16.msra.mxu0 %v117
    %151 = vmatprep.subr.bf16.mxu0 %v122
    %152 = vmatpush1.bf16.msra.mxu0 %v121
    %153 = vmatprep.subr.bf16.mxu0 0
    %154 = vmatpush1.bf16.msra.mxu0 0
    %155 = vmatprep.subr.bf16.mxu0 0
    %156 = vmatpush1.bf16.msra.mxu0 0
    %157 = vmatprep.subr.bf16.mxu0 0
    %158 = vmatpush1.bf16.msra.mxu0 0
    %159 = vmatprep.subr.bf16.mxu0 0
    %160 = vmatpush1.bf16.msra.mxu0 0
    %161 = vmatprep.subr.bf16.mxu0 0
    %162 = vmatpush1.bf16.msra.mxu0 0
    %163 = vmatprep.subr.bf16.mxu0 0
    %164 = vmatpush1.bf16.msra.mxu0 0
    %165 = vmatprep.subr.bf16.mxu0 0
    %166 = vmatpush1.bf16.msra.mxu0 0
    %167 = vmatprep.subr.bf16.mxu0 0
    %168 = vmatpush1.bf16.msra.mxu0 0
    %169 = vmatprep.subr.bf16.mxu0 0
    %170 = vmatpush1.bf16.msra.mxu0 0
    %171 = vmatprep.subr.bf16.mxu0 0
    %172 = vmatpush1.bf16.msra.mxu0 0
    %173 = vmatprep.subr.bf16.mxu0 0
    %174 = vmatpush1.bf16.msra.mxu0 0
    %175 = vmatprep.subr.bf16.mxu0 0
    %176 = vmatpush1.bf16.msra.mxu0 0
    %177 = vmatprep.mubr.bf16.mxu0 0
    %178 = vmatmul.mubr.bf16.gmra.mrb[0].mxu0 %v143
    %v179 = vpop.f32.mrb[0].mxu0
    %v180 = vadd.f32 %v44, %v179
    %v181 = vpop.f32.mrb[0].mxu0
    %v182 = vadd.f32 %v48, %v181
    %v183 = vpop.f32.mrb[0].mxu0
    %v184 = vpop.f32.mrb[0].mxu0
    %185 = vdwg.mxu0
    %186 = vmatprep.subr.bf16.mxu0 %v112
    %187 = vmatpush1.bf16.msra.mxu0 %v111
    %188 = vmatprep.subr.bf16.mxu0 %v116
    %189 = vmatpush1.bf16.msra.mxu0 %v115
    %190 = vmatprep.subr.bf16.mxu0 %v120
    %191 = vmatpush1.bf16.msra.mxu0 %v119
    %192 = vmatprep.subr.bf16.mxu0 %v124
    %193 = vmatpush1.bf16.msra.mxu0 %v123
    %194 = vmatprep.subr.bf16.mxu0 0
    %195 = vmatpush1.bf16.msra.mxu0 0
    %196 = vmatprep.subr.bf16.mxu0 0
    %197 = vmatpush1.bf16.msra.mxu0 0
    %198 = vmatprep.subr.bf16.mxu0 0
    %199 = vmatpush1.bf16.msra.mxu0 0
    %200 = vmatprep.subr.bf16.mxu0 0
    %201 = vmatpush1.bf16.msra.mxu0 0
    %202 = vmatprep.subr.bf16.mxu0 0
    %203 = vmatpush1.bf16.msra.mxu0 0
    %204 = vmatprep.subr.bf16.mxu0 0
    %205 = vmatpush1.bf16.msra.mxu0 0
    %206 = vmatprep.subr.bf16.mxu0 0
    %207 = vmatpush1.bf16.msra.mxu0 0
    %208 = vmatprep.subr.bf16.mxu0 0
    %209 = vmatpush1.bf16.msra.mxu0 0
    %210 = vmatprep.subr.bf16.mxu0 0
    %211 = vmatpush1.bf16.msra.mxu0 0
    %212 = vmatprep.subr.bf16.mxu0 0
    %213 = vmatpush1.bf16.msra.mxu0 0
    %214 = vmatprep.subr.bf16.mxu0 0
    %215 = vmatpush1.bf16.msra.mxu0 0
    %216 = vmatprep.subr.bf16.mxu0 0
    %217 = vmatpush1.bf16.msra.mxu0 0
    %218 = vmatprep.mubr.bf16.mxu0 0
    %219 = vmatmul.mubr.bf16.gmra.mrb[0].mxu0 %v143
    %v220 = vpop.f32.mrb[0].mxu0
    %v221 = vadd.f32 %v52, %v220
    %v222 = vpop.f32.mrb[0].mxu0
    %v223 = vadd.f32 %v56, %v222
    %v224 = vpop.f32.mrb[0].mxu0
    %v225 = vpop.f32.mrb[0].mxu0
    %226 = vdwg.mxu0
    %v227 = vmax.f32 %v180, 0.0
    %v228 = vmax.f32 %v182, 0.0
    %v229 = vmax.f32 %v221, 0.0
    %v230 = vmax.f32 %v223, 0.0
    %v231 = vpack.c.bf16 %v227, %v227
    %v232 = vpack.c.bf16 %v228, %v228
    %v233 = vpack.c.bf16 %v229, %v229
    %v234 = vpack.c.bf16 %v230, %v230
    %v239 = vcombine.low %v231, %v232
    %v240 = vcombine.low %v233, %v234
    %v242 = vunpack.c.l.s4 1966171168
    %v243 = vunpack.c.0.s8 %v242
    %v244 = vlaneseq
    %v245 = vshrl.u32 %v244, 7
    %v246 = vsub.s32 %v243, %v245
    %v247 = vrot.slane %v239, %v246
    %v249 = vunpack.c.l.s4 1966171168
    %v250 = vunpack.c.0.s8 %v249
    %v251 = vlaneseq
    %v252 = vshrl.u32 %v251, 7
    %v253 = vsub.s32 %v250, %v252
    %v254 = vrot.slane %v240, %v253
    %v255 = vcombine.low %v247, %v254
    %v257 = vunpack.c.l.s4 1966171168
    %v258 = vunpack.c.0.s8 %v257
    %v259 = vlaneseq
    %v260 = vshrl.u32 %v259, 7
    %v261 = vsub.s32 %v258, %v260
    %v262 = vrot.slane %v255, %v261
    %264 = vst [vmem:[#allocation2] sm:$0xf] %v262
    %v265 = vld [vmem:[#allocation2] sm:$0xf]
    %v266 = vld [vmem:[%s3] sm:$0xf]
    %v267 = vld [vmem:[%s3 + $0x4] sm:$0xf]
    %v268 = vld [vmem:[%s3 + $0x8] sm:$0xf]
    %v269 = vld [vmem:[%s3 + $0xc] sm:$0xf]
    %v270 = vld [vmem:[%s3 + $0x10] sm:$0xf]
    %v271 = vld [vmem:[%s3 + $0x14] sm:$0xf]
    %v272 = vld [vmem:[%s3 + $0x18] sm:$0xf]
    %v273 = vld [vmem:[%s3 + $0x1c] sm:$0xf]
    %v274 = vld [vmem:[%s3 + $0x20] sm:$0xf]
    %v275 = vld [vmem:[%s3 + $0x24] sm:$0xf]
    %v276 = vld [vmem:[%s3 + $0x28] sm:$0xf]
    %v277 = vld [vmem:[%s3 + $0x2c] sm:$0xf]
    %v278 = vld [vmem:[%s3 + $0x30] sm:$0xf]
    %v279 = vld [vmem:[%s3 + $0x34] sm:$0xf]
    %v280 = vld [vmem:[%s3 + $0x38] sm:$0xf]
    %v281 = vld [vmem:[%s3 + $0x3c] sm:$0xf]
    %v282 = vld [vmem:[%s3 + $0x40] sm:$0xf]
    %v283 = vld [vmem:[%s3 + $0x44] sm:$0xf]
    %v284 = vld [vmem:[%s3 + $0x48] sm:$0xf]
    %v285 = vld [vmem:[%s3 + $0x4c] sm:$0xf]
    %v286 = vld [vmem:[%s3 + $0x50] sm:$0xf]
    %v287 = vld [vmem:[%s3 + $0x54] sm:$0xf]
    %v288 = vld [vmem:[%s3 + $0x58] sm:$0xf]
    %v289 = vld [vmem:[%s3 + $0x5c] sm:$0xf]
    %v290 = vld [vmem:[%s3 + $0x60] sm:$0xf]
    %v291 = vld [vmem:[%s3 + $0x64] sm:$0xf]
    %v292 = vld [vmem:[%s3 + $0x68] sm:$0xf]
    %v293 = vld [vmem:[%s3 + $0x6c] sm:$0xf]
    %v294 = vld [vmem:[%s3 + $0x70] sm:$0xf]
    %v295 = vld [vmem:[%s3 + $0x74] sm:$0xf]
    %v296 = vld [vmem:[%s3 + $0x78] sm:$0xf]
    %v297 = vld [vmem:[%s3 + $0x7c] sm:$0xf]
    %v298 = vld [vmem:[%s3 + $0x80] sm:$0xf]
    %v299 = vld [vmem:[%s3 + $0x84] sm:$0xf]
    %v300 = vld [vmem:[%s3 + $0x88] sm:$0xf]
    %v301 = vld [vmem:[%s3 + $0x8c] sm:$0xf]
    %v302 = vld [vmem:[%s3 + $0x90] sm:$0xf]
    %v303 = vld [vmem:[%s3 + $0x94] sm:$0xf]
    %v304 = vld [vmem:[%s3 + $0x98] sm:$0xf]
    %v305 = vld [vmem:[%s3 + $0x9c] sm:$0xf]
    %v306 = vld [vmem:[%s3 + $0xa0] sm:$0xf]
    %v307 = vld [vmem:[%s3 + $0xa4] sm:$0xf]
    %v308 = vld [vmem:[%s3 + $0xa8] sm:$0xf]
    %v309 = vld [vmem:[%s3 + $0xac] sm:$0xf]
    %v310 = vld [vmem:[%s3 + $0xb0] sm:$0xf]
    %v311 = vld [vmem:[%s3 + $0xb4] sm:$0xf]
    %v312 = vld [vmem:[%s3 + $0xb8] sm:$0xf]
    %v313 = vld [vmem:[%s3 + $0xbc] sm:$0xf]
    %v314 = vld [vmem:[%s3 + $0xc0] sm:$0xf]
    %v315 = vld [vmem:[%s3 + $0xc4] sm:$0xf]
    %v316 = vld [vmem:[%s3 + $0xc8] sm:$0xf]
    %v317 = vld [vmem:[%s3 + $0xcc] sm:$0xf]
    %v318 = vld [vmem:[%s3 + $0xd0] sm:$0xf]
    %v319 = vld [vmem:[%s3 + $0xd4] sm:$0xf]
    %v320 = vld [vmem:[%s3 + $0xd8] sm:$0xf]
    %v321 = vld [vmem:[%s3 + $0xdc] sm:$0xf]
    %v322 = vld [vmem:[%s3 + $0xe0] sm:$0xf]
    %v323 = vld [vmem:[%s3 + $0xe4] sm:$0xf]
    %v324 = vld [vmem:[%s3 + $0xe8] sm:$0xf]
    %v325 = vld [vmem:[%s3 + $0xec] sm:$0xf]
    %v326 = vld [vmem:[%s3 + $0xf0] sm:$0xf]
    %v327 = vld [vmem:[%s3 + $0xf4] sm:$0xf]
    %v328 = vld [vmem:[%s3 + $0xf8] sm:$0xf]
    %v329 = vld [vmem:[%s3 + $0xfc] sm:$0xf]
    %v330 = vld [vmem:[%s4] sm:$0x1]
    %v332 = vlaneseq
    %v333 = vshrl.u32 %v332, 7
    %v334 = vsub.s32 0, %v333
    %v335 = vrot.slane %v330, %v334
    %v339 = vunpack.c.l.s4 1966171168
    %v340 = vunpack.c.0.s8 %v339
    %v341 = vlaneseq
    %v342 = vshrl.u32 %v341, 7
    %v343 = vsub.s32 %v340, %v342
    %v344 = vrot.slane %v265, %v343
    %v345 = vcombine.high %v344, %v344
    %v347 = vunpack.c.l.s4 1966171168
    %v348 = vunpack.c.0.s8 %v347
    %v349 = vlaneseq
    %v350 = vshrl.u32 %v349, 7
    %v351 = vsub.s32 %v348, %v350
    %v352 = vrot.slane %v344, %v351
    %v354 = vunpack.c.l.s4 1966171168
    %v355 = vunpack.c.0.s8 %v354
    %v356 = vlaneseq
    %v357 = vshrl.u32 %v356, 7
    %v358 = vsub.s32 %v355, %v357
    %v359 = vrot.slane %v345, %v358
    %v360 = vcombine.high %v352, %v352
    %v361 = vcombine.high %v359, %v359
    %v430 = vunpack.c.l.b16 %v266
    %v431 = vunpack.c.l.b16 %v267
    %v432 = vunpack.c.l.b16 %v268
    %v433 = vunpack.c.l.b16 %v269
    %v434 = vunpack.c.l.b16 %v270
    %v435 = vunpack.c.l.b16 %v271
    %v436 = vunpack.c.l.b16 %v272
    %v437 = vunpack.c.l.b16 %v273
    %v438 = vunpack.c.l.b16 %v274
    %v439 = vunpack.c.l.b16 %v275
    %v440 = vunpack.c.l.b16 %v276
    %v441 = vunpack.c.l.b16 %v277
    %v442 = vunpack.c.l.b16 %v278
    %v443 = vunpack.c.l.b16 %v279
    %v444 = vunpack.c.l.b16 %v280
    %v445 = vunpack.c.l.b16 %v281
    %v446 = vunpack.c.l.b16 %v282
    %v447 = vunpack.c.l.b16 %v283
    %v448 = vunpack.c.l.b16 %v284
    %v449 = vunpack.c.l.b16 %v285
    %v450 = vunpack.c.l.b16 %v286
    %v451 = vunpack.c.l.b16 %v287
    %v452 = vunpack.c.l.b16 %v288
    %v453 = vunpack.c.l.b16 %v289
    %v454 = vunpack.c.l.b16 %v290
    %v455 = vunpack.c.l.b16 %v291
    %v456 = vunpack.c.l.b16 %v292
    %v457 = vunpack.c.l.b16 %v293
    %v458 = vunpack.c.l.b16 %v294
    %v459 = vunpack.c.l.b16 %v295
    %v460 = vunpack.c.l.b16 %v296
    %v461 = vunpack.c.l.b16 %v297
    %v462 = vunpack.c.l.b16 %v298
    %v463 = vunpack.c.l.b16 %v299
    %v464 = vunpack.c.l.b16 %v300
    %v465 = vunpack.c.l.b16 %v301
    %v466 = vunpack.c.l.b16 %v302
    %v467 = vunpack.c.l.b16 %v303
    %v468 = vunpack.c.l.b16 %v304
    %v469 = vunpack.c.l.b16 %v305
    %v470 = vunpack.c.l.b16 %v306
    %v471 = vunpack.c.l.b16 %v307
    %v472 = vunpack.c.l.b16 %v308
    %v473 = vunpack.c.l.b16 %v309
    %v474 = vunpack.c.l.b16 %v310
    %v475 = vunpack.c.l.b16 %v311
    %v476 = vunpack.c.l.b16 %v312
    %v477 = vunpack.c.l.b16 %v313
    %v478 = vunpack.c.l.b16 %v314
    %v479 = vunpack.c.l.b16 %v315
    %v480 = vunpack.c.l.b16 %v316
    %v481 = vunpack.c.l.b16 %v317
    %v482 = vunpack.c.l.b16 %v318
    %v483 = vunpack.c.l.b16 %v319
    %v484 = vunpack.c.l.b16 %v320
    %v485 = vunpack.c.l.b16 %v321
    %v486 = vunpack.c.l.b16 %v322
    %v487 = vunpack.c.l.b16 %v323
    %v488 = vunpack.c.l.b16 %v324
    %v489 = vunpack.c.l.b16 %v325
    %v490 = vunpack.c.l.b16 %v326
    %v491 = vunpack.c.l.b16 %v327
    %v492 = vunpack.c.l.b16 %v328
    %v493 = vunpack.c.l.b16 %v329
    %v494 = vpack.c.b16 %v431, %v430
    %v495 = vpack.c.b16 %v433, %v432
    %v496 = vpack.c.b16 %v435, %v434
    %v497 = vpack.c.b16 %v437, %v436
    %v498 = vpack.c.b16 %v439, %v438
    %v499 = vpack.c.b16 %v441, %v440
    %v500 = vpack.c.b16 %v443, %v442
    %v501 = vpack.c.b16 %v445, %v444
    %v502 = vpack.c.b16 %v447, %v446
    %v503 = vpack.c.b16 %v449, %v448
    %v504 = vpack.c.b16 %v451, %v450
    %v505 = vpack.c.b16 %v453, %v452
    %v506 = vpack.c.b16 %v455, %v454
    %v507 = vpack.c.b16 %v457, %v456
    %v508 = vpack.c.b16 %v459, %v458
    %v509 = vpack.c.b16 %v461, %v460
    %v510 = vpack.c.b16 %v463, %v462
    %v511 = vpack.c.b16 %v465, %v464
    %v512 = vpack.c.b16 %v467, %v466
    %v513 = vpack.c.b16 %v469, %v468
    %v514 = vpack.c.b16 %v471, %v470
    %v515 = vpack.c.b16 %v473, %v472
    %v516 = vpack.c.b16 %v475, %v474
    %v517 = vpack.c.b16 %v477, %v476
    %v518 = vpack.c.b16 %v479, %v478
    %v519 = vpack.c.b16 %v481, %v480
    %v520 = vpack.c.b16 %v483, %v482
    %v521 = vpack.c.b16 %v485, %v484
    %v522 = vpack.c.b16 %v487, %v486
    %v523 = vpack.c.b16 %v489, %v488
    %v524 = vpack.c.b16 %v491, %v490
    %v525 = vpack.c.b16 %v493, %v492
    %558 = vmatprep.subr.bf16.mxu0 0
    %559 = vmatpush1.bf16.msra.mxu0 %v494
    %560 = vmatprep.subr.bf16.mxu0 0
    %561 = vmatpush1.bf16.msra.mxu0 %v495
    %562 = vmatprep.subr.bf16.mxu0 0
    %563 = vmatpush1.bf16.msra.mxu0 %v496
    %564 = vmatprep.subr.bf16.mxu0 0
    %565 = vmatpush1.bf16.msra.mxu0 %v497
    %566 = vmatprep.subr.bf16.mxu0 0
    %567 = vmatpush1.bf16.msra.mxu0 %v498
    %568 = vmatprep.subr.bf16.mxu0 0
    %569 = vmatpush1.bf16.msra.mxu0 %v499
    %570 = vmatprep.subr.bf16.mxu0 0
    %571 = vmatpush1.bf16.msra.mxu0 %v500
    %572 = vmatprep.subr.bf16.mxu0 0
    %573 = vmatpush1.bf16.msra.mxu0 %v501
    %574 = vmatprep.subr.bf16.mxu0 0
    %575 = vmatpush1.bf16.msra.mxu0 %v502
    %576 = vmatprep.subr.bf16.mxu0 0
    %577 = vmatpush1.bf16.msra.mxu0 %v503
    %578 = vmatprep.subr.bf16.mxu0 0
    %579 = vmatpush1.bf16.msra.mxu0 %v504
    %580 = vmatprep.subr.bf16.mxu0 0
    %581 = vmatpush1.bf16.msra.mxu0 %v505
    %582 = vmatprep.subr.bf16.mxu0 0
    %583 = vmatpush1.bf16.msra.mxu0 %v506
    %584 = vmatprep.subr.bf16.mxu0 0
    %585 = vmatpush1.bf16.msra.mxu0 %v507
    %586 = vmatprep.subr.bf16.mxu0 0
    %587 = vmatpush1.bf16.msra.mxu0 %v508
    %588 = vmatprep.subr.bf16.mxu0 0
    %589 = vmatpush1.bf16.msra.mxu0 %v509
    %590 = vmatprep.mubr.bf16.mxu0 %v359
    %591 = vmatmul.mubr.bf16.gmra.mrb[0].mxu0 %v352
    %v592 = vpop.f32.mrb[0].mxu0
    %v593 = vadd.f32 %v335, %v592
    %v594 = vpop.f32.mrb[0].mxu0
    %v595 = vpop.f32.mrb[0].mxu0
    %v596 = vpop.f32.mrb[0].mxu0
    %597 = vdwg.mxu0
    %598 = vmatprep.subr.bf16.mxu0 0
    %599 = vmatpush1.bf16.msra.mxu0 %v510
    %600 = vmatprep.subr.bf16.mxu0 0
    %601 = vmatpush1.bf16.msra.mxu0 %v511
    %602 = vmatprep.subr.bf16.mxu0 0
    %603 = vmatpush1.bf16.msra.mxu0 %v512
    %604 = vmatprep.subr.bf16.mxu0 0
    %605 = vmatpush1.bf16.msra.mxu0 %v513
    %606 = vmatprep.subr.bf16.mxu0 0
    %607 = vmatpush1.bf16.msra.mxu0 %v514
    %608 = vmatprep.subr.bf16.mxu0 0
    %609 = vmatpush1.bf16.msra.mxu0 %v515
    %610 = vmatprep.subr.bf16.mxu0 0
    %611 = vmatpush1.bf16.msra.mxu0 %v516
    %612 = vmatprep.subr.bf16.mxu0 0
    %613 = vmatpush1.bf16.msra.mxu0 %v517
    %614 = vmatprep.subr.bf16.mxu0 0
    %615 = vmatpush1.bf16.msra.mxu0 %v518
    %616 = vmatprep.subr.bf16.mxu0 0
    %617 = vmatpush1.bf16.msra.mxu0 %v519
    %618 = vmatprep.subr.bf16.mxu0 0
    %619 = vmatpush1.bf16.msra.mxu0 %v520
    %620 = vmatprep.subr.bf16.mxu0 0
    %621 = vmatpush1.bf16.msra.mxu0 %v521
    %622 = vmatprep.subr.bf16.mxu0 0
    %623 = vmatpush1.bf16.msra.mxu0 %v522
    %624 = vmatprep.subr.bf16.mxu0 0
    %625 = vmatpush1.bf16.msra.mxu0 %v523
    %626 = vmatprep.subr.bf16.mxu0 0
    %627 = vmatpush1.bf16.msra.mxu0 %v524
    %628 = vmatprep.subr.bf16.mxu0 0
    %629 = vmatpush1.bf16.msra.mxu0 %v525
    %630 = vmatprep.mubr.bf16.mxu0 %v361
    %631 = vmatmul.mubr.bf16.gmra.mrb[0].mxu0 %v360
    %v632 = vpop.f32.mrb[0].mxu0
    %v633 = vadd.f32 %v593, %v632
    %v634 = vpop.f32.mrb[0].mxu0
    %v635 = vpop.f32.mrb[0].mxu0
    %v636 = vpop.f32.mrb[0].mxu0
    %637 = vdwg.mxu0
    %vm638 = vcmask 41984
    %639 = vst.msk [vmem:[#allocation3] sm:$0x3] %vm638, %v633
    // Predicated region
    $region22: #{dqn_forward.7} parent=1 // pred_check
      _
    $region23: #{dqn_forward.7} parent=1 // pred_check_branch
      %641 = sbr.rel (0) target = $region25
    $region24: #{dqn_forward.7} parent=1 // pred_region
      %s643 = ssub.s32 32, 32
      %644 = vsyncadd [#allocation4], %s643
      %s646 = sshll.u32 [#allocation3], 4
      %s647 = int_to_ptr.vmem [resolvable:$true] %s646
      %649 = dma.vmem_to_hbm [thread:$0]  %s647, 32, %s5, [#allocation4]
    $region25: #{dqn_forward.7} parent=1 // pred_fallthru
      _
    // Predicated region
    $region26: #{dqn_forward.7} parent=1 // pred_check
      _
    $region27: #{dqn_forward.7} parent=1 // pred_check_branch
      %651 = sbr.rel (0) target = $region29
    $region28: #{dqn_forward.7} parent=1 // pred_region
      %652 = dma.done [#allocation4], 32
    $region29: #{dqn_forward.7} parent=1 // pred_fallthru
      _
    %653 = vsyncpa [#allocation4], 1

</llo_original>
